<compile_context>
chip_gen: v5e
topology: v5e:2x2
jax: 0.10.0
libtpu: 0.0.40
codegen_flags: <defaults>
</compile_context>

<pallas_src>
import math
import functools

import jax
import jax.numpy as jnp
from jax import lax
from jax.experimental import pallas as pl
from jax.experimental.pallas import tpu as pltpu

MIN_VAL = float(jnp.finfo(jnp.float32).min)


def _gelu(x):
    # TODO(synk): PyTorch's default GELU uses exact erf; tanh approximation used here since
    # erf has no guaranteed Mosaic lowering (difference < ~1e-3).
    c = math.sqrt(2.0 / math.pi)
    return 0.5 * x * (1.0 + jnp.tanh(c * (x + 0.044715 * x * x * x)))


def _layer_norm(y, gamma, beta, eps):
    mu = jnp.mean(y, axis=-1, keepdims=True)
    var = jnp.mean((y - mu) ** 2, axis=-1, keepdims=True)
    return (y - mu) * lax.rsqrt(var + eps) * gamma + beta


def bert_layer_kernel(mask_ref, h_ref,
                      wqkv_ref, bqkv_ref,
                      wao_ref, bao_ref, g1_ref, be1_ref,
                      wi_ref, bi_ref, wo_ref, bo_ref, g2_ref, be2_ref,
                      out_ref,
                      qkv_scr, q_scr, k_scr, v_scr, ctxh_scr, ctx_scr, attn_scr, ffn_scr,
                      *, num_heads, head_dim, eps, q_tile, i_tile):
    H = num_heads * head_dim
    d = head_dim
    bf16 = jnp.bfloat16
    f32 = jnp.float32

    x = h_ref[0]                       # (S, H) f32
    S = x.shape[0]
    m = mask_ref[0]                    # (1, S) f32
    ext_mask = (1.0 - m) * MIN_VAL     # broadcast over query rows

    # ---- fused QKV projection: one (S,H)x(H,3H) MXU GEMM, bf16 operands, f32 accumulation.
    x_bf = x.astype(bf16)
    qkv = jnp.dot(x_bf, wqkv_ref[...], preferred_element_type=f32) + bqkv_ref[...]
    qkv_scr[...] = qkv.astype(bf16)    # bounded, bf16 scratch (halves VMEM + re-read traffic)

    # Head-major repack (static lane offsets, done once) so the attention loop below only
    # uses aligned leading-dim dynamic indexing.
    for h in range(num_heads):
        lo = h * d
        q_scr[h, :, :] = qkv_scr[:, lo:lo + d]
        k_scr[h, :, :] = qkv_scr[:, H + lo:H + lo + d]
        v_scr[h, :, :] = qkv_scr[:, 2 * H + lo:2 * H + lo + d]

    scale = 1.0 / math.sqrt(d)
    nqt = S // q_tile

    # ---- per-head attention: fori over heads (bounds live ranges), fori over query tiles
    # (bounds the score working set to (q_tile, S)).
    def head_body(h, carry):
        kh = k_scr[h, :, :]            # (S, d) bf16
        vh = v_scr[h, :, :]            # (S, d) bf16

        def qtile_body(t, carry2):
            q0 = pl.multiple_of(t * q_tile, q_tile)
            qt = q_scr[h, pl.ds(q0, q_tile), :]                       # (TQ, d) bf16
            s = lax.dot_general(qt, kh, (((1,), (1,)), ((), ())),
                                preferred_element_type=f32) * scale   # (TQ, S) f32
            s = s + ext_mask
            s = s - jnp.max(s, axis=-1, keepdims=True)
            p = jnp.exp(s)                                            # EUP
            p = p * pl.reciprocal(jnp.sum(p, axis=-1, keepdims=True), approx=True)
            ctx_t = jnp.dot(p.astype(bf16), vh, preferred_element_type=f32)
            ctxh_scr[h, pl.ds(q0, q_tile), :] = ctx_t.astype(bf16)
            return carry2

        return lax.fori_loop(0, nqt, qtile_body, carry)

    lax.fori_loop(0, num_heads, head_body, 0)

    # Reassemble (S, H) context with static lane offsets so the attention-output GEMM keeps
    # its full K=H contraction (where MXU utilization is actually won).
    for h in range(num_heads):
        lo = h * d
        ctx_scr[:, lo:lo + d] = ctxh_scr[h, :, :]

    # ---- BertSelfOutput: dense + residual + LayerNorm (element-wise math in f32).
    a = jnp.dot(ctx_scr[...], wao_ref[...], preferred_element_type=f32) + bao_ref[...]
    attn_scr[...] = _layer_norm(a + x, g1_ref[...], be1_ref[...], eps)

    # ---- FFN (BertIntermediate + BertOutput), chunked over the intermediate dim so the
    # (S, I) intermediate is never fully live; wo contributions accumulate in f32.
    attn_bf = attn_scr[...].astype(bf16)
    n_chunks = wi_ref.shape[1] // i_tile
    for c in range(n_chunks):
        lo = c * i_tile
        ic = jnp.dot(attn_bf, wi_ref[:, lo:lo + i_tile],
                     preferred_element_type=f32) + bi_ref[:, lo:lo + i_tile]
        ic = _gelu(ic).astype(bf16)
        contrib = jnp.dot(ic, wo_ref[lo:lo + i_tile, :], preferred_element_type=f32)
        if c == 0:
            ffn_scr[...] = contrib
        else:
            ffn_scr[...] = ffn_scr[...] + contrib

    o = ffn_scr[...] + bo_ref[...]
    out_ref[0] = _layer_norm(o + attn_scr[...], g2_ref[...], be2_ref[...], eps)


def _pick_tile(n, candidates):
    for c in candidates:
        if c <= n and n % c == 0:
            return c
    return n


def _default_vmem_limit_bytes():
    # Generation-aware scoped-VMEM limit: 7/8 of physical (112 MiB on v5e/v6e, 56 MiB on v7x),
    # leaving headroom for Mosaic internal scratch.
    try:
        info = pltpu.get_tpu_info()
        cap = getattr(info, "vmem_capacity_bytes", None)
        if cap:
            return int(cap) * 7 // 8
    except Exception:
        pass
    return 96 << 20  # conservative fallback (safe on 128 MiB parts)


def _rep_spec(shape, single_buffer=True):
    # Grid-invariant operand (weights / biases / LN params): constant index_map, so
    # double-buffering gives zero pipelining benefit -> single-buffer to halve resident VMEM.
    idx = lambda b, _n=len(shape): (0,) * _n
    if single_buffer:
        return pl.BlockSpec(shape, idx, pipeline_mode=pl.Buffered(1))
    return pl.BlockSpec(shape, idx)


def bert_layer_forward(hidden, mask, params, *, num_heads, eps=1e-12,
                       vmem_limit_bytes=None, q_tile=None, i_tile=None):
    B, S, H = hidden.shape
    I = params["wi"].shape[1]
    if H % num_heads != 0:
        raise ValueError(f"hidden size ({H}) is not a multiple of num_heads ({num_heads})")
    head_dim = H // num_heads
    bf16 = jnp.bfloat16

    if q_tile is None:
        q_tile = _pick_tile(S, (128, 256, 64, 32, 16, 8))
    if i_tile is None:
        i_tile = _pick_tile(I, (512, 1024, 384, 256, 128))
    assert S % q_tile == 0 and I % i_tile == 0

    if vmem_limit_bytes is None:
        vmem_limit_bytes = _default_vmem_limit_bytes()

    # Host-side packing: fused QKV weight/bias; all GEMM weights shipped as bf16.
    wqkv = jnp.concatenate([params["wq"], params["wk"], params["wv"]], axis=1).astype(bf16)
    bqkv = jnp.concatenate(
        [params["bq"], params["bk"], params["bv"]]).reshape(1, 3 * H).astype(jnp.float32)

    mask3 = mask.astype(jnp.float32).reshape(B, 1, S)
    row = lambda v: v.reshape(1, -1).astype(jnp.float32)

    kernel = functools.partial(bert_layer_kernel, num_heads=num_heads, head_dim=head_dim,
                               eps=eps, q_tile=q_tile, i_tile=i_tile)

    # Advisory cost for XLA's scheduler.
    flops = 2 * B * S * (4 * H * H + 2 * S * H + 2 * H * I)
    transcendentals = B * (num_heads * S * S + S * I)
    bytes_accessed = (2 * (3 * H * H + H * H + 2 * H * I)          # bf16 weights
                      + 4 * (3 * H + 6 * H + I)                    # biases + LN params
                      + 4 * B * S * (2 * H + 1))                   # activations in/out + mask
    cost = pl.CostEstimate(flops=int(flops), transcendentals=int(transcendentals),
                           bytes_accessed=int(bytes_accessed))

    operands = (mask3, hidden,
                wqkv, bqkv,
                params["wao"].astype(bf16), row(params["bao"]),
                row(params["g1"]), row(params["be1"]),
                params["wi"].astype(bf16), row(params["bi"]),
                params["wo"].astype(bf16), row(params["bo"]),
                row(params["g2"]), row(params["be2"]))

    scratch_shapes = [
        pltpu.VMEM((S, 3 * H), bf16),                    # fused QKV activations (bf16)
        pltpu.VMEM((num_heads, S, head_dim), bf16),      # Q head-major
        pltpu.VMEM((num_heads, S, head_dim), bf16),      # K head-major
        pltpu.VMEM((num_heads, S, head_dim), bf16),      # V head-major
        pltpu.VMEM((num_heads, S, head_dim), bf16),      # per-head context
        pltpu.VMEM((S, H), bf16),                        # reassembled context
        pltpu.VMEM((S, H), jnp.float32),                 # attention-block output (residual)
        pltpu.VMEM((S, H), jnp.float32),                 # FFN accumulator
    ]

    def run(single_buffer_weights):
        rep = functools.partial(_rep_spec, single_buffer=single_buffer_weights)
        in_specs = [
            pl.BlockSpec((1, 1, S), lambda b: (b, 0, 0)),   # mask
            pl.BlockSpec((1, S, H), lambda b: (b, 0, 0)),   # hidden states
            rep((H, 3 * H)), rep((1, 3 * H)),               # fused QKV weight (bf16), bias
            rep((H, H)), rep((1, H)),                       # attention output dense (bf16)
            rep((1, H)), rep((1, H)),                       # LN1 gamma, beta
            rep((H, I)), rep((1, I)),                       # intermediate dense (bf16)
            rep((I, H)), rep((1, H)),                       # output dense (bf16)
            rep((1, H)), rep((1, H)),                       # LN2 gamma, beta
        ]
        # TODO(synk): for v7x, add a second "parallel" grid axis (query tiles / head groups)
        # so both TensorCores are used at batch=1, and stream wi/wo from HBM
        # (memory_space=pl.ANY + pltpu.emit_pipeline) instead of keeping them VMEM-resident;
        # emit bf16 activations end-to-end if the surrounding model runs bf16.
        return pl.pallas_call(
            kernel,
            grid=(B,),
            in_specs=in_specs,
            out_specs=pl.BlockSpec((1, S, H), lambda b: (b, 0, 0)),
            out_shape=jax.ShapeDtypeStruct((B, S, H), jnp.float32),
            scratch_shapes=scratch_shapes,
            compiler_params=pltpu.CompilerParams(
                dimension_semantics=("parallel",),
                vmem_limit_bytes=int(vmem_limit_bytes)),
            cost_estimate=cost,
        )(*operands)

    try:
        return run(True)
    except Exception:
        # Fallback if pipeline_mode=pl.Buffered(1) is not supported by this jax/Mosaic build.
        return run(False)


def reference_forward(hidden, mask, params, *, num_heads, eps=1e-12, match_kernel=False):
    """Pure-JAX reference mirroring the PyTorch forward (eval mode).

    match_kernel=True casts GEMM operands / parked activations to bf16 exactly where the
    kernel does, so the comparison tolerance can be tight.
    """
    B, S, H = hidden.shape
    d = H // num_heads
    f32 = jnp.float32
    cast = (lambda t: t.astype(jnp.bfloat16)) if match_kernel else (lambda t: t)

    def lin(x, w, b):
        return jnp.dot(cast(x), cast(w), preferred_element_type=f32) + b

    def split_heads(t):
        return t.reshape(B, S, num_heads, d).transpose(0, 2, 1, 3)

    q = split_heads(cast(lin(hidden, params["wq"], params["bq"])))
    k = split_heads(cast(lin(hidden, params["wk"], params["bk"])))
    v = split_heads(cast(lin(hidden, params["wv"], params["bv"])))

    scores = jnp.einsum("bhqd,bhkd->bhqk", q, k,
                        preferred_element_type=f32) / math.sqrt(d)
    ext = (1.0 - mask.astype(f32))[:, None, None, :] * MIN_VAL
    probs = jax.nn.softmax(scores + ext, axis=-1)
    ctx = jnp.einsum("bhqk,bhkd->bhqd", cast(probs), v, preferred_element_type=f32)
    ctx = ctx.transpose(0, 2, 1, 3).reshape(B, S, H)

    a = lin(ctx, params["wao"], params["bao"])
    attn = _layer_norm(a + hidden, params["g1"], params["be1"], eps)
    inter = _gelu(lin(attn, params["wi"], params["bi"]))
    o = lin(inter, params["wo"], params["bo"])
    return _layer_norm(o + attn, params["g2"], params["be2"], eps)


def init_params(key, hidden_size, intermediate_size):
    H, I = hidden_size, intermediate_size
    keys = jax.random.split(key, 12)
    n = lambda k, s: (0.02 * jax.random.normal(k, s, dtype=jnp.float32))
    return {
        "wq": n(keys[0], (H, H)), "bq": n(keys[1], (H,)),
        "wk": n(keys[2], (H, H)), "bk": n(keys[3], (H,)),
        "wv": n(keys[4], (H, H)), "bv": n(keys[5], (H,)),
        "wao": n(keys[6], (H, H)), "bao": n(keys[7], (H,)),
        "g1": jnp.ones((H,), jnp.float32), "be1": jnp.zeros((H,), jnp.float32),
        "wi": n(keys[8], (H, I)), "bi": n(keys[9], (I,)),
        "wo": n(keys[10], (I, H)), "bo": n(keys[11], (H,)),
        "g2": jnp.ones((H,), jnp.float32), "be2": jnp.zeros((H,), jnp.float32),
    }


if __name__ == "__main__":
    B, S, H, NH, I = 2, 8, 32, 4, 64
    key = jax.random.PRNGKey(0)
    k_x, k_p = jax.random.split(key)

    hidden = jax.random.normal(k_x, (B, S, H), dtype=jnp.float32)
    # Exercise the attention-mask path: pad out the last 3 keys of batch element 1.
    mask = jnp.ones((B, S), dtype=jnp.float32).at[1, S - 3:].set(0.0)
    params = init_params(k_p, H, I)

    out = jax.block_until_ready(bert_layer_forward(hidden, mask, params, num_heads=NH))
    assert out.shape == (B, S, H)
    assert bool(jnp.all(jnp.isfinite(out)))

    # Tight check against a bf16-matched reference (same operand casts as the kernel).
    ref_matched = reference_forward(hidden, mask, params, num_heads=NH, match_kernel=True)
    err = float(jnp.max(jnp.abs(out - ref_matched)))
    assert err < 2e-2, f"max abs err vs bf16-matched reference: {err}"

    # Loose sanity check against the pure-f32 reference.
    ref_f32 = reference_forward(hidden, mask, params, num_heads=NH, match_kernel=False)
    err32 = float(jnp.max(jnp.abs(out - ref_f32)))
    assert err32 < 1e-1, f"max abs err vs f32 reference: {err32}"

    print("KERNEL_OK")
</pallas_src>

<mosaic_0001>
module attributes {stable_mosaic.version = 11 : i64} {
  func.func @bert_layer_kernel(%arg0: i32, %arg1: memref<1x1x8xf32, #tpu.memory_space<vmem>>, %arg2: memref<1x8x32xf32, #tpu.memory_space<vmem>>, %arg3: memref<32x96xbf16, #tpu.memory_space<vmem>>, %arg4: memref<1x96xf32, #tpu.memory_space<vmem>>, %arg5: memref<32x32xbf16, #tpu.memory_space<vmem>>, %arg6: memref<1x32xf32, #tpu.memory_space<vmem>>, %arg7: memref<1x32xf32, #tpu.memory_space<vmem>>, %arg8: memref<1x32xf32, #tpu.memory_space<vmem>>, %arg9: memref<32x64xbf16, #tpu.memory_space<vmem>>, %arg10: memref<1x64xf32, #tpu.memory_space<vmem>>, %arg11: memref<64x32xbf16, #tpu.memory_space<vmem>>, %arg12: memref<1x32xf32, #tpu.memory_space<vmem>>, %arg13: memref<1x32xf32, #tpu.memory_space<vmem>>, %arg14: memref<1x32xf32, #tpu.memory_space<vmem>>, %arg15: memref<1x8x32xf32, #tpu.memory_space<vmem>>, %arg16: memref<8x96xbf16, #tpu.memory_space<vmem>>, %arg17: memref<4x8x8xbf16, #tpu.memory_space<vmem>>, %arg18: memref<4x8x8xbf16, #tpu.memory_space<vmem>>, %arg19: memref<4x8x8xbf16, #tpu.memory_space<vmem>>, %arg20: memref<4x8x8xbf16, #tpu.memory_space<vmem>>, %arg21: memref<8x32xbf16, #tpu.memory_space<vmem>>, %arg22: memref<8x32xf32, #tpu.memory_space<vmem>>, %arg23: memref<8x32xf32, #tpu.memory_space<vmem>>) attributes {dimension_semantics = [#tpu.dimension_semantics<parallel>], iteration_bounds = array<i64: 2>, scalar_prefetch = 0 : i64, scratch_operands = 8 : i64, tpu.core_type = #tpu.core_type<tc>, window_params = [{transform_indices = @transform_0, window_bounds = array<i64: 1, 1, 8>}, {transform_indices = @transform_1, window_bounds = array<i64: 1, 8, 32>}, {pipeline_mode = #tpu.pipeline_mode<synchronous>, transform_indices = @transform_2, window_bounds = array<i64: 32, 96>}, {pipeline_mode = #tpu.pipeline_mode<synchronous>, transform_indices = @transform_3, window_bounds = array<i64: 1, 96>}, {pipeline_mode = #tpu.pipeline_mode<synchronous>, transform_indices = @transform_4, window_bounds = array<i64: 32, 32>}, {pipeline_mode = #tpu.pipeline_mode<synchronous>, transform_indices = @transform_5, window_bounds = array<i64: 1, 32>}, {pipeline_mode = #tpu.pipeline_mode<synchronous>, transform_indices = @transform_6, window_bounds = array<i64: 1, 32>}, {pipeline_mode = #tpu.pipeline_mode<synchronous>, transform_indices = @transform_7, window_bounds = array<i64: 1, 32>}, {pipeline_mode = #tpu.pipeline_mode<synchronous>, transform_indices = @transform_8, window_bounds = array<i64: 32, 64>}, {pipeline_mode = #tpu.pipeline_mode<synchronous>, transform_indices = @transform_9, window_bounds = array<i64: 1, 64>}, {pipeline_mode = #tpu.pipeline_mode<synchronous>, transform_indices = @transform_10, window_bounds = array<i64: 64, 32>}, {pipeline_mode = #tpu.pipeline_mode<synchronous>, transform_indices = @transform_11, window_bounds = array<i64: 1, 32>}, {pipeline_mode = #tpu.pipeline_mode<synchronous>, transform_indices = @transform_12, window_bounds = array<i64: 1, 32>}, {pipeline_mode = #tpu.pipeline_mode<synchronous>, transform_indices = @transform_13, window_bounds = array<i64: 1, 32>}, {transform_indices = @transform_14, window_bounds = array<i64: 1, 8, 32>}]} {
    %c0 = arith.constant 0 : index
    %c0_0 = arith.constant 0 : index
    %c0_1 = arith.constant 0 : index
    %0 = vector.load %arg2[%c0, %c0_0, %c0_1] : memref<1x8x32xf32, #tpu.memory_space<vmem>>, vector<1x8x32xf32>
    %1 = vector.shape_cast %0 : vector<1x8x32xf32> to vector<8x32xf32>
    %c0_2 = arith.constant 0 : index
    %c0_3 = arith.constant 0 : index
    %c0_4 = arith.constant 0 : index
    %2 = vector.load %arg1[%c0_2, %c0_3, %c0_4] : memref<1x1x8xf32, #tpu.memory_space<vmem>>, vector<1x1x8xf32>
    %3 = vector.shape_cast %2 : vector<1x1x8xf32> to vector<1x8xf32>
    %cst = arith.constant 1.000000e+00 : f32
    %4 = vector.broadcast %cst : f32 to vector<1x8xf32>
    %5 = arith.subf %4, %3 : vector<1x8xf32>
    %cst_5 = arith.constant -3.40282347E+38 : f32
    %6 = vector.broadcast %cst_5 : f32 to vector<1x8xf32>
    %7 = arith.mulf %5, %6 : vector<1x8xf32>
    %8 = arith.truncf %1 : vector<8x32xf32> to vector<8x32xbf16>
    %c0_6 = arith.constant 0 : index
    %c0_7 = arith.constant 0 : index
    %9 = vector.load %arg3[%c0_6, %c0_7] : memref<32x96xbf16, #tpu.memory_space<vmem>>, vector<32x96xbf16>
    %cst_8 = arith.constant dense<0.000000e+00> : vector<8x96xf32>
    %10 = tpu.matmul %8, %9, %cst_8 {dimension_numbers = #tpu.dot_dimension_numbers<[1], [0], [0], [1], [0, 0, 1, 1], [], []>} : vector<8x32xbf16>, vector<32x96xbf16>, vector<8x96xf32> -> vector<8x96xf32>
    %c0_9 = arith.constant 0 : index
    %c0_10 = arith.constant 0 : index
    %11 = vector.load %arg4[%c0_9, %c0_10] : memref<1x96xf32, #tpu.memory_space<vmem>>, vector<1x96xf32>
    %12 = vector.broadcast %11 : vector<1x96xf32> to vector<8x96xf32>
    %13 = arith.addf %10, %12 : vector<8x96xf32>
    %14 = arith.truncf %13 : vector<8x96xf32> to vector<8x96xbf16>
    %c0_11 = arith.constant 0 : index
    %c0_12 = arith.constant 0 : index
    %15 = vector.load %arg16[%c0_11, %c0_12] : memref<8x96xbf16, #tpu.memory_space<vmem>>, vector<8x96xbf16>
    tpu.vector_store %arg16[%c0_11, %c0_12], %14 {strides = array<i32>} : memref<8x96xbf16, #tpu.memory_space<vmem>>, vector<8x96xbf16>,
    %c0_13 = arith.constant 0 : index
    %c0_14 = arith.constant 0 : index
    %16 = vector.load %arg16[%c0_13, %c0_14] : memref<8x96xbf16, #tpu.memory_space<vmem>>, vector<8x8xbf16>
    %c0_15 = arith.constant 0 : index
    %c0_16 = arith.constant 0 : index
    %c0_17 = arith.constant 0 : index
    %17 = vector.load %arg17[%c0_15, %c0_16, %c0_17] : memref<4x8x8xbf16, #tpu.memory_space<vmem>>, vector<1x8x8xbf16>
    %18 = vector.shape_cast %17 : vector<1x8x8xbf16> to vector<8x8xbf16>
    %19 = vector.shape_cast %16 : vector<8x8xbf16> to vector<1x8x8xbf16>
    tpu.vector_store %arg17[%c0_15, %c0_16, %c0_17], %19 {strides = array<i32>} : memref<4x8x8xbf16, #tpu.memory_space<vmem>>, vector<1x8x8xbf16>,
    %c0_18 = arith.constant 0 : index
    %c32 = arith.constant 32 : index
    %20 = vector.load %arg16[%c0_18, %c32] : memref<8x96xbf16, #tpu.memory_space<vmem>>, vector<8x8xbf16>
    %c0_19 = arith.constant 0 : index
    %c0_20 = arith.constant 0 : index
    %c0_21 = arith.constant 0 : index
    %21 = vector.load %arg18[%c0_19, %c0_20, %c0_21] : memref<4x8x8xbf16, #tpu.memory_space<vmem>>, vector<1x8x8xbf16>
    %22 = vector.shape_cast %21 : vector<1x8x8xbf16> to vector<8x8xbf16>
    %23 = vector.shape_cast %20 : vector<8x8xbf16> to vector<1x8x8xbf16>
    tpu.vector_store %arg18[%c0_19, %c0_20, %c0_21], %23 {strides = array<i32>} : memref<4x8x8xbf16, #tpu.memory_space<vmem>>, vector<1x8x8xbf16>,
    %c0_22 = arith.constant 0 : index
    %c64 = arith.constant 64 : index
    %24 = vector.load %arg16[%c0_22, %c64] : memref<8x96xbf16, #tpu.memory_space<vmem>>, vector<8x8xbf16>
    %c0_23 = arith.constant 0 : index
    %c0_24 = arith.constant 0 : index
    %c0_25 = arith.constant 0 : index
    %25 = vector.load %arg19[%c0_23, %c0_24, %c0_25] : memref<4x8x8xbf16, #tpu.memory_space<vmem>>, vector<1x8x8xbf16>
    %26 = vector.shape_cast %25 : vector<1x8x8xbf16> to vector<8x8xbf16>
    %27 = vector.shape_cast %24 : vector<8x8xbf16> to vector<1x8x8xbf16>
    tpu.vector_store %arg19[%c0_23, %c0_24, %c0_25], %27 {strides = array<i32>} : memref<4x8x8xbf16, #tpu.memory_space<vmem>>, vector<1x8x8xbf16>,
    %c0_26 = arith.constant 0 : index
    %c8 = arith.constant 8 : index
    %28 = vector.load %arg16[%c0_26, %c8] : memref<8x96xbf16, #tpu.memory_space<vmem>>, vector<8x8xbf16>
    %c1 = arith.constant 1 : index
    %c0_27 = arith.constant 0 : index
    %c0_28 = arith.constant 0 : index
    %29 = vector.load %arg17[%c1, %c0_27, %c0_28] : memref<4x8x8xbf16, #tpu.memory_space<vmem>>, vector<1x8x8xbf16>
    %30 = vector.shape_cast %29 : vector<1x8x8xbf16> to vector<8x8xbf16>
    %31 = vector.shape_cast %28 : vector<8x8xbf16> to vector<1x8x8xbf16>
    tpu.vector_store %arg17[%c1, %c0_27, %c0_28], %31 {strides = array<i32>} : memref<4x8x8xbf16, #tpu.memory_space<vmem>>, vector<1x8x8xbf16>,
    %c0_29 = arith.constant 0 : index
    %c40 = arith.constant 40 : index
    %32 = vector.load %arg16[%c0_29, %c40] : memref<8x96xbf16, #tpu.memory_space<vmem>>, vector<8x8xbf16>
    %c1_30 = arith.constant 1 : index
    %c0_31 = arith.constant 0 : index
    %c0_32 = arith.constant 0 : index
    %33 = vector.load %arg18[%c1_30, %c0_31, %c0_32] : memref<4x8x8xbf16, #tpu.memory_space<vmem>>, vector<1x8x8xbf16>
    %34 = vector.shape_cast %33 : vector<1x8x8xbf16> to vector<8x8xbf16>
    %35 = vector.shape_cast %32 : vector<8x8xbf16> to vector<1x8x8xbf16>
    tpu.vector_store %arg18[%c1_30, %c0_31, %c0_32], %35 {strides = array<i32>} : memref<4x8x8xbf16, #tpu.memory_space<vmem>>, vector<1x8x8xbf16>,
    %c0_33 = arith.constant 0 : index
    %c72 = arith.constant 72 : index
    %36 = vector.load %arg16[%c0_33, %c72] : memref<8x96xbf16, #tpu.memory_space<vmem>>, vector<8x8xbf16>
    %c1_34 = arith.constant 1 : index
    %c0_35 = arith.constant 0 : index
    %c0_36 = arith.constant 0 : index
    %37 = vector.load %arg19[%c1_34, %c0_35, %c0_36] : memref<4x8x8xbf16, #tpu.memory_space<vmem>>, vector<1x8x8xbf16>
    %38 = vector.shape_cast %37 : vector<1x8x8xbf16> to vector<8x8xbf16>
    %39 = vector.shape_cast %36 : vector<8x8xbf16> to vector<1x8x8xbf16>
    tpu.vector_store %arg19[%c1_34, %c0_35, %c0_36], %39 {strides = array<i32>} : memref<4x8x8xbf16, #tpu.memory_space<vmem>>, vector<1x8x8xbf16>,
    %c0_37 = arith.constant 0 : index
    %c16 = arith.constant 16 : index
    %40 = vector.load %arg16[%c0_37, %c16] : memref<8x96xbf16, #tpu.memory_space<vmem>>, vector<8x8xbf16>
    %c2 = arith.constant 2 : index
    %c0_38 = arith.constant 0 : index
    %c0_39 = arith.constant 0 : index
    %41 = vector.load %arg17[%c2, %c0_38, %c0_39] : memref<4x8x8xbf16, #tpu.memory_space<vmem>>, vector<1x8x8xbf16>
    %42 = vector.shape_cast %41 : vector<1x8x8xbf16> to vector<8x8xbf16>
    %43 = vector.shape_cast %40 : vector<8x8xbf16> to vector<1x8x8xbf16>
    tpu.vector_store %arg17[%c2, %c0_38, %c0_39], %43 {strides = array<i32>} : memref<4x8x8xbf16, #tpu.memory_space<vmem>>, vector<1x8x8xbf16>,
    %c0_40 = arith.constant 0 : index
    %c48 = arith.constant 48 : index
    %44 = vector.load %arg16[%c0_40, %c48] : memref<8x96xbf16, #tpu.memory_space<vmem>>, vector<8x8xbf16>
    %c2_41 = arith.constant 2 : index
    %c0_42 = arith.constant 0 : index
    %c0_43 = arith.constant 0 : index
    %45 = vector.load %arg18[%c2_41, %c0_42, %c0_43] : memref<4x8x8xbf16, #tpu.memory_space<vmem>>, vector<1x8x8xbf16>
    %46 = vector.shape_cast %45 : vector<1x8x8xbf16> to vector<8x8xbf16>
    %47 = vector.shape_cast %44 : vector<8x8xbf16> to vector<1x8x8xbf16>
    tpu.vector_store %arg18[%c2_41, %c0_42, %c0_43], %47 {strides = array<i32>} : memref<4x8x8xbf16, #tpu.memory_space<vmem>>, vector<1x8x8xbf16>,
    %c0_44 = arith.constant 0 : index
    %c80 = arith.constant 80 : index
    %48 = vector.load %arg16[%c0_44, %c80] : memref<8x96xbf16, #tpu.memory_space<vmem>>, vector<8x8xbf16>
    %c2_45 = arith.constant 2 : index
    %c0_46 = arith.constant 0 : index
    %c0_47 = arith.constant 0 : index
    %49 = vector.load %arg19[%c2_45, %c0_46, %c0_47] : memref<4x8x8xbf16, #tpu.memory_space<vmem>>, vector<1x8x8xbf16>
    %50 = vector.shape_cast %49 : vector<1x8x8xbf16> to vector<8x8xbf16>
    %51 = vector.shape_cast %48 : vector<8x8xbf16> to vector<1x8x8xbf16>
    tpu.vector_store %arg19[%c2_45, %c0_46, %c0_47], %51 {strides = array<i32>} : memref<4x8x8xbf16, #tpu.memory_space<vmem>>, vector<1x8x8xbf16>,
    %c0_48 = arith.constant 0 : index
    %c24 = arith.constant 24 : index
    %52 = vector.load %arg16[%c0_48, %c24] : memref<8x96xbf16, #tpu.memory_space<vmem>>, vector<8x8xbf16>
    %c3 = arith.constant 3 : index
    %c0_49 = arith.constant 0 : index
    %c0_50 = arith.constant 0 : index
    %53 = vector.load %arg17[%c3, %c0_49, %c0_50] : memref<4x8x8xbf16, #tpu.memory_space<vmem>>, vector<1x8x8xbf16>
    %54 = vector.shape_cast %53 : vector<1x8x8xbf16> to vector<8x8xbf16>
    %55 = vector.shape_cast %52 : vector<8x8xbf16> to vector<1x8x8xbf16>
    tpu.vector_store %arg17[%c3, %c0_49, %c0_50], %55 {strides = array<i32>} : memref<4x8x8xbf16, #tpu.memory_space<vmem>>, vector<1x8x8xbf16>,
    %c0_51 = arith.constant 0 : index
    %c56 = arith.constant 56 : index
    %56 = vector.load %arg16[%c0_51, %c56] : memref<8x96xbf16, #tpu.memory_space<vmem>>, vector<8x8xbf16>
    %c3_52 = arith.constant 3 : index
    %c0_53 = arith.constant 0 : index
    %c0_54 = arith.constant 0 : index
    %57 = vector.load %arg18[%c3_52, %c0_53, %c0_54] : memref<4x8x8xbf16, #tpu.memory_space<vmem>>, vector<1x8x8xbf16>
    %58 = vector.shape_cast %57 : vector<1x8x8xbf16> to vector<8x8xbf16>
    %59 = vector.shape_cast %56 : vector<8x8xbf16> to vector<1x8x8xbf16>
    tpu.vector_store %arg18[%c3_52, %c0_53, %c0_54], %59 {strides = array<i32>} : memref<4x8x8xbf16, #tpu.memory_space<vmem>>, vector<1x8x8xbf16>,
    %c0_55 = arith.constant 0 : index
    %c88 = arith.constant 88 : index
    %60 = vector.load %arg16[%c0_55, %c88] : memref<8x96xbf16, #tpu.memory_space<vmem>>, vector<8x8xbf16>
    %c3_56 = arith.constant 3 : index
    %c0_57 = arith.constant 0 : index
    %c0_58 = arith.constant 0 : index
    %61 = vector.load %arg19[%c3_56, %c0_57, %c0_58] : memref<4x8x8xbf16, #tpu.memory_space<vmem>>, vector<1x8x8xbf16>
    %62 = vector.shape_cast %61 : vector<1x8x8xbf16> to vector<8x8xbf16>
    %63 = vector.shape_cast %60 : vector<8x8xbf16> to vector<1x8x8xbf16>
    tpu.vector_store %arg19[%c3_56, %c0_57, %c0_58], %63 {strides = array<i32>} : memref<4x8x8xbf16, #tpu.memory_space<vmem>>, vector<1x8x8xbf16>,
    %c0_i32 = arith.constant 0 : i32
    %c4_i32 = arith.constant 4 : i32
    %64 = arith.addi %c0_i32, %c4_i32 : i32
    %c1_i32 = arith.constant 1 : i32
    scf.for %arg24 = %c0_i32 to %64 step %c1_i32  : i32 {
      %166 = arith.index_cast %arg24 : i32 to index
      %c0_132 = arith.constant 0 : index
      %c0_133 = arith.constant 0 : index
      %167 = vector.load %arg18[%166, %c0_132, %c0_133] : memref<4x8x8xbf16, #tpu.memory_space<vmem>>, vector<1x8x8xbf16>
      %168 = vector.shape_cast %167 : vector<1x8x8xbf16> to vector<8x8xbf16>
      %169 = arith.index_cast %arg24 : i32 to index
      %c0_134 = arith.constant 0 : index
      %c0_135 = arith.constant 0 : index
      %170 = vector.load %arg19[%169, %c0_134, %c0_135] : memref<4x8x8xbf16, #tpu.memory_space<vmem>>, vector<1x8x8xbf16>
      %171 = vector.shape_cast %170 : vector<1x8x8xbf16> to vector<8x8xbf16>
      %c0_i32_136 = arith.constant 0 : i32
      %c8_i32 = arith.constant 8 : i32
      %172 = arith.muli %c0_i32_136, %c8_i32 : i32
      %173 = tpu.assume_multiple %172, 8 : i32
      %174 = arith.index_cast %arg24 : i32 to index
      %175 = arith.index_cast %173 : i32 to index
      %c0_137 = arith.constant 0 : index
      %176 = vector.load %arg17[%174, %175, %c0_137] : memref<4x8x8xbf16, #tpu.memory_space<vmem>>, vector<1x8x8xbf16>
      %177 = vector.shape_cast %176 : vector<1x8x8xbf16> to vector<8x8xbf16>
      %cst_138 = arith.constant dense<0.000000e+00> : vector<8x8xf32>
      %178 = tpu.matmul %177, %168, %cst_138 {dimension_numbers = #tpu.dot_dimension_numbers<[1], [1], [0], [0], [0, 0, 1, 0], [], []>} : vector<8x8xbf16>, vector<8x8xbf16>, vector<8x8xf32> -> vector<8x8xf32>
      %cst_139 = arith.constant 0.353553385 : f32
      %179 = vector.broadcast %cst_139 : f32 to vector<8x8xf32>
      %180 = arith.mulf %178, %179 : vector<8x8xf32>
      %181 = vector.broadcast %7 : vector<1x8xf32> to vector<8x8xf32>
      %182 = arith.addf %180, %181 : vector<8x8xf32>
      %cst_140 = arith.constant dense<0xFF800000> : vector<8xf32>
      %183 = vector.multi_reduction <maximumf>, %182, %cst_140 [1] : vector<8x8xf32> to vector<8xf32>
      %184 = vector.shape_cast %183 : vector<8xf32> to vector<8x1xf32>
      %185 = vector.broadcast %184 : vector<8x1xf32> to vector<8x8xf32>
      %186 = arith.subf %182, %185 : vector<8x8xf32>
      %187 = math.exp %186 : vector<8x8xf32>
      %cst_141 = arith.constant dense<0.000000e+00> : vector<8xf32>
      %188 = vector.multi_reduction <add>, %187, %cst_141 [1] : vector<8x8xf32> to vector<8xf32>
      %189 = vector.shape_cast %188 : vector<8xf32> to vector<8x1xf32>
      %190 = tpu.reciprocal %189 {approx = true} : vector<8x1xf32> -> vector<8x1xf32>
      %191 = vector.broadcast %190 : vector<8x1xf32> to vector<8x8xf32>
      %192 = arith.mulf %187, %191 : vector<8x8xf32>
      %193 = arith.truncf %192 : vector<8x8xf32> to vector<8x8xbf16>
      %cst_142 = arith.constant dense<0.000000e+00> : vector<8x8xf32>
      %194 = tpu.matmul %193, %171, %cst_142 {dimension_numbers = #tpu.dot_dimension_numbers<[1], [0], [0], [1], [0, 0, 1, 1], [], []>} : vector<8x8xbf16>, vector<8x8xbf16>, vector<8x8xf32> -> vector<8x8xf32>
      %195 = arith.truncf %194 : vector<8x8xf32> to vector<8x8xbf16>
      %196 = arith.index_cast %arg24 : i32 to index
      %197 = arith.index_cast %173 : i32 to index
      %c0_143 = arith.constant 0 : index
      %198 = vector.load %arg20[%196, %197, %c0_143] : memref<4x8x8xbf16, #tpu.memory_space<vmem>>, vector<1x8x8xbf16>
      %199 = vector.shape_cast %198 : vector<1x8x8xbf16> to vector<8x8xbf16>
      %200 = vector.shape_cast %195 : vector<8x8xbf16> to vector<1x8x8xbf16>
      tpu.vector_store %arg20[%196, %197, %c0_143], %200 {strides = array<i32>} : memref<4x8x8xbf16, #tpu.memory_space<vmem>>, vector<1x8x8xbf16>,
      %c1_i32_144 = arith.constant 1 : i32
    }
    %c4_i32_59 = arith.constant 4 : i32
    %c0_60 = arith.constant 0 : index
    %c0_61 = arith.constant 0 : index
    %c0_62 = arith.constant 0 : index
    %65 = vector.load %arg20[%c0_60, %c0_61, %c0_62] : memref<4x8x8xbf16, #tpu.memory_space<vmem>>, vector<1x8x8xbf16>
    %66 = vector.shape_cast %65 : vector<1x8x8xbf16> to vector<8x8xbf16>
    %c0_63 = arith.constant 0 : index
    %c0_64 = arith.constant 0 : index
    %67 = vector.load %arg21[%c0_63, %c0_64] : memref<8x32xbf16, #tpu.memory_space<vmem>>, vector<8x8xbf16>
    tpu.vector_store %arg21[%c0_63, %c0_64], %66 {strides = array<i32>} : memref<8x32xbf16, #tpu.memory_space<vmem>>, vector<8x8xbf16>,
    %c1_65 = arith.constant 1 : index
    %c0_66 = arith.constant 0 : index
    %c0_67 = arith.constant 0 : index
    %68 = vector.load %arg20[%c1_65, %c0_66, %c0_67] : memref<4x8x8xbf16, #tpu.memory_space<vmem>>, vector<1x8x8xbf16>
    %69 = vector.shape_cast %68 : vector<1x8x8xbf16> to vector<8x8xbf16>
    %c0_68 = arith.constant 0 : index
    %c8_69 = arith.constant 8 : index
    %70 = vector.load %arg21[%c0_68, %c8_69] : memref<8x32xbf16, #tpu.memory_space<vmem>>, vector<8x8xbf16>
    tpu.vector_store %arg21[%c0_68, %c8_69], %69 {strides = array<i32>} : memref<8x32xbf16, #tpu.memory_space<vmem>>, vector<8x8xbf16>,
    %c2_70 = arith.constant 2 : index
    %c0_71 = arith.constant 0 : index
    %c0_72 = arith.constant 0 : index
    %71 = vector.load %arg20[%c2_70, %c0_71, %c0_72] : memref<4x8x8xbf16, #tpu.memory_space<vmem>>, vector<1x8x8xbf16>
    %72 = vector.shape_cast %71 : vector<1x8x8xbf16> to vector<8x8xbf16>
    %c0_73 = arith.constant 0 : index
    %c16_74 = arith.constant 16 : index
    %73 = vector.load %arg21[%c0_73, %c16_74] : memref<8x32xbf16, #tpu.memory_space<vmem>>, vector<8x8xbf16>
    tpu.vector_store %arg21[%c0_73, %c16_74], %72 {strides = array<i32>} : memref<8x32xbf16, #tpu.memory_space<vmem>>, vector<8x8xbf16>,
    %c3_75 = arith.constant 3 : index
    %c0_76 = arith.constant 0 : index
    %c0_77 = arith.constant 0 : index
    %74 = vector.load %arg20[%c3_75, %c0_76, %c0_77] : memref<4x8x8xbf16, #tpu.memory_space<vmem>>, vector<1x8x8xbf16>
    %75 = vector.shape_cast %74 : vector<1x8x8xbf16> to vector<8x8xbf16>
    %c0_78 = arith.constant 0 : index
    %c24_79 = arith.constant 24 : index
    %76 = vector.load %arg21[%c0_78, %c24_79] : memref<8x32xbf16, #tpu.memory_space<vmem>>, vector<8x8xbf16>
    tpu.vector_store %arg21[%c0_78, %c24_79], %75 {strides = array<i32>} : memref<8x32xbf16, #tpu.memory_space<vmem>>, vector<8x8xbf16>,
    %c0_80 = arith.constant 0 : index
    %c0_81 = arith.constant 0 : index
    %77 = vector.load %arg21[%c0_80, %c0_81] : memref<8x32xbf16, #tpu.memory_space<vmem>>, vector<8x32xbf16>
    %c0_82 = arith.constant 0 : index
    %c0_83 = arith.constant 0 : index
    %78 = vector.load %arg5[%c0_82, %c0_83] : memref<32x32xbf16, #tpu.memory_space<vmem>>, vector<32x32xbf16>
    %cst_84 = arith.constant dense<0.000000e+00> : vector<8x32xf32>
    %79 = tpu.matmul %77, %78, %cst_84 {dimension_numbers = #tpu.dot_dimension_numbers<[1], [0], [0], [1], [0, 0, 1, 1], [], []>} : vector<8x32xbf16>, vector<32x32xbf16>, vector<8x32xf32> -> vector<8x32xf32>
    %c0_85 = arith.constant 0 : index
    %c0_86 = arith.constant 0 : index
    %80 = vector.load %arg6[%c0_85, %c0_86] : memref<1x32xf32, #tpu.memory_space<vmem>>, vector<1x32xf32>
    %81 = vector.broadcast %80 : vector<1x32xf32> to vector<8x32xf32>
    %82 = arith.addf %79, %81 : vector<8x32xf32>
    %83 = arith.addf %82, %1 : vector<8x32xf32>
    %c0_87 = arith.constant 0 : index
    %c0_88 = arith.constant 0 : index
    %84 = vector.load %arg7[%c0_87, %c0_88] : memref<1x32xf32, #tpu.memory_space<vmem>>, vector<1x32xf32>
    %c0_89 = arith.constant 0 : index
    %c0_90 = arith.constant 0 : index
    %85 = vector.load %arg8[%c0_89, %c0_90] : memref<1x32xf32, #tpu.memory_space<vmem>>, vector<1x32xf32>
    %cst_91 = arith.constant dense<0.000000e+00> : vector<8xf32>
    %86 = vector.multi_reduction <add>, %83, %cst_91 [1] : vector<8x32xf32> to vector<8xf32>
    %87 = vector.shape_cast %86 : vector<8xf32> to vector<8x1xf32>
    %cst_92 = arith.constant 3.200000e+01 : f32
    %88 = vector.broadcast %cst_92 : f32 to vector<8x1xf32>
    %89 = arith.divf %87, %88 : vector<8x1xf32>
    %90 = vector.broadcast %89 : vector<8x1xf32> to vector<8x32xf32>
    %91 = arith.subf %83, %90 : vector<8x32xf32>
    %92 = arith.mulf %91, %91 : vector<8x32xf32>
    %cst_93 = arith.constant dense<0.000000e+00> : vector<8xf32>
    %93 = vector.multi_reduction <add>, %92, %cst_93 [1] : vector<8x32xf32> to vector<8xf32>
    %94 = vector.shape_cast %93 : vector<8xf32> to vector<8x1xf32>
    %cst_94 = arith.constant 3.200000e+01 : f32
    %95 = vector.broadcast %cst_94 : f32 to vector<8x1xf32>
    %96 = arith.divf %94, %95 : vector<8x1xf32>
    %97 = vector.broadcast %89 : vector<8x1xf32> to vector<8x32xf32>
    %98 = arith.subf %83, %97 : vector<8x32xf32>
    %cst_95 = arith.constant 9.99999996E-13 : f32
    %99 = vector.broadcast %cst_95 : f32 to vector<8x1xf32>
    %100 = arith.addf %96, %99 : vector<8x1xf32>
    %101 = math.rsqrt %100 : vector<8x1xf32>
    %102 = vector.broadcast %101 : vector<8x1xf32> to vector<8x32xf32>
    %103 = arith.mulf %98, %102 : vector<8x32xf32>
    %104 = vector.broadcast %84 : vector<1x32xf32> to vector<8x32xf32>
    %105 = arith.mulf %103, %104 : vector<8x32xf32>
    %106 = vector.broadcast %85 : vector<1x32xf32> to vector<8x32xf32>
    %107 = arith.addf %105, %106 : vector<8x32xf32>
    %c0_96 = arith.constant 0 : index
    %c0_97 = arith.constant 0 : index
    %108 = vector.load %arg22[%c0_96, %c0_97] : memref<8x32xf32, #tpu.memory_space<vmem>>, vector<8x32xf32>
    tpu.vector_store %arg22[%c0_96, %c0_97], %107 {strides = array<i32>} : memref<8x32xf32, #tpu.memory_space<vmem>>, vector<8x32xf32>,
    %c0_98 = arith.constant 0 : index
    %c0_99 = arith.constant 0 : index
    %109 = vector.load %arg22[%c0_98, %c0_99] : memref<8x32xf32, #tpu.memory_space<vmem>>, vector<8x32xf32>
    %110 = arith.truncf %109 : vector<8x32xf32> to vector<8x32xbf16>
    %c0_100 = arith.constant 0 : index
    %c0_101 = arith.constant 0 : index
    %111 = vector.load %arg9[%c0_100, %c0_101] : memref<32x64xbf16, #tpu.memory_space<vmem>>, vector<32x64xbf16>
    %cst_102 = arith.constant dense<0.000000e+00> : vector<8x64xf32>
    %112 = tpu.matmul %110, %111, %cst_102 {dimension_numbers = #tpu.dot_dimension_numbers<[1], [0], [0], [1], [0, 0, 1, 1], [], []>} : vector<8x32xbf16>, vector<32x64xbf16>, vector<8x64xf32> -> vector<8x64xf32>
    %c0_103 = arith.constant 0 : index
    %c0_104 = arith.constant 0 : index
    %113 = vector.load %arg10[%c0_103, %c0_104] : memref<1x64xf32, #tpu.memory_space<vmem>>, vector<1x64xf32>
    %114 = vector.broadcast %113 : vector<1x64xf32> to vector<8x64xf32>
    %115 = arith.addf %112, %114 : vector<8x64xf32>
    %cst_105 = arith.constant 5.000000e-01 : f32
    %116 = vector.broadcast %cst_105 : f32 to vector<8x64xf32>
    %117 = arith.mulf %116, %115 : vector<8x64xf32>
    %cst_106 = arith.constant 4.471500e-02 : f32
    %118 = vector.broadcast %cst_106 : f32 to vector<8x64xf32>
    %119 = arith.mulf %118, %115 : vector<8x64xf32>
    %120 = arith.mulf %119, %115 : vector<8x64xf32>
    %121 = arith.mulf %120, %115 : vector<8x64xf32>
    %122 = arith.addf %115, %121 : vector<8x64xf32>
    %cst_107 = arith.constant 0.797884583 : f32
    %123 = vector.broadcast %cst_107 : f32 to vector<8x64xf32>
    %124 = arith.mulf %123, %122 : vector<8x64xf32>
    %125 = math.tanh %124 : vector<8x64xf32>
    %cst_108 = arith.constant 1.000000e+00 : f32
    %126 = vector.broadcast %cst_108 : f32 to vector<8x64xf32>
    %127 = arith.addf %126, %125 : vector<8x64xf32>
    %128 = arith.mulf %117, %127 : vector<8x64xf32>
    %129 = arith.truncf %128 : vector<8x64xf32> to vector<8x64xbf16>
    %c0_109 = arith.constant 0 : index
    %c0_110 = arith.constant 0 : index
    %130 = vector.load %arg11[%c0_109, %c0_110] : memref<64x32xbf16, #tpu.memory_space<vmem>>, vector<64x32xbf16>
    %cst_111 = arith.constant dense<0.000000e+00> : vector<8x32xf32>
    %131 = tpu.matmul %129, %130, %cst_111 {dimension_numbers = #tpu.dot_dimension_numbers<[1], [0], [0], [1], [0, 0, 1, 1], [], []>} : vector<8x64xbf16>, vector<64x32xbf16>, vector<8x32xf32> -> vector<8x32xf32>
    %c0_112 = arith.constant 0 : index
    %c0_113 = arith.constant 0 : index
    %132 = vector.load %arg23[%c0_112, %c0_113] : memref<8x32xf32, #tpu.memory_space<vmem>>, vector<8x32xf32>
    tpu.vector_store %arg23[%c0_112, %c0_113], %131 {strides = array<i32>} : memref<8x32xf32, #tpu.memory_space<vmem>>, vector<8x32xf32>,
    %c0_114 = arith.constant 0 : index
    %c0_115 = arith.constant 0 : index
    %133 = vector.load %arg23[%c0_114, %c0_115] : memref<8x32xf32, #tpu.memory_space<vmem>>, vector<8x32xf32>
    %c0_116 = arith.constant 0 : index
    %c0_117 = arith.constant 0 : index
    %134 = vector.load %arg12[%c0_116, %c0_117] : memref<1x32xf32, #tpu.memory_space<vmem>>, vector<1x32xf32>
    %135 = vector.broadcast %134 : vector<1x32xf32> to vector<8x32xf32>
    %136 = arith.addf %133, %135 : vector<8x32xf32>
    %c0_118 = arith.constant 0 : index
    %c0_119 = arith.constant 0 : index
    %137 = vector.load %arg22[%c0_118, %c0_119] : memref<8x32xf32, #tpu.memory_space<vmem>>, vector<8x32xf32>
    %138 = arith.addf %136, %137 : vector<8x32xf32>
    %c0_120 = arith.constant 0 : index
    %c0_121 = arith.constant 0 : index
    %139 = vector.load %arg13[%c0_120, %c0_121] : memref<1x32xf32, #tpu.memory_space<vmem>>, vector<1x32xf32>
    %c0_122 = arith.constant 0 : index
    %c0_123 = arith.constant 0 : index
    %140 = vector.load %arg14[%c0_122, %c0_123] : memref<1x32xf32, #tpu.memory_space<vmem>>, vector<1x32xf32>
    %cst_124 = arith.constant dense<0.000000e+00> : vector<8xf32>
    %141 = vector.multi_reduction <add>, %138, %cst_124 [1] : vector<8x32xf32> to vector<8xf32>
    %142 = vector.shape_cast %141 : vector<8xf32> to vector<8x1xf32>
    %cst_125 = arith.constant 3.200000e+01 : f32
    %143 = vector.broadcast %cst_125 : f32 to vector<8x1xf32>
    %144 = arith.divf %142, %143 : vector<8x1xf32>
    %145 = vector.broadcast %144 : vector<8x1xf32> to vector<8x32xf32>
    %146 = arith.subf %138, %145 : vector<8x32xf32>
    %147 = arith.mulf %146, %146 : vector<8x32xf32>
    %cst_126 = arith.constant dense<0.000000e+00> : vector<8xf32>
    %148 = vector.multi_reduction <add>, %147, %cst_126 [1] : vector<8x32xf32> to vector<8xf32>
    %149 = vector.shape_cast %148 : vector<8xf32> to vector<8x1xf32>
    %cst_127 = arith.constant 3.200000e+01 : f32
    %150 = vector.broadcast %cst_127 : f32 to vector<8x1xf32>
    %151 = arith.divf %149, %150 : vector<8x1xf32>
    %152 = vector.broadcast %144 : vector<8x1xf32> to vector<8x32xf32>
    %153 = arith.subf %138, %152 : vector<8x32xf32>
    %cst_128 = arith.constant 9.99999996E-13 : f32
    %154 = vector.broadcast %cst_128 : f32 to vector<8x1xf32>
    %155 = arith.addf %151, %154 : vector<8x1xf32>
    %156 = math.rsqrt %155 : vector<8x1xf32>
    %157 = vector.broadcast %156 : vector<8x1xf32> to vector<8x32xf32>
    %158 = arith.mulf %153, %157 : vector<8x32xf32>
    %159 = vector.broadcast %139 : vector<1x32xf32> to vector<8x32xf32>
    %160 = arith.mulf %158, %159 : vector<8x32xf32>
    %161 = vector.broadcast %140 : vector<1x32xf32> to vector<8x32xf32>
    %162 = arith.addf %160, %161 : vector<8x32xf32>
    %c0_129 = arith.constant 0 : index
    %c0_130 = arith.constant 0 : index
    %c0_131 = arith.constant 0 : index
    %163 = vector.load %arg15[%c0_129, %c0_130, %c0_131] : memref<1x8x32xf32, #tpu.memory_space<vmem>>, vector<1x8x32xf32>
    %164 = vector.shape_cast %163 : vector<1x8x32xf32> to vector<8x32xf32>
    %165 = vector.shape_cast %162 : vector<8x32xf32> to vector<1x8x32xf32>
    tpu.vector_store %arg15[%c0_129, %c0_130, %c0_131], %165 {strides = array<i32>} : memref<1x8x32xf32, #tpu.memory_space<vmem>>, vector<1x8x32xf32>,
    return
  }
  func.func @transform_0(%arg0: i32) -> (i32, i32, i32) {
    %c0_i32 = arith.constant 0 : i32
    %c0_i32_0 = arith.constant 0 : i32
    %c0_i32_1 = arith.constant 0 : i32
    return %arg0, %c0_i32, %c0_i32_0 : i32, i32, i32
  }
  func.func @transform_1(%arg0: i32) -> (i32, i32, i32) {
    %c0_i32 = arith.constant 0 : i32
    %c0_i32_0 = arith.constant 0 : i32
    %c0_i32_1 = arith.constant 0 : i32
    return %arg0, %c0_i32, %c0_i32_0 : i32, i32, i32
  }
  func.func @transform_2(%arg0: i32) -> (i32, i32) {
    %c0_i32 = arith.constant 0 : i32
    %c0_i32_0 = arith.constant 0 : i32
    %c0_i32_1 = arith.constant 0 : i32
    return %c0_i32, %c0_i32_0 : i32, i32
  }
  func.func @transform_3(%arg0: i32) -> (i32, i32) {
    %c0_i32 = arith.constant 0 : i32
    %c0_i32_0 = arith.constant 0 : i32
    %c0_i32_1 = arith.constant 0 : i32
    return %c0_i32, %c0_i32_0 : i32, i32
  }
  func.func @transform_4(%arg0: i32) -> (i32, i32) {
    %c0_i32 = arith.constant 0 : i32
    %c0_i32_0 = arith.constant 0 : i32
    %c0_i32_1 = arith.constant 0 : i32
    return %c0_i32, %c0_i32_0 : i32, i32
  }
  func.func @transform_5(%arg0: i32) -> (i32, i32) {
    %c0_i32 = arith.constant 0 : i32
    %c0_i32_0 = arith.constant 0 : i32
    %c0_i32_1 = arith.constant 0 : i32
    return %c0_i32, %c0_i32_0 : i32, i32
  }
  func.func @transform_6(%arg0: i32) -> (i32, i32) {
    %c0_i32 = arith.constant 0 : i32
    %c0_i32_0 = arith.constant 0 : i32
    %c0_i32_1 = arith.constant 0 : i32
    return %c0_i32, %c0_i32_0 : i32, i32
  }
  func.func @transform_7(%arg0: i32) -> (i32, i32) {
    %c0_i32 = arith.constant 0 : i32
    %c0_i32_0 = arith.constant 0 : i32
    %c0_i32_1 = arith.constant 0 : i32
    return %c0_i32, %c0_i32_0 : i32, i32
  }
  func.func @transform_8(%arg0: i32) -> (i32, i32) {
    %c0_i32 = arith.constant 0 : i32
    %c0_i32_0 = arith.constant 0 : i32
    %c0_i32_1 = arith.constant 0 : i32
    return %c0_i32, %c0_i32_0 : i32, i32
  }
  func.func @transform_9(%arg0: i32) -> (i32, i32) {
    %c0_i32 = arith.constant 0 : i32
    %c0_i32_0 = arith.constant 0 : i32
    %c0_i32_1 = arith.constant 0 : i32
    return %c0_i32, %c0_i32_0 : i32, i32
  }
  func.func @transform_10(%arg0: i32) -> (i32, i32) {
    %c0_i32 = arith.constant 0 : i32
    %c0_i32_0 = arith.constant 0 : i32
    %c0_i32_1 = arith.constant 0 : i32
    return %c0_i32, %c0_i32_0 : i32, i32
  }
  func.func @transform_11(%arg0: i32) -> (i32, i32) {
    %c0_i32 = arith.constant 0 : i32
    %c0_i32_0 = arith.constant 0 : i32
    %c0_i32_1 = arith.constant 0 : i32
    return %c0_i32, %c0_i32_0 : i32, i32
  }
  func.func @transform_12(%arg0: i32) -> (i32, i32) {
    %c0_i32 = arith.constant 0 : i32
    %c0_i32_0 = arith.constant 0 : i32
    %c0_i32_1 = arith.constant 0 : i32
    return %c0_i32, %c0_i32_0 : i32, i32
  }
  func.func @transform_13(%arg0: i32) -> (i32, i32) {
    %c0_i32 = arith.constant 0 : i32
    %c0_i32_0 = arith.constant 0 : i32
    %c0_i32_1 = arith.constant 0 : i32
    return %c0_i32, %c0_i32_0 : i32, i32
  }
  func.func @transform_14(%arg0: i32) -> (i32, i32, i32) {
    %c0_i32 = arith.constant 0 : i32
    %c0_i32_0 = arith.constant 0 : i32
    %c0_i32_1 = arith.constant 0 : i32
    return %arg0, %c0_i32, %c0_i32_0 : i32, i32, i32
  }
}

module attributes {stable_mosaic.version = 11 : i64} {
  func.func @bert_layer_kernel(%arg0: i32, %arg1: memref<1x1x8xf32, #tpu.memory_space<vmem>>, %arg2: memref<1x8x32xf32, #tpu.memory_space<vmem>>, %arg3: memref<32x96xbf16, #tpu.memory_space<vmem>>, %arg4: memref<1x96xf32, #tpu.memory_space<vmem>>, %arg5: memref<32x32xbf16, #tpu.memory_space<vmem>>, %arg6: memref<1x32xf32, #tpu.memory_space<vmem>>, %arg7: memref<1x32xf32, #tpu.memory_space<vmem>>, %arg8: memref<1x32xf32, #tpu.memory_space<vmem>>, %arg9: memref<32x64xbf16, #tpu.memory_space<vmem>>, %arg10: memref<1x64xf32, #tpu.memory_space<vmem>>, %arg11: memref<64x32xbf16, #tpu.memory_space<vmem>>, %arg12: memref<1x32xf32, #tpu.memory_space<vmem>>, %arg13: memref<1x32xf32, #tpu.memory_space<vmem>>, %arg14: memref<1x32xf32, #tpu.memory_space<vmem>>, %arg15: memref<1x8x32xf32, #tpu.memory_space<vmem>>, %arg16: memref<8x96xbf16, #tpu.memory_space<vmem>>, %arg17: memref<4x8x8xbf16, #tpu.memory_space<vmem>>, %arg18: memref<4x8x8xbf16, #tpu.memory_space<vmem>>, %arg19: memref<4x8x8xbf16, #tpu.memory_space<vmem>>, %arg20: memref<4x8x8xbf16, #tpu.memory_space<vmem>>, %arg21: memref<8x32xbf16, #tpu.memory_space<vmem>>, %arg22: memref<8x32xf32, #tpu.memory_space<vmem>>, %arg23: memref<8x32xf32, #tpu.memory_space<vmem>>) attributes {dimension_semantics = [#tpu.dimension_semantics<parallel>], iteration_bounds = array<i64: 2>, scalar_prefetch = 0 : i64, scratch_operands = 8 : i64, tpu.core_type = #tpu.core_type<tc>, window_params = [{transform_indices = @transform_0, window_bounds = array<i64: 1, 1, 8>}, {transform_indices = @transform_1, window_bounds = array<i64: 1, 8, 32>}, {pipeline_mode = #tpu.pipeline_mode<synchronous>, transform_indices = @transform_2, window_bounds = array<i64: 32, 96>}, {pipeline_mode = #tpu.pipeline_mode<synchronous>, transform_indices = @transform_3, window_bounds = array<i64: 1, 96>}, {pipeline_mode = #tpu.pipeline_mode<synchronous>, transform_indices = @transform_4, window_bounds = array<i64: 32, 32>}, {pipeline_mode = #tpu.pipeline_mode<synchronous>, transform_indices = @transform_5, window_bounds = array<i64: 1, 32>}, {pipeline_mode = #tpu.pipeline_mode<synchronous>, transform_indices = @transform_6, window_bounds = array<i64: 1, 32>}, {pipeline_mode = #tpu.pipeline_mode<synchronous>, transform_indices = @transform_7, window_bounds = array<i64: 1, 32>}, {pipeline_mode = #tpu.pipeline_mode<synchronous>, transform_indices = @transform_8, window_bounds = array<i64: 32, 64>}, {pipeline_mode = #tpu.pipeline_mode<synchronous>, transform_indices = @transform_9, window_bounds = array<i64: 1, 64>}, {pipeline_mode = #tpu.pipeline_mode<synchronous>, transform_indices = @transform_10, window_bounds = array<i64: 64, 32>}, {pipeline_mode = #tpu.pipeline_mode<synchronous>, transform_indices = @transform_11, window_bounds = array<i64: 1, 32>}, {pipeline_mode = #tpu.pipeline_mode<synchronous>, transform_indices = @transform_12, window_bounds = array<i64: 1, 32>}, {pipeline_mode = #tpu.pipeline_mode<synchronous>, transform_indices = @transform_13, window_bounds = array<i64: 1, 32>}, {transform_indices = @transform_14, window_bounds = array<i64: 1, 8, 32>}]} {
    %c0 = arith.constant 0 : index
    %c0_0 = arith.constant 0 : index
    %c0_1 = arith.constant 0 : index
    %0 = vector.load %arg2[%c0, %c0_0, %c0_1] : memref<1x8x32xf32, #tpu.memory_space<vmem>>, vector<1x8x32xf32>
    %1 = vector.shape_cast %0 : vector<1x8x32xf32> to vector<8x32xf32>
    %c0_2 = arith.constant 0 : index
    %c0_3 = arith.constant 0 : index
    %c0_4 = arith.constant 0 : index
    %2 = vector.load %arg1[%c0_2, %c0_3, %c0_4] : memref<1x1x8xf32, #tpu.memory_space<vmem>>, vector<1x1x8xf32>
    %3 = vector.shape_cast %2 : vector<1x1x8xf32> to vector<1x8xf32>
    %cst = arith.constant 1.000000e+00 : f32
    %4 = vector.broadcast %cst : f32 to vector<1x8xf32>
    %5 = arith.subf %4, %3 : vector<1x8xf32>
    %cst_5 = arith.constant -3.40282347E+38 : f32
    %6 = vector.broadcast %cst_5 : f32 to vector<1x8xf32>
    %7 = arith.mulf %5, %6 : vector<1x8xf32>
    %8 = arith.truncf %1 : vector<8x32xf32> to vector<8x32xbf16>
    %c0_6 = arith.constant 0 : index
    %c0_7 = arith.constant 0 : index
    %9 = vector.load %arg3[%c0_6, %c0_7] : memref<32x96xbf16, #tpu.memory_space<vmem>>, vector<32x96xbf16>
    %cst_8 = arith.constant dense<0.000000e+00> : vector<8x96xf32>
    %10 = tpu.matmul %8, %9, %cst_8 {dimension_numbers = #tpu.dot_dimension_numbers<[1], [0], [0], [1], [0, 0, 1, 1], [], []>} : vector<8x32xbf16>, vector<32x96xbf16>, vector<8x96xf32> -> vector<8x96xf32>
    %c0_9 = arith.constant 0 : index
    %c0_10 = arith.constant 0 : index
    %11 = vector.load %arg4[%c0_9, %c0_10] : memref<1x96xf32, #tpu.memory_space<vmem>>, vector<1x96xf32>
    %12 = vector.broadcast %11 : vector<1x96xf32> to vector<8x96xf32>
    %13 = arith.addf %10, %12 : vector<8x96xf32>
    %14 = arith.truncf %13 : vector<8x96xf32> to vector<8x96xbf16>
    %c0_11 = arith.constant 0 : index
    %c0_12 = arith.constant 0 : index
    %15 = vector.load %arg16[%c0_11, %c0_12] : memref<8x96xbf16, #tpu.memory_space<vmem>>, vector<8x96xbf16>
    tpu.vector_store %arg16[%c0_11, %c0_12], %14 {strides = array<i32>} : memref<8x96xbf16, #tpu.memory_space<vmem>>, vector<8x96xbf16>,
    %c0_13 = arith.constant 0 : index
    %c0_14 = arith.constant 0 : index
    %16 = vector.load %arg16[%c0_13, %c0_14] : memref<8x96xbf16, #tpu.memory_space<vmem>>, vector<8x8xbf16>
    %c0_15 = arith.constant 0 : index
    %c0_16 = arith.constant 0 : index
    %c0_17 = arith.constant 0 : index
    %17 = vector.load %arg17[%c0_15, %c0_16, %c0_17] : memref<4x8x8xbf16, #tpu.memory_space<vmem>>, vector<1x8x8xbf16>
    %18 = vector.shape_cast %17 : vector<1x8x8xbf16> to vector<8x8xbf16>
    %19 = vector.shape_cast %16 : vector<8x8xbf16> to vector<1x8x8xbf16>
    tpu.vector_store %arg17[%c0_15, %c0_16, %c0_17], %19 {strides = array<i32>} : memref<4x8x8xbf16, #tpu.memory_space<vmem>>, vector<1x8x8xbf16>,
    %c0_18 = arith.constant 0 : index
    %c32 = arith.constant 32 : index
    %20 = vector.load %arg16[%c0_18, %c32] : memref<8x96xbf16, #tpu.memory_space<vmem>>, vector<8x8xbf16>
    %c0_19 = arith.constant 0 : index
    %c0_20 = arith.constant 0 : index
    %c0_21 = arith.constant 0 : index
    %21 = vector.load %arg18[%c0_19, %c0_20, %c0_21] : memref<4x8x8xbf16, #tpu.memory_space<vmem>>, vector<1x8x8xbf16>
    %22 = vector.shape_cast %21 : vector<1x8x8xbf16> to vector<8x8xbf16>
    %23 = vector.shape_cast %20 : vector<8x8xbf16> to vector<1x8x8xbf16>
    tpu.vector_store %arg18[%c0_19, %c0_20, %c0_21], %23 {strides = array<i32>} : memref<4x8x8xbf16, #tpu.memory_space<vmem>>, vector<1x8x8xbf16>,
    %c0_22 = arith.constant 0 : index
    %c64 = arith.constant 64 : index
    %24 = vector.load %arg16[%c0_22, %c64] : memref<8x96xbf16, #tpu.memory_space<vmem>>, vector<8x8xbf16>
    %c0_23 = arith.constant 0 : index
    %c0_24 = arith.constant 0 : index
    %c0_25 = arith.constant 0 : index
    %25 = vector.load %arg19[%c0_23, %c0_24, %c0_25] : memref<4x8x8xbf16, #tpu.memory_space<vmem>>, vector<1x8x8xbf16>
    %26 = vector.shape_cast %25 : vector<1x8x8xbf16> to vector<8x8xbf16>
    %27 = vector.shape_cast %24 : vector<8x8xbf16> to vector<1x8x8xbf16>
    tpu.vector_store %arg19[%c0_23, %c0_24, %c0_25], %27 {strides = array<i32>} : memref<4x8x8xbf16, #tpu.memory_space<vmem>>, vector<1x8x8xbf16>,
    %c0_26 = arith.constant 0 : index
    %c8 = arith.constant 8 : index
    %28 = vector.load %arg16[%c0_26, %c8] : memref<8x96xbf16, #tpu.memory_space<vmem>>, vector<8x8xbf16>
    %c1 = arith.constant 1 : index
    %c0_27 = arith.constant 0 : index
    %c0_28 = arith.constant 0 : index
    %29 = vector.load %arg17[%c1, %c0_27, %c0_28] : memref<4x8x8xbf16, #tpu.memory_space<vmem>>, vector<1x8x8xbf16>
    %30 = vector.shape_cast %29 : vector<1x8x8xbf16> to vector<8x8xbf16>
    %31 = vector.shape_cast %28 : vector<8x8xbf16> to vector<1x8x8xbf16>
    tpu.vector_store %arg17[%c1, %c0_27, %c0_28], %31 {strides = array<i32>} : memref<4x8x8xbf16, #tpu.memory_space<vmem>>, vector<1x8x8xbf16>,
    %c0_29 = arith.constant 0 : index
    %c40 = arith.constant 40 : index
    %32 = vector.load %arg16[%c0_29, %c40] : memref<8x96xbf16, #tpu.memory_space<vmem>>, vector<8x8xbf16>
    %c1_30 = arith.constant 1 : index
    %c0_31 = arith.constant 0 : index
    %c0_32 = arith.constant 0 : index
    %33 = vector.load %arg18[%c1_30, %c0_31, %c0_32] : memref<4x8x8xbf16, #tpu.memory_space<vmem>>, vector<1x8x8xbf16>
    %34 = vector.shape_cast %33 : vector<1x8x8xbf16> to vector<8x8xbf16>
    %35 = vector.shape_cast %32 : vector<8x8xbf16> to vector<1x8x8xbf16>
    tpu.vector_store %arg18[%c1_30, %c0_31, %c0_32], %35 {strides = array<i32>} : memref<4x8x8xbf16, #tpu.memory_space<vmem>>, vector<1x8x8xbf16>,
    %c0_33 = arith.constant 0 : index
    %c72 = arith.constant 72 : index
    %36 = vector.load %arg16[%c0_33, %c72] : memref<8x96xbf16, #tpu.memory_space<vmem>>, vector<8x8xbf16>
    %c1_34 = arith.constant 1 : index
    %c0_35 = arith.constant 0 : index
    %c0_36 = arith.constant 0 : index
    %37 = vector.load %arg19[%c1_34, %c0_35, %c0_36] : memref<4x8x8xbf16, #tpu.memory_space<vmem>>, vector<1x8x8xbf16>
    %38 = vector.shape_cast %37 : vector<1x8x8xbf16> to vector<8x8xbf16>
    %39 = vector.shape_cast %36 : vector<8x8xbf16> to vector<1x8x8xbf16>
    tpu.vector_store %arg19[%c1_34, %c0_35, %c0_36], %39 {strides = array<i32>} : memref<4x8x8xbf16, #tpu.memory_space<vmem>>, vector<1x8x8xbf16>,
    %c0_37 = arith.constant 0 : index
    %c16 = arith.constant 16 : index
    %40 = vector.load %arg16[%c0_37, %c16] : memref<8x96xbf16, #tpu.memory_space<vmem>>, vector<8x8xbf16>
    %c2 = arith.constant 2 : index
    %c0_38 = arith.constant 0 : index
    %c0_39 = arith.constant 0 : index
    %41 = vector.load %arg17[%c2, %c0_38, %c0_39] : memref<4x8x8xbf16, #tpu.memory_space<vmem>>, vector<1x8x8xbf16>
    %42 = vector.shape_cast %41 : vector<1x8x8xbf16> to vector<8x8xbf16>
    %43 = vector.shape_cast %40 : vector<8x8xbf16> to vector<1x8x8xbf16>
    tpu.vector_store %arg17[%c2, %c0_38, %c0_39], %43 {strides = array<i32>} : memref<4x8x8xbf16, #tpu.memory_space<vmem>>, vector<1x8x8xbf16>,
    %c0_40 = arith.constant 0 : index
    %c48 = arith.constant 48 : index
    %44 = vector.load %arg16[%c0_40, %c48] : memref<8x96xbf16, #tpu.memory_space<vmem>>, vector<8x8xbf16>
    %c2_41 = arith.constant 2 : index
    %c0_42 = arith.constant 0 : index
    %c0_43 = arith.constant 0 : index
    %45 = vector.load %arg18[%c2_41, %c0_42, %c0_43] : memref<4x8x8xbf16, #tpu.memory_space<vmem>>, vector<1x8x8xbf16>
    %46 = vector.shape_cast %45 : vector<1x8x8xbf16> to vector<8x8xbf16>
    %47 = vector.shape_cast %44 : vector<8x8xbf16> to vector<1x8x8xbf16>
    tpu.vector_store %arg18[%c2_41, %c0_42, %c0_43], %47 {strides = array<i32>} : memref<4x8x8xbf16, #tpu.memory_space<vmem>>, vector<1x8x8xbf16>,
    %c0_44 = arith.constant 0 : index
    %c80 = arith.constant 80 : index
    %48 = vector.load %arg16[%c0_44, %c80] : memref<8x96xbf16, #tpu.memory_space<vmem>>, vector<8x8xbf16>
    %c2_45 = arith.constant 2 : index
    %c0_46 = arith.constant 0 : index
    %c0_47 = arith.constant 0 : index
    %49 = vector.load %arg19[%c2_45, %c0_46, %c0_47] : memref<4x8x8xbf16, #tpu.memory_space<vmem>>, vector<1x8x8xbf16>
    %50 = vector.shape_cast %49 : vector<1x8x8xbf16> to vector<8x8xbf16>
    %51 = vector.shape_cast %48 : vector<8x8xbf16> to vector<1x8x8xbf16>
    tpu.vector_store %arg19[%c2_45, %c0_46, %c0_47], %51 {strides = array<i32>} : memref<4x8x8xbf16, #tpu.memory_space<vmem>>, vector<1x8x8xbf16>,
    %c0_48 = arith.constant 0 : index
    %c24 = arith.constant 24 : index
    %52 = vector.load %arg16[%c0_48, %c24] : memref<8x96xbf16, #tpu.memory_space<vmem>>, vector<8x8xbf16>
    %c3 = arith.constant 3 : index
    %c0_49 = arith.constant 0 : index
    %c0_50 = arith.constant 0 : index
    %53 = vector.load %arg17[%c3, %c0_49, %c0_50] : memref<4x8x8xbf16, #tpu.memory_space<vmem>>, vector<1x8x8xbf16>
    %54 = vector.shape_cast %53 : vector<1x8x8xbf16> to vector<8x8xbf16>
    %55 = vector.shape_cast %52 : vector<8x8xbf16> to vector<1x8x8xbf16>
    tpu.vector_store %arg17[%c3, %c0_49, %c0_50], %55 {strides = array<i32>} : memref<4x8x8xbf16, #tpu.memory_space<vmem>>, vector<1x8x8xbf16>,
    %c0_51 = arith.constant 0 : index
    %c56 = arith.constant 56 : index
    %56 = vector.load %arg16[%c0_51, %c56] : memref<8x96xbf16, #tpu.memory_space<vmem>>, vector<8x8xbf16>
    %c3_52 = arith.constant 3 : index
    %c0_53 = arith.constant 0 : index
    %c0_54 = arith.constant 0 : index
    %57 = vector.load %arg18[%c3_52, %c0_53, %c0_54] : memref<4x8x8xbf16, #tpu.memory_space<vmem>>, vector<1x8x8xbf16>
    %58 = vector.shape_cast %57 : vector<1x8x8xbf16> to vector<8x8xbf16>
    %59 = vector.shape_cast %56 : vector<8x8xbf16> to vector<1x8x8xbf16>
    tpu.vector_store %arg18[%c3_52, %c0_53, %c0_54], %59 {strides = array<i32>} : memref<4x8x8xbf16, #tpu.memory_space<vmem>>, vector<1x8x8xbf16>,
    %c0_55 = arith.constant 0 : index
    %c88 = arith.constant 88 : index
    %60 = vector.load %arg16[%c0_55, %c88] : memref<8x96xbf16, #tpu.memory_space<vmem>>, vector<8x8xbf16>
    %c3_56 = arith.constant 3 : index
    %c0_57 = arith.constant 0 : index
    %c0_58 = arith.constant 0 : index
    %61 = vector.load %arg19[%c3_56, %c0_57, %c0_58] : memref<4x8x8xbf16, #tpu.memory_space<vmem>>, vector<1x8x8xbf16>
    %62 = vector.shape_cast %61 : vector<1x8x8xbf16> to vector<8x8xbf16>
    %63 = vector.shape_cast %60 : vector<8x8xbf16> to vector<1x8x8xbf16>
    tpu.vector_store %arg19[%c3_56, %c0_57, %c0_58], %63 {strides = array<i32>} : memref<4x8x8xbf16, #tpu.memory_space<vmem>>, vector<1x8x8xbf16>,
    %c0_i32 = arith.constant 0 : i32
    %c4_i32 = arith.constant 4 : i32
    %64 = arith.addi %c0_i32, %c4_i32 : i32
    %c1_i32 = arith.constant 1 : i32
    scf.for %arg24 = %c0_i32 to %64 step %c1_i32  : i32 {
      %166 = arith.index_cast %arg24 : i32 to index
      %c0_132 = arith.constant 0 : index
      %c0_133 = arith.constant 0 : index
      %167 = vector.load %arg18[%166, %c0_132, %c0_133] : memref<4x8x8xbf16, #tpu.memory_space<vmem>>, vector<1x8x8xbf16>
      %168 = vector.shape_cast %167 : vector<1x8x8xbf16> to vector<8x8xbf16>
      %169 = arith.index_cast %arg24 : i32 to index
      %c0_134 = arith.constant 0 : index
      %c0_135 = arith.constant 0 : index
      %170 = vector.load %arg19[%169, %c0_134, %c0_135] : memref<4x8x8xbf16, #tpu.memory_space<vmem>>, vector<1x8x8xbf16>
      %171 = vector.shape_cast %170 : vector<1x8x8xbf16> to vector<8x8xbf16>
      %c0_i32_136 = arith.constant 0 : i32
      %c8_i32 = arith.constant 8 : i32
      %172 = arith.muli %c0_i32_136, %c8_i32 : i32
      %173 = tpu.assume_multiple %172, 8 : i32
      %174 = arith.index_cast %arg24 : i32 to index
      %175 = arith.index_cast %173 : i32 to index
      %c0_137 = arith.constant 0 : index
      %176 = vector.load %arg17[%174, %175, %c0_137] : memref<4x8x8xbf16, #tpu.memory_space<vmem>>, vector<1x8x8xbf16>
      %177 = vector.shape_cast %176 : vector<1x8x8xbf16> to vector<8x8xbf16>
      %cst_138 = arith.constant dense<0.000000e+00> : vector<8x8xf32>
      %178 = tpu.matmul %177, %168, %cst_138 {dimension_numbers = #tpu.dot_dimension_numbers<[1], [1], [0], [0], [0, 0, 1, 0], [], []>} : vector<8x8xbf16>, vector<8x8xbf16>, vector<8x8xf32> -> vector<8x8xf32>
      %cst_139 = arith.constant 0.353553385 : f32
      %179 = vector.broadcast %cst_139 : f32 to vector<8x8xf32>
      %180 = arith.mulf %178, %179 : vector<8x8xf32>
      %181 = vector.broadcast %7 : vector<1x8xf32> to vector<8x8xf32>
      %182 = arith.addf %180, %181 : vector<8x8xf32>
      %cst_140 = arith.constant dense<0xFF800000> : vector<8xf32>
      %183 = vector.multi_reduction <maximumf>, %182, %cst_140 [1] : vector<8x8xf32> to vector<8xf32>
      %184 = vector.shape_cast %183 : vector<8xf32> to vector<8x1xf32>
      %185 = vector.broadcast %184 : vector<8x1xf32> to vector<8x8xf32>
      %186 = arith.subf %182, %185 : vector<8x8xf32>
      %187 = math.exp %186 : vector<8x8xf32>
      %cst_141 = arith.constant dense<0.000000e+00> : vector<8xf32>
      %188 = vector.multi_reduction <add>, %187, %cst_141 [1] : vector<8x8xf32> to vector<8xf32>
      %189 = vector.shape_cast %188 : vector<8xf32> to vector<8x1xf32>
      %190 = tpu.reciprocal %189 {approx = true} : vector<8x1xf32> -> vector<8x1xf32>
      %191 = vector.broadcast %190 : vector<8x1xf32> to vector<8x8xf32>
      %192 = arith.mulf %187, %191 : vector<8x8xf32>
      %193 = arith.truncf %192 : vector<8x8xf32> to vector<8x8xbf16>
      %cst_142 = arith.constant dense<0.000000e+00> : vector<8x8xf32>
      %194 = tpu.matmul %193, %171, %cst_142 {dimension_numbers = #tpu.dot_dimension_numbers<[1], [0], [0], [1], [0, 0, 1, 1], [], []>} : vector<8x8xbf16>, vector<8x8xbf16>, vector<8x8xf32> -> vector<8x8xf32>
      %195 = arith.truncf %194 : vector<8x8xf32> to vector<8x8xbf16>
      %196 = arith.index_cast %arg24 : i32 to index
      %197 = arith.index_cast %173 : i32 to index
      %c0_143 = arith.constant 0 : index
      %198 = vector.load %arg20[%196, %197, %c0_143] : memref<4x8x8xbf16, #tpu.memory_space<vmem>>, vector<1x8x8xbf16>
      %199 = vector.shape_cast %198 : vector<1x8x8xbf16> to vector<8x8xbf16>
      %200 = vector.shape_cast %195 : vector<8x8xbf16> to vector<1x8x8xbf16>
      tpu.vector_store %arg20[%196, %197, %c0_143], %200 {strides = array<i32>} : memref<4x8x8xbf16, #tpu.memory_space<vmem>>, vector<1x8x8xbf16>,
      %c1_i32_144 = arith.constant 1 : i32
    }
    %c4_i32_59 = arith.constant 4 : i32
    %c0_60 = arith.constant 0 : index
    %c0_61 = arith.constant 0 : index
    %c0_62 = arith.constant 0 : index
    %65 = vector.load %arg20[%c0_60, %c0_61, %c0_62] : memref<4x8x8xbf16, #tpu.memory_space<vmem>>, vector<1x8x8xbf16>
    %66 = vector.shape_cast %65 : vector<1x8x8xbf16> to vector<8x8xbf16>
    %c0_63 = arith.constant 0 : index
    %c0_64 = arith.constant 0 : index
    %67 = vector.load %arg21[%c0_63, %c0_64] : memref<8x32xbf16, #tpu.memory_space<vmem>>, vector<8x8xbf16>
    tpu.vector_store %arg21[%c0_63, %c0_64], %66 {strides = array<i32>} : memref<8x32xbf16, #tpu.memory_space<vmem>>, vector<8x8xbf16>,
    %c1_65 = arith.constant 1 : index
    %c0_66 = arith.constant 0 : index
    %c0_67 = arith.constant 0 : index
    %68 = vector.load %arg20[%c1_65, %c0_66, %c0_67] : memref<4x8x8xbf16, #tpu.memory_space<vmem>>, vector<1x8x8xbf16>
    %69 = vector.shape_cast %68 : vector<1x8x8xbf16> to vector<8x8xbf16>
    %c0_68 = arith.constant 0 : index
    %c8_69 = arith.constant 8 : index
    %70 = vector.load %arg21[%c0_68, %c8_69] : memref<8x32xbf16, #tpu.memory_space<vmem>>, vector<8x8xbf16>
    tpu.vector_store %arg21[%c0_68, %c8_69], %69 {strides = array<i32>} : memref<8x32xbf16, #tpu.memory_space<vmem>>, vector<8x8xbf16>,
    %c2_70 = arith.constant 2 : index
    %c0_71 = arith.constant 0 : index
    %c0_72 = arith.constant 0 : index
    %71 = vector.load %arg20[%c2_70, %c0_71, %c0_72] : memref<4x8x8xbf16, #tpu.memory_space<vmem>>, vector<1x8x8xbf16>
    %72 = vector.shape_cast %71 : vector<1x8x8xbf16> to vector<8x8xbf16>
    %c0_73 = arith.constant 0 : index
    %c16_74 = arith.constant 16 : index
    %73 = vector.load %arg21[%c0_73, %c16_74] : memref<8x32xbf16, #tpu.memory_space<vmem>>, vector<8x8xbf16>
    tpu.vector_store %arg21[%c0_73, %c16_74], %72 {strides = array<i32>} : memref<8x32xbf16, #tpu.memory_space<vmem>>, vector<8x8xbf16>,
    %c3_75 = arith.constant 3 : index
    %c0_76 = arith.constant 0 : index
    %c0_77 = arith.constant 0 : index
    %74 = vector.load %arg20[%c3_75, %c0_76, %c0_77] : memref<4x8x8xbf16, #tpu.memory_space<vmem>>, vector<1x8x8xbf16>
    %75 = vector.shape_cast %74 : vector<1x8x8xbf16> to vector<8x8xbf16>
    %c0_78 = arith.constant 0 : index
    %c24_79 = arith.constant 24 : index
    %76 = vector.load %arg21[%c0_78, %c24_79] : memref<8x32xbf16, #tpu.memory_space<vmem>>, vector<8x8xbf16>
    tpu.vector_store %arg21[%c0_78, %c24_79], %75 {strides = array<i32>} : memref<8x32xbf16, #tpu.memory_space<vmem>>, vector<8x8xbf16>,
    %c0_80 = arith.constant 0 : index
    %c0_81 = arith.constant 0 : index
    %77 = vector.load %arg21[%c0_80, %c0_81] : memref<8x32xbf16, #tpu.memory_space<vmem>>, vector<8x32xbf16>
    %c0_82 = arith.constant 0 : index
    %c0_83 = arith.constant 0 : index
    %78 = vector.load %arg5[%c0_82, %c0_83] : memref<32x32xbf16, #tpu.memory_space<vmem>>, vector<32x32xbf16>
    %cst_84 = arith.constant dense<0.000000e+00> : vector<8x32xf32>
    %79 = tpu.matmul %77, %78, %cst_84 {dimension_numbers = #tpu.dot_dimension_numbers<[1], [0], [0], [1], [0, 0, 1, 1], [], []>} : vector<8x32xbf16>, vector<32x32xbf16>, vector<8x32xf32> -> vector<8x32xf32>
    %c0_85 = arith.constant 0 : index
    %c0_86 = arith.constant 0 : index
    %80 = vector.load %arg6[%c0_85, %c0_86] : memref<1x32xf32, #tpu.memory_space<vmem>>, vector<1x32xf32>
    %81 = vector.broadcast %80 : vector<1x32xf32> to vector<8x32xf32>
    %82 = arith.addf %79, %81 : vector<8x32xf32>
    %83 = arith.addf %82, %1 : vector<8x32xf32>
    %c0_87 = arith.constant 0 : index
    %c0_88 = arith.constant 0 : index
    %84 = vector.load %arg7[%c0_87, %c0_88] : memref<1x32xf32, #tpu.memory_space<vmem>>, vector<1x32xf32>
    %c0_89 = arith.constant 0 : index
    %c0_90 = arith.constant 0 : index
    %85 = vector.load %arg8[%c0_89, %c0_90] : memref<1x32xf32, #tpu.memory_space<vmem>>, vector<1x32xf32>
    %cst_91 = arith.constant dense<0.000000e+00> : vector<8xf32>
    %86 = vector.multi_reduction <add>, %83, %cst_91 [1] : vector<8x32xf32> to vector<8xf32>
    %87 = vector.shape_cast %86 : vector<8xf32> to vector<8x1xf32>
    %cst_92 = arith.constant 3.200000e+01 : f32
    %88 = vector.broadcast %cst_92 : f32 to vector<8x1xf32>
    %89 = arith.divf %87, %88 : vector<8x1xf32>
    %90 = vector.broadcast %89 : vector<8x1xf32> to vector<8x32xf32>
    %91 = arith.subf %83, %90 : vector<8x32xf32>
    %92 = arith.mulf %91, %91 : vector<8x32xf32>
    %cst_93 = arith.constant dense<0.000000e+00> : vector<8xf32>
    %93 = vector.multi_reduction <add>, %92, %cst_93 [1] : vector<8x32xf32> to vector<8xf32>
    %94 = vector.shape_cast %93 : vector<8xf32> to vector<8x1xf32>
    %cst_94 = arith.constant 3.200000e+01 : f32
    %95 = vector.broadcast %cst_94 : f32 to vector<8x1xf32>
    %96 = arith.divf %94, %95 : vector<8x1xf32>
    %97 = vector.broadcast %89 : vector<8x1xf32> to vector<8x32xf32>
    %98 = arith.subf %83, %97 : vector<8x32xf32>
    %cst_95 = arith.constant 9.99999996E-13 : f32
    %99 = vector.broadcast %cst_95 : f32 to vector<8x1xf32>
    %100 = arith.addf %96, %99 : vector<8x1xf32>
    %101 = math.rsqrt %100 : vector<8x1xf32>
    %102 = vector.broadcast %101 : vector<8x1xf32> to vector<8x32xf32>
    %103 = arith.mulf %98, %102 : vector<8x32xf32>
    %104 = vector.broadcast %84 : vector<1x32xf32> to vector<8x32xf32>
    %105 = arith.mulf %103, %104 : vector<8x32xf32>
    %106 = vector.broadcast %85 : vector<1x32xf32> to vector<8x32xf32>
    %107 = arith.addf %105, %106 : vector<8x32xf32>
    %c0_96 = arith.constant 0 : index
    %c0_97 = arith.constant 0 : index
    %108 = vector.load %arg22[%c0_96, %c0_97] : memref<8x32xf32, #tpu.memory_space<vmem>>, vector<8x32xf32>
    tpu.vector_store %arg22[%c0_96, %c0_97], %107 {strides = array<i32>} : memref<8x32xf32, #tpu.memory_space<vmem>>, vector<8x32xf32>,
    %c0_98 = arith.constant 0 : index
    %c0_99 = arith.constant 0 : index
    %109 = vector.load %arg22[%c0_98, %c0_99] : memref<8x32xf32, #tpu.memory_space<vmem>>, vector<8x32xf32>
    %110 = arith.truncf %109 : vector<8x32xf32> to vector<8x32xbf16>
    %c0_100 = arith.constant 0 : index
    %c0_101 = arith.constant 0 : index
    %111 = vector.load %arg9[%c0_100, %c0_101] : memref<32x64xbf16, #tpu.memory_space<vmem>>, vector<32x64xbf16>
    %cst_102 = arith.constant dense<0.000000e+00> : vector<8x64xf32>
    %112 = tpu.matmul %110, %111, %cst_102 {dimension_numbers = #tpu.dot_dimension_numbers<[1], [0], [0], [1], [0, 0, 1, 1], [], []>} : vector<8x32xbf16>, vector<32x64xbf16>, vector<8x64xf32> -> vector<8x64xf32>
    %c0_103 = arith.constant 0 : index
    %c0_104 = arith.constant 0 : index
    %113 = vector.load %arg10[%c0_103, %c0_104] : memref<1x64xf32, #tpu.memory_space<vmem>>, vector<1x64xf32>
    %114 = vector.broadcast %113 : vector<1x64xf32> to vector<8x64xf32>
    %115 = arith.addf %112, %114 : vector<8x64xf32>
    %cst_105 = arith.constant 5.000000e-01 : f32
    %116 = vector.broadcast %cst_105 : f32 to vector<8x64xf32>
    %117 = arith.mulf %116, %115 : vector<8x64xf32>
    %cst_106 = arith.constant 4.471500e-02 : f32
    %118 = vector.broadcast %cst_106 : f32 to vector<8x64xf32>
    %119 = arith.mulf %118, %115 : vector<8x64xf32>
    %120 = arith.mulf %119, %115 : vector<8x64xf32>
    %121 = arith.mulf %120, %115 : vector<8x64xf32>
    %122 = arith.addf %115, %121 : vector<8x64xf32>
    %cst_107 = arith.constant 0.797884583 : f32
    %123 = vector.broadcast %cst_107 : f32 to vector<8x64xf32>
    %124 = arith.mulf %123, %122 : vector<8x64xf32>
    %125 = math.tanh %124 : vector<8x64xf32>
    %cst_108 = arith.constant 1.000000e+00 : f32
    %126 = vector.broadcast %cst_108 : f32 to vector<8x64xf32>
    %127 = arith.addf %126, %125 : vector<8x64xf32>
    %128 = arith.mulf %117, %127 : vector<8x64xf32>
    %129 = arith.truncf %128 : vector<8x64xf32> to vector<8x64xbf16>
    %c0_109 = arith.constant 0 : index
    %c0_110 = arith.constant 0 : index
    %130 = vector.load %arg11[%c0_109, %c0_110] : memref<64x32xbf16, #tpu.memory_space<vmem>>, vector<64x32xbf16>
    %cst_111 = arith.constant dense<0.000000e+00> : vector<8x32xf32>
    %131 = tpu.matmul %129, %130, %cst_111 {dimension_numbers = #tpu.dot_dimension_numbers<[1], [0], [0], [1], [0, 0, 1, 1], [], []>} : vector<8x64xbf16>, vector<64x32xbf16>, vector<8x32xf32> -> vector<8x32xf32>
    %c0_112 = arith.constant 0 : index
    %c0_113 = arith.constant 0 : index
    %132 = vector.load %arg23[%c0_112, %c0_113] : memref<8x32xf32, #tpu.memory_space<vmem>>, vector<8x32xf32>
    tpu.vector_store %arg23[%c0_112, %c0_113], %131 {strides = array<i32>} : memref<8x32xf32, #tpu.memory_space<vmem>>, vector<8x32xf32>,
    %c0_114 = arith.constant 0 : index
    %c0_115 = arith.constant 0 : index
    %133 = vector.load %arg23[%c0_114, %c0_115] : memref<8x32xf32, #tpu.memory_space<vmem>>, vector<8x32xf32>
    %c0_116 = arith.constant 0 : index
    %c0_117 = arith.constant 0 : index
    %134 = vector.load %arg12[%c0_116, %c0_117] : memref<1x32xf32, #tpu.memory_space<vmem>>, vector<1x32xf32>
    %135 = vector.broadcast %134 : vector<1x32xf32> to vector<8x32xf32>
    %136 = arith.addf %133, %135 : vector<8x32xf32>
    %c0_118 = arith.constant 0 : index
    %c0_119 = arith.constant 0 : index
    %137 = vector.load %arg22[%c0_118, %c0_119] : memref<8x32xf32, #tpu.memory_space<vmem>>, vector<8x32xf32>
    %138 = arith.addf %136, %137 : vector<8x32xf32>
    %c0_120 = arith.constant 0 : index
    %c0_121 = arith.constant 0 : index
    %139 = vector.load %arg13[%c0_120, %c0_121] : memref<1x32xf32, #tpu.memory_space<vmem>>, vector<1x32xf32>
    %c0_122 = arith.constant 0 : index
    %c0_123 = arith.constant 0 : index
    %140 = vector.load %arg14[%c0_122, %c0_123] : memref<1x32xf32, #tpu.memory_space<vmem>>, vector<1x32xf32>
    %cst_124 = arith.constant dense<0.000000e+00> : vector<8xf32>
    %141 = vector.multi_reduction <add>, %138, %cst_124 [1] : vector<8x32xf32> to vector<8xf32>
    %142 = vector.shape_cast %141 : vector<8xf32> to vector<8x1xf32>
    %cst_125 = arith.constant 3.200000e+01 : f32
    %143 = vector.broadcast %cst_125 : f32 to vector<8x1xf32>
    %144 = arith.divf %142, %143 : vector<8x1xf32>
    %145 = vector.broadcast %144 : vector<8x1xf32> to vector<8x32xf32>
    %146 = arith.subf %138, %145 : vector<8x32xf32>
    %147 = arith.mulf %146, %146 : vector<8x32xf32>
    %cst_126 = arith.constant dense<0.000000e+00> : vector<8xf32>
    %148 = vector.multi_reduction <add>, %147, %cst_126 [1] : vector<8x32xf32> to vector<8xf32>
    %149 = vector.shape_cast %148 : vector<8xf32> to vector<8x1xf32>
    %cst_127 = arith.constant 3.200000e+01 : f32
    %150 = vector.broadcast %cst_127 : f32 to vector<8x1xf32>
    %151 = arith.divf %149, %150 : vector<8x1xf32>
    %152 = vector.broadcast %144 : vector<8x1xf32> to vector<8x32xf32>
    %153 = arith.subf %138, %152 : vector<8x32xf32>
    %cst_128 = arith.constant 9.99999996E-13 : f32
    %154 = vector.broadcast %cst_128 : f32 to vector<8x1xf32>
    %155 = arith.addf %151, %154 : vector<8x1xf32>
    %156 = math.rsqrt %155 : vector<8x1xf32>
    %157 = vector.broadcast %156 : vector<8x1xf32> to vector<8x32xf32>
    %158 = arith.mulf %153, %157 : vector<8x32xf32>
    %159 = vector.broadcast %139 : vector<1x32xf32> to vector<8x32xf32>
    %160 = arith.mulf %158, %159 : vector<8x32xf32>
    %161 = vector.broadcast %140 : vector<1x32xf32> to vector<8x32xf32>
    %162 = arith.addf %160, %161 : vector<8x32xf32>
    %c0_129 = arith.constant 0 : index
    %c0_130 = arith.constant 0 : index
    %c0_131 = arith.constant 0 : index
    %163 = vector.load %arg15[%c0_129, %c0_130, %c0_131] : memref<1x8x32xf32, #tpu.memory_space<vmem>>, vector<1x8x32xf32>
    %164 = vector.shape_cast %163 : vector<1x8x32xf32> to vector<8x32xf32>
    %165 = vector.shape_cast %162 : vector<8x32xf32> to vector<1x8x32xf32>
    tpu.vector_store %arg15[%c0_129, %c0_130, %c0_131], %165 {strides = array<i32>} : memref<1x8x32xf32, #tpu.memory_space<vmem>>, vector<1x8x32xf32>,
    return
  }
  func.func @transform_0(%arg0: i32) -> (i32, i32, i32) {
    %c0_i32 = arith.constant 0 : i32
    %c0_i32_0 = arith.constant 0 : i32
    %c0_i32_1 = arith.constant 0 : i32
    return %arg0, %c0_i32, %c0_i32_0 : i32, i32, i32
  }
  func.func @transform_1(%arg0: i32) -> (i32, i32, i32) {
    %c0_i32 = arith.constant 0 : i32
    %c0_i32_0 = arith.constant 0 : i32
    %c0_i32_1 = arith.constant 0 : i32
    return %arg0, %c0_i32, %c0_i32_0 : i32, i32, i32
  }
  func.func @transform_2(%arg0: i32) -> (i32, i32) {
    %c0_i32 = arith.constant 0 : i32
    %c0_i32_0 = arith.constant 0 : i32
    %c0_i32_1 = arith.constant 0 : i32
    return %c0_i32, %c0_i32_0 : i32, i32
  }
  func.func @transform_3(%arg0: i32) -> (i32, i32) {
    %c0_i32 = arith.constant 0 : i32
    %c0_i32_0 = arith.constant 0 : i32
    %c0_i32_1 = arith.constant 0 : i32
    return %c0_i32, %c0_i32_0 : i32, i32
  }
  func.func @transform_4(%arg0: i32) -> (i32, i32) {
    %c0_i32 = arith.constant 0 : i32
    %c0_i32_0 = arith.constant 0 : i32
    %c0_i32_1 = arith.constant 0 : i32
    return %c0_i32, %c0_i32_0 : i32, i32
  }
  func.func @transform_5(%arg0: i32) -> (i32, i32) {
    %c0_i32 = arith.constant 0 : i32
    %c0_i32_0 = arith.constant 0 : i32
    %c0_i32_1 = arith.constant 0 : i32
    return %c0_i32, %c0_i32_0 : i32, i32
  }
  func.func @transform_6(%arg0: i32) -> (i32, i32) {
    %c0_i32 = arith.constant 0 : i32
    %c0_i32_0 = arith.constant 0 : i32
    %c0_i32_1 = arith.constant 0 : i32
    return %c0_i32, %c0_i32_0 : i32, i32
  }
  func.func @transform_7(%arg0: i32) -> (i32, i32) {
    %c0_i32 = arith.constant 0 : i32
    %c0_i32_0 = arith.constant 0 : i32
    %c0_i32_1 = arith.constant 0 : i32
    return %c0_i32, %c0_i32_0 : i32, i32
  }
  func.func @transform_8(%arg0: i32) -> (i32, i32) {
    %c0_i32 = arith.constant 0 : i32
    %c0_i32_0 = arith.constant 0 : i32
    %c0_i32_1 = arith.constant 0 : i32
    return %c0_i32, %c0_i32_0 : i32, i32
  }
  func.func @transform_9(%arg0: i32) -> (i32, i32) {
    %c0_i32 = arith.constant 0 : i32
    %c0_i32_0 = arith.constant 0 : i32
    %c0_i32_1 = arith.constant 0 : i32
    return %c0_i32, %c0_i32_0 : i32, i32
  }
  func.func @transform_10(%arg0: i32) -> (i32, i32) {
    %c0_i32 = arith.constant 0 : i32
    %c0_i32_0 = arith.constant 0 : i32
    %c0_i32_1 = arith.constant 0 : i32
    return %c0_i32, %c0_i32_0 : i32, i32
  }
  func.func @transform_11(%arg0: i32) -> (i32, i32) {
    %c0_i32 = arith.constant 0 : i32
    %c0_i32_0 = arith.constant 0 : i32
    %c0_i32_1 = arith.constant 0 : i32
    return %c0_i32, %c0_i32_0 : i32, i32
  }
  func.func @transform_12(%arg0: i32) -> (i32, i32) {
    %c0_i32 = arith.constant 0 : i32
    %c0_i32_0 = arith.constant 0 : i32
    %c0_i32_1 = arith.constant 0 : i32
    return %c0_i32, %c0_i32_0 : i32, i32
  }
  func.func @transform_13(%arg0: i32) -> (i32, i32) {
    %c0_i32 = arith.constant 0 : i32
    %c0_i32_0 = arith.constant 0 : i32
    %c0_i32_1 = arith.constant 0 : i32
    return %c0_i32, %c0_i32_0 : i32, i32
  }
  func.func @transform_14(%arg0: i32) -> (i32, i32, i32) {
    %c0_i32 = arith.constant 0 : i32
    %c0_i32_0 = arith.constant 0 : i32
    %c0_i32_1 = arith.constant 0 : i32
    return %arg0, %c0_i32, %c0_i32_0 : i32, i32, i32
  }
}

</mosaic_0001>

<llo_original>
// kernel: tpu_custom_call.1
$region0: #{tpu_custom_call.1}
  #allocation0 [shape = 'u32[]', space=smem, size = 0x4, offset = 0x4, fixed_abs, tag = 'smem constant byte address 0x4 - core index']
  #allocation1 [shape = 'u32[72,128]{1,0:T(1,128)}', space=vmem, size = 0x9000, scoped, tag = 'internal scratch']
  #allocation2 [shape = 'bf16[8,96]{1,0:T(8,128)(2,1)}', space=vmem, size = 0x800, scoped, tag = 'scratch operand']
  #allocation3 [shape = 'bf16[4,8,8]{2,1,0:T(8,128)(2,1)}', space=vmem, size = 0x2000, scoped, tag = 'scratch operand']
  #allocation4 [shape = 'bf16[4,8,8]{2,1,0:T(8,128)(2,1)}', space=vmem, size = 0x2000, scoped, tag = 'scratch operand']
  #allocation5 [shape = 'bf16[4,8,8]{2,1,0:T(8,128)(2,1)}', space=vmem, size = 0x2000, scoped, tag = 'scratch operand']
  #allocation6 [shape = 'bf16[4,8,8]{2,1,0:T(8,128)(2,1)}', space=vmem, size = 0x2000, scoped, tag = 'scratch operand']
  #allocation7 [shape = 'bf16[8,32]{1,0:T(8,128)(2,1)}', space=vmem, size = 0x800, scoped, tag = 'scratch operand']
  #allocation8 [shape = 'f32[8,32]{1,0:T(8,128)}', space=vmem, size = 0x1000, scoped, tag = 'scratch operand']
  #allocation9 [shape = 'f32[8,32]{1,0:T(8,128)}', space=vmem, size = 0x1000, scoped, tag = 'scratch operand']
  %s0 = inlined_call_operand.hbm [shape: f32[2,1,8], index: 0, kind: input, shape index: {}]
  %s1 = inlined_call_operand.vmem [shape: f32[2,8,32], index: 1, kind: input, shape index: {}]
  %s2 = inlined_call_operand.vmem [shape: bf16[32,96], index: 2, kind: input, shape index: {}]
  %s3 = inlined_call_operand.vmem [shape: f32[1,96], index: 3, kind: input, shape index: {}]
  %s4 = inlined_call_operand.vmem [shape: bf16[32,32], index: 4, kind: input, shape index: {}]
  %s5 = inlined_call_operand.vmem [shape: f32[1,32], index: 5, kind: input, shape index: {}]
  %s6 = inlined_call_operand.vmem [shape: f32[1,32], index: 6, kind: input, shape index: {}]
  %s7 = inlined_call_operand.vmem [shape: f32[1,32], index: 7, kind: input, shape index: {}]
  %s8 = inlined_call_operand.hbm [shape: bf16[32,64], index: 8, kind: input, shape index: {}]
  %s9 = inlined_call_operand.vmem [shape: f32[1,64], index: 9, kind: input, shape index: {}]
  %s10 = inlined_call_operand.vmem [shape: bf16[64,32], index: 10, kind: input, shape index: {}]
  %s11 = inlined_call_operand.vmem [shape: f32[1,32], index: 11, kind: input, shape index: {}]
  %s12 = inlined_call_operand.vmem [shape: f32[1,32], index: 12, kind: input, shape index: {}]
  %s13 = inlined_call_operand.vmem [shape: f32[1,32], index: 13, kind: input, shape index: {}]
  %s14 = inlined_call_operand.hbm [shape: f32[2,8,32], index: 14, kind: output, shape index: {}]
  %s15 = sld [smem:[#allocation0]]
  $region104: #{tpu_custom_call.1} parent=0
    _
  %s17 = ssub.s32 1, %s15
  %s18 = scalar_select 0, %s17, %s15
  $region1: #{tpu_custom_call.1} parent=0
    #allocation10 [shape = 'u8[1024]{0}', space=vmem, size = 0x400, scoped, tag = 'input window, operand 0']
    #allocation11 [shape = 's32[2]{0}', space=sflag, size = 0x8, scoped, tag = 'scoped memory for tpu_custom_call.1']
    #allocation12 [shape = 's32[2]{0}', space=sflag, size = 0x8, scoped, tag = 'scoped memory for tpu_custom_call.1']
    #allocation13 [shape = 'u8[8192]{0}', space=vmem, size = 0x2000, scoped, tag = 'input window, operand 8, single buffered']
    #allocation14 [shape = 's32[1]{0}', space=sflag, size = 0x4, scoped, tag = 'scoped memory for tpu_custom_call.1']
    #allocation15 [shape = 'u8[8192]{0}', space=vmem, size = 0x2000, scoped, tag = 'output window, operand 0']
    %19 = vsyncpa [#allocation11], 0
    %s20 = scalar_lea.sflag [#allocation11], 1
    %21 = vsyncpa %s20, 0
    %22 = vsyncpa [#allocation14], 0
    %23 = vsyncpa [#allocation12], 0
    %s24 = scalar_lea.sflag [#allocation12], 1
    %25 = vsyncpa %s24, 0
    loop: start=0, step=1, limit=4
    $region2: #{tpu_custom_call.1} parent=1 // loop_pre_header
      _
    $region3: #{tpu_custom_call.1} parent=1 // loop_header
      %s27 = sphi 0, %s31
      %p28 = scmp.ge.s32.totalorder %s27, 4
      %s37 = sphi 0, %s39
      %s40 = sphi 0, %s37
      %s41 = sphi 0, %s40
      %s57 = sphi 0, %s41
      %s63 = sphi 0, %s65
      %s66 = sphi 0, %s63
      %s67 = sphi 0, %s66
      %s83 = sphi 0, %s67
      %s87 = sphi 0, %s87
      %s89 = sphi 0, %s87
      %s90 = sphi 0, %s89
      %s104 = sphi 0, %s90
      %s108 = sphi 0, %s108
      %s110 = sphi 0, %s108
      %s111 = sphi 0, %s110
      %s125 = sphi 0, %s111
      %s129 = sphi 0, %s129
      %s131 = sphi 0, %s129
      %s132 = sphi 0, %s131
      %s146 = sphi 0, %s132
      %s150 = sphi 0, %s150
      %s152 = sphi 0, %s150
      %s153 = sphi 0, %s152
      %s167 = sphi 0, %s153
      %s171 = sphi 0, %s171
      %s173 = sphi 0, %s171
      %s174 = sphi 0, %s173
      %s188 = sphi 0, %s174
      %s192 = sphi 0, %s192
      %s194 = sphi 0, %s192
      %s195 = sphi 0, %s194
      %s209 = sphi 0, %s195
      %s213 = sphi 0, %s213
      %s215 = sphi 0, %s213
      %s216 = sphi 0, %s215
      %s230 = sphi 0, %s216
      %s234 = sphi 0, %s234
      %s236 = sphi 0, %s234
      %s237 = sphi 0, %s236
      %s251 = sphi 0, %s237
      %s255 = sphi 0, %s255
      %s257 = sphi 0, %s255
      %s258 = sphi 0, %s257
      %s272 = sphi 0, %s258
      %s276 = sphi 0, %s276
      %s278 = sphi 0, %s276
      %s279 = sphi 0, %s278
      %s293 = sphi 0, %s279
      %s297 = sphi 0, %s297
      %s299 = sphi 0, %s297
      %s300 = sphi 0, %s299
      %s314 = sphi 0, %s300
      %s318 = sphi 0, %s318
      %s320 = sphi 0, %s318
      %s321 = sphi 0, %s320
      %s335 = sphi 0, %s321
      %s341 = sphi 0, %s343
      %s344 = sphi 0, %s341
      %s345 = sphi 0, %s344
      %s361 = sphi 0, %s345
    $region4: #{tpu_custom_call.1} parent=1 // loop_header_branch
      %30 = sbr.rel (%p28) target = $region8
    $region5: #{tpu_custom_call.1} parent=1 // loop_body
      %s32 = ssub.s32 %s27, 1
      %s33 = ssub.s32 %s27, 2
      %s34 = sadd.s32 %s27, 1
      %s35 = ssub.s32 %s27, %s34
      %p36 = scmp.eq.s32.totalorder %s35, 0
      %s38 = sadd.s32 %s37, 1
      %s39 = scalar_select %p36, %s37, %s38
      %p42 = pneg %p36
      %p43 = scmp.eq.s32.totalorder %s27, 1
      %p44 = por %p42, %p43
      %p45 = scmp.ne.s32.totalorder %s37, %s40
      %p46 = scmp.eq.s32.totalorder %s27, 0
      %p47 = por %p45, %p46
      %p48 = scmp.ne.s32.totalorder %s37, %s40
      %p49 = scmp.eq.s32.totalorder %s32, 1
      %p50 = por %p48, %p49
      %p51 = scmp.ne.s32.totalorder %s40, %s41
      %p52 = scmp.eq.s32.totalorder %s32, 0
      %p53 = por %p51, %p52
      %p54 = scmp.ne.s32.totalorder %s40, %s41
      %p55 = scmp.eq.s32.totalorder %s33, 1
      %p56 = por %p54, %p55
      %p58 = scmp.ne.s32.totalorder %s41, %s57
      %p59 = scmp.eq.s32.totalorder %s33, 0
      %p60 = por %p58, %p59
      %s61 = ssub.s32 %s27, %s34
      %p62 = scmp.eq.s32.totalorder %s61, 0
      %s64 = sadd.s32 %s63, 1
      %s65 = scalar_select %p62, %s63, %s64
      %p68 = pneg %p62
      %p69 = scmp.eq.s32.totalorder %s27, 1
      %p70 = por %p68, %p69
      %p71 = scmp.ne.s32.totalorder %s63, %s66
      %p72 = scmp.eq.s32.totalorder %s27, 0
      %p73 = por %p71, %p72
      %p74 = scmp.ne.s32.totalorder %s63, %s66
      %p75 = scmp.eq.s32.totalorder %s32, 1
      %p76 = por %p74, %p75
      %p77 = scmp.ne.s32.totalorder %s66, %s67
      %p78 = scmp.eq.s32.totalorder %s32, 0
      %p79 = por %p77, %p78
      %p80 = scmp.ne.s32.totalorder %s66, %s67
      %p81 = scmp.eq.s32.totalorder %s33, 1
      %p82 = por %p80, %p81
      %p84 = scmp.ne.s32.totalorder %s67, %s83
      %p85 = scmp.eq.s32.totalorder %s33, 0
      %p86 = por %p84, %p85
      %s88 = sadd.s32 %s87, 1
      %p91 = scmp.eq.s32.totalorder %s27, 1
      %p92 = scmp.ne.s32.totalorder %s87, %s89
      %p93 = scmp.eq.s32.totalorder %s27, 0
      %p94 = por %p92, %p93
      %p95 = scmp.ne.s32.totalorder %s87, %s89
      %p96 = scmp.eq.s32.totalorder %s32, 1
      %p97 = por %p95, %p96
      %p98 = scmp.ne.s32.totalorder %s89, %s90
      %p99 = scmp.eq.s32.totalorder %s32, 0
      %p100 = por %p98, %p99
      %p101 = scmp.ne.s32.totalorder %s89, %s90
      %p102 = scmp.eq.s32.totalorder %s33, 1
      %p103 = por %p101, %p102
      %p105 = scmp.ne.s32.totalorder %s90, %s104
      %p106 = scmp.eq.s32.totalorder %s33, 0
      %p107 = por %p105, %p106
      %s109 = sadd.s32 %s108, 1
      %p112 = scmp.eq.s32.totalorder %s27, 1
      %p113 = scmp.ne.s32.totalorder %s108, %s110
      %p114 = scmp.eq.s32.totalorder %s27, 0
      %p115 = por %p113, %p114
      %p116 = scmp.ne.s32.totalorder %s108, %s110
      %p117 = scmp.eq.s32.totalorder %s32, 1
      %p118 = por %p116, %p117
      %p119 = scmp.ne.s32.totalorder %s110, %s111
      %p120 = scmp.eq.s32.totalorder %s32, 0
      %p121 = por %p119, %p120
      %p122 = scmp.ne.s32.totalorder %s110, %s111
      %p123 = scmp.eq.s32.totalorder %s33, 1
      %p124 = por %p122, %p123
      %p126 = scmp.ne.s32.totalorder %s111, %s125
      %p127 = scmp.eq.s32.totalorder %s33, 0
      %p128 = por %p126, %p127
      %s130 = sadd.s32 %s129, 1
      %p133 = scmp.eq.s32.totalorder %s27, 1
      %p134 = scmp.ne.s32.totalorder %s129, %s131
      %p135 = scmp.eq.s32.totalorder %s27, 0
      %p136 = por %p134, %p135
      %p137 = scmp.ne.s32.totalorder %s129, %s131
      %p138 = scmp.eq.s32.totalorder %s32, 1
      %p139 = por %p137, %p138
      %p140 = scmp.ne.s32.totalorder %s131, %s132
      %p141 = scmp.eq.s32.totalorder %s32, 0
      %p142 = por %p140, %p141
      %p143 = scmp.ne.s32.totalorder %s131, %s132
      %p144 = scmp.eq.s32.totalorder %s33, 1
      %p145 = por %p143, %p144
      %p147 = scmp.ne.s32.totalorder %s132, %s146
      %p148 = scmp.eq.s32.totalorder %s33, 0
      %p149 = por %p147, %p148
      %s151 = sadd.s32 %s150, 1
      %p154 = scmp.eq.s32.totalorder %s27, 1
      %p155 = scmp.ne.s32.totalorder %s150, %s152
      %p156 = scmp.eq.s32.totalorder %s27, 0
      %p157 = por %p155, %p156
      %p158 = scmp.ne.s32.totalorder %s150, %s152
      %p159 = scmp.eq.s32.totalorder %s32, 1
      %p160 = por %p158, %p159
      %p161 = scmp.ne.s32.totalorder %s152, %s153
      %p162 = scmp.eq.s32.totalorder %s32, 0
      %p163 = por %p161, %p162
      %p164 = scmp.ne.s32.totalorder %s152, %s153
      %p165 = scmp.eq.s32.totalorder %s33, 1
      %p166 = por %p164, %p165
      %p168 = scmp.ne.s32.totalorder %s153, %s167
      %p169 = scmp.eq.s32.totalorder %s33, 0
      %p170 = por %p168, %p169
      %s172 = sadd.s32 %s171, 1
      %p175 = scmp.eq.s32.totalorder %s27, 1
      %p176 = scmp.ne.s32.totalorder %s171, %s173
      %p177 = scmp.eq.s32.totalorder %s27, 0
      %p178 = por %p176, %p177
      %p179 = scmp.ne.s32.totalorder %s171, %s173
      %p180 = scmp.eq.s32.totalorder %s32, 1
      %p181 = por %p179, %p180
      %p182 = scmp.ne.s32.totalorder %s173, %s174
      %p183 = scmp.eq.s32.totalorder %s32, 0
      %p184 = por %p182, %p183
      %p185 = scmp.ne.s32.totalorder %s173, %s174
      %p186 = scmp.eq.s32.totalorder %s33, 1
      %p187 = por %p185, %p186
      %p189 = scmp.ne.s32.totalorder %s174, %s188
      %p190 = scmp.eq.s32.totalorder %s33, 0
      %p191 = por %p189, %p190
      %s193 = sadd.s32 %s192, 1
      %p196 = scmp.eq.s32.totalorder %s27, 1
      %p197 = scmp.ne.s32.totalorder %s192, %s194
      %p198 = scmp.eq.s32.totalorder %s27, 0
      %p199 = por %p197, %p198
      %p200 = scmp.ne.s32.totalorder %s192, %s194
      %p201 = scmp.eq.s32.totalorder %s32, 1
      %p202 = por %p200, %p201
      %p203 = scmp.ne.s32.totalorder %s194, %s195
      %p204 = scmp.eq.s32.totalorder %s32, 0
      %p205 = por %p203, %p204
      %p206 = scmp.ne.s32.totalorder %s194, %s195
      %p207 = scmp.eq.s32.totalorder %s33, 1
      %p208 = por %p206, %p207
      %p210 = scmp.ne.s32.totalorder %s195, %s209
      %p211 = scmp.eq.s32.totalorder %s33, 0
      %p212 = por %p210, %p211
      %s214 = sadd.s32 %s213, 1
      %p217 = scmp.eq.s32.totalorder %s27, 1
      %p218 = scmp.ne.s32.totalorder %s213, %s215
      %p219 = scmp.eq.s32.totalorder %s27, 0
      %p220 = por %p218, %p219
      %p221 = scmp.ne.s32.totalorder %s213, %s215
      %p222 = scmp.eq.s32.totalorder %s32, 1
      %p223 = por %p221, %p222
      %p224 = scmp.ne.s32.totalorder %s215, %s216
      %p225 = scmp.eq.s32.totalorder %s32, 0
      %p226 = por %p224, %p225
      %p227 = scmp.ne.s32.totalorder %s215, %s216
      %p228 = scmp.eq.s32.totalorder %s33, 1
      %p229 = por %p227, %p228
      %p231 = scmp.ne.s32.totalorder %s216, %s230
      %p232 = scmp.eq.s32.totalorder %s33, 0
      %p233 = por %p231, %p232
      %s235 = sadd.s32 %s234, 1
      %p238 = scmp.eq.s32.totalorder %s27, 1
      %p239 = scmp.ne.s32.totalorder %s234, %s236
      %p240 = scmp.eq.s32.totalorder %s27, 0
      %p241 = por %p239, %p240
      %p242 = scmp.ne.s32.totalorder %s234, %s236
      %p243 = scmp.eq.s32.totalorder %s32, 1
      %p244 = por %p242, %p243
      %p245 = scmp.ne.s32.totalorder %s236, %s237
      %p246 = scmp.eq.s32.totalorder %s32, 0
      %p247 = por %p245, %p246
      %p248 = scmp.ne.s32.totalorder %s236, %s237
      %p249 = scmp.eq.s32.totalorder %s33, 1
      %p250 = por %p248, %p249
      %p252 = scmp.ne.s32.totalorder %s237, %s251
      %p253 = scmp.eq.s32.totalorder %s33, 0
      %p254 = por %p252, %p253
      %s256 = sadd.s32 %s255, 1
      %p259 = scmp.eq.s32.totalorder %s27, 1
      %p260 = scmp.ne.s32.totalorder %s255, %s257
      %p261 = scmp.eq.s32.totalorder %s27, 0
      %p262 = por %p260, %p261
      %p263 = scmp.ne.s32.totalorder %s255, %s257
      %p264 = scmp.eq.s32.totalorder %s32, 1
      %p265 = por %p263, %p264
      %p266 = scmp.ne.s32.totalorder %s257, %s258
      %p267 = scmp.eq.s32.totalorder %s32, 0
      %p268 = por %p266, %p267
      %p269 = scmp.ne.s32.totalorder %s257, %s258
      %p270 = scmp.eq.s32.totalorder %s33, 1
      %p271 = por %p269, %p270
      %p273 = scmp.ne.s32.totalorder %s258, %s272
      %p274 = scmp.eq.s32.totalorder %s33, 0
      %p275 = por %p273, %p274
      %s277 = sadd.s32 %s276, 1
      %p280 = scmp.eq.s32.totalorder %s27, 1
      %p281 = scmp.ne.s32.totalorder %s276, %s278
      %p282 = scmp.eq.s32.totalorder %s27, 0
      %p283 = por %p281, %p282
      %p284 = scmp.ne.s32.totalorder %s276, %s278
      %p285 = scmp.eq.s32.totalorder %s32, 1
      %p286 = por %p284, %p285
      %p287 = scmp.ne.s32.totalorder %s278, %s279
      %p288 = scmp.eq.s32.totalorder %s32, 0
      %p289 = por %p287, %p288
      %p290 = scmp.ne.s32.totalorder %s278, %s279
      %p291 = scmp.eq.s32.totalorder %s33, 1
      %p292 = por %p290, %p291
      %p294 = scmp.ne.s32.totalorder %s279, %s293
      %p295 = scmp.eq.s32.totalorder %s33, 0
      %p296 = por %p294, %p295
      %s298 = sadd.s32 %s297, 1
      %p301 = scmp.eq.s32.totalorder %s27, 1
      %p302 = scmp.ne.s32.totalorder %s297, %s299
      %p303 = scmp.eq.s32.totalorder %s27, 0
      %p304 = por %p302, %p303
      %p305 = scmp.ne.s32.totalorder %s297, %s299
      %p306 = scmp.eq.s32.totalorder %s32, 1
      %p307 = por %p305, %p306
      %p308 = scmp.ne.s32.totalorder %s299, %s300
      %p309 = scmp.eq.s32.totalorder %s32, 0
      %p310 = por %p308, %p309
      %p311 = scmp.ne.s32.totalorder %s299, %s300
      %p312 = scmp.eq.s32.totalorder %s33, 1
      %p313 = por %p311, %p312
      %p315 = scmp.ne.s32.totalorder %s300, %s314
      %p316 = scmp.eq.s32.totalorder %s33, 0
      %p317 = por %p315, %p316
      %s319 = sadd.s32 %s318, 1
      %p322 = scmp.eq.s32.totalorder %s27, 1
      %p323 = scmp.ne.s32.totalorder %s318, %s320
      %p324 = scmp.eq.s32.totalorder %s27, 0
      %p325 = por %p323, %p324
      %p326 = scmp.ne.s32.totalorder %s318, %s320
      %p327 = scmp.eq.s32.totalorder %s32, 1
      %p328 = por %p326, %p327
      %p329 = scmp.ne.s32.totalorder %s320, %s321
      %p330 = scmp.eq.s32.totalorder %s32, 0
      %p331 = por %p329, %p330
      %p332 = scmp.ne.s32.totalorder %s320, %s321
      %p333 = scmp.eq.s32.totalorder %s33, 1
      %p334 = por %p332, %p333
      %p336 = scmp.ne.s32.totalorder %s321, %s335
      %p337 = scmp.eq.s32.totalorder %s33, 0
      %p338 = por %p336, %p337
      %s339 = ssub.s32 %s27, %s34
      %p340 = scmp.eq.s32.totalorder %s339, 0
      %s342 = sadd.s32 %s341, 1
      %s343 = scalar_select %p340, %s341, %s342
      %p346 = pneg %p340
      %p347 = scmp.eq.s32.totalorder %s27, 1
      %p348 = por %p346, %p347
      %p349 = scmp.ne.s32.totalorder %s341, %s344
      %p350 = scmp.eq.s32.totalorder %s27, 0
      %p351 = por %p349, %p350
      %p352 = scmp.ne.s32.totalorder %s341, %s344
      %p353 = scmp.eq.s32.totalorder %s32, 1
      %p354 = por %p352, %p353
      %p355 = scmp.ne.s32.totalorder %s344, %s345
      %p356 = scmp.eq.s32.totalorder %s32, 0
      %p357 = por %p355, %p356
      %p358 = scmp.ne.s32.totalorder %s344, %s345
      %p359 = scmp.eq.s32.totalorder %s33, 1
      %p360 = por %p358, %p359
      %p362 = scmp.ne.s32.totalorder %s345, %s361
      %p363 = scmp.eq.s32.totalorder %s33, 0
      %p364 = por %p362, %p363
      %p365 = scmp.le.s32.totalorder 1, %s27
      %p366 = scmp.lt.s32.totalorder %s27, 3
      %p367 = pnand %p365, %p366
      %p368 = pneg %p367
      // Predicated region
      $region9: #{tpu_custom_call.1} parent=5 // pred_check
        _
      $region10: #{tpu_custom_call.1} parent=5 // pred_check_branch
        %370 = sbr.rel (%p367) target = $region12
      $region11: #{tpu_custom_call.1} parent=5 // pred_region
        %s371 = ssub.s32 %s27, 1
        // Predicated region
        $region13: #{tpu_custom_call.1} parent=11 // pred_check
          %p372 = pneg %p100
        $region14: #{tpu_custom_call.1} parent=11 // pred_check_branch
          %374 = sbr.rel (%p372) target = $region16
        $region15: #{tpu_custom_call.1} parent=11 // pred_region
          _
        $region16: #{tpu_custom_call.1} parent=11 // pred_fallthru
          _
        // Predicated region
        $region17: #{tpu_custom_call.1} parent=11 // pred_check
          %p375 = pneg %p121
        $region18: #{tpu_custom_call.1} parent=11 // pred_check_branch
          %377 = sbr.rel (%p375) target = $region20
        $region19: #{tpu_custom_call.1} parent=11 // pred_region
          _
        $region20: #{tpu_custom_call.1} parent=11 // pred_fallthru
          _
        // Predicated region
        $region21: #{tpu_custom_call.1} parent=11 // pred_check
          %p378 = pneg %p142
        $region22: #{tpu_custom_call.1} parent=11 // pred_check_branch
          %380 = sbr.rel (%p378) target = $region24
        $region23: #{tpu_custom_call.1} parent=11 // pred_region
          _
        $region24: #{tpu_custom_call.1} parent=11 // pred_fallthru
          _
        // Predicated region
        $region25: #{tpu_custom_call.1} parent=11 // pred_check
          %p381 = pneg %p163
        $region26: #{tpu_custom_call.1} parent=11 // pred_check_branch
          %383 = sbr.rel (%p381) target = $region28
        $region27: #{tpu_custom_call.1} parent=11 // pred_region
          _
        $region28: #{tpu_custom_call.1} parent=11 // pred_fallthru
          _
        // Predicated region
        $region29: #{tpu_custom_call.1} parent=11 // pred_check
          %p384 = pneg %p184
        $region30: #{tpu_custom_call.1} parent=11 // pred_check_branch
          %386 = sbr.rel (%p384) target = $region32
        $region31: #{tpu_custom_call.1} parent=11 // pred_region
          _
        $region32: #{tpu_custom_call.1} parent=11 // pred_fallthru
          _
        // Predicated region
        $region33: #{tpu_custom_call.1} parent=11 // pred_check
          %p387 = pneg %p205
        $region34: #{tpu_custom_call.1} parent=11 // pred_check_branch
          %389 = sbr.rel (%p387) target = $region36
        $region35: #{tpu_custom_call.1} parent=11 // pred_region
          _
        $region36: #{tpu_custom_call.1} parent=11 // pred_fallthru
          _
        // Predicated region
        $region37: #{tpu_custom_call.1} parent=11 // pred_check
          %p390 = pneg %p226
        $region38: #{tpu_custom_call.1} parent=11 // pred_check_branch
          %392 = sbr.rel (%p390) target = $region40
        $region39: #{tpu_custom_call.1} parent=11 // pred_region
          %394 = vsyncadd [#allocation14], 0
          %s395 = sshll.u32 %s8, 4
          %s396 = int_to_ptr.hbm [resolvable:$true] %s395
          %s397 = sshll.u32 [#allocation13], 4
          %s398 = int_to_ptr.vmem [resolvable:$true] %s397
          %403 = dma.hbm_to_vmem [thread:$0]  %s396, 256, %s398, [#allocation14], 64, 64, 4
        $region40: #{tpu_custom_call.1} parent=11 // pred_fallthru
          _
        // Predicated region
        $region41: #{tpu_custom_call.1} parent=11 // pred_check
          %p404 = pneg %p247
        $region42: #{tpu_custom_call.1} parent=11 // pred_check_branch
          %406 = sbr.rel (%p404) target = $region44
        $region43: #{tpu_custom_call.1} parent=11 // pred_region
          _
        $region44: #{tpu_custom_call.1} parent=11 // pred_fallthru
          _
        // Predicated region
        $region45: #{tpu_custom_call.1} parent=11 // pred_check
          %p407 = pneg %p268
        $region46: #{tpu_custom_call.1} parent=11 // pred_check_branch
          %409 = sbr.rel (%p407) target = $region48
        $region47: #{tpu_custom_call.1} parent=11 // pred_region
          _
        $region48: #{tpu_custom_call.1} parent=11 // pred_fallthru
          _
        // Predicated region
        $region49: #{tpu_custom_call.1} parent=11 // pred_check
          %p410 = pneg %p289
        $region50: #{tpu_custom_call.1} parent=11 // pred_check_branch
          %412 = sbr.rel (%p410) target = $region52
        $region51: #{tpu_custom_call.1} parent=11 // pred_region
          _
        $region52: #{tpu_custom_call.1} parent=11 // pred_fallthru
          _
        // Predicated region
        $region53: #{tpu_custom_call.1} parent=11 // pred_check
          %p413 = pneg %p310
        $region54: #{tpu_custom_call.1} parent=11 // pred_check_branch
          %415 = sbr.rel (%p413) target = $region56
        $region55: #{tpu_custom_call.1} parent=11 // pred_region
          _
        $region56: #{tpu_custom_call.1} parent=11 // pred_fallthru
          _
        // Predicated region
        $region57: #{tpu_custom_call.1} parent=11 // pred_check
          %p416 = pneg %p331
        $region58: #{tpu_custom_call.1} parent=11 // pred_check_branch
          %418 = sbr.rel (%p416) target = $region60
        $region59: #{tpu_custom_call.1} parent=11 // pred_region
          _
        $region60: #{tpu_custom_call.1} parent=11 // pred_fallthru
          _
      $region12: #{tpu_custom_call.1} parent=5 // pred_fallthru
        _
      %p419 = scmp.lt.s32.totalorder %s27, 2
      // Predicated region
      $region61: #{tpu_custom_call.1} parent=5 // pred_check
        %p420 = pneg %p419
      $region62: #{tpu_custom_call.1} parent=5 // pred_check_branch
        %422 = sbr.rel (%p420) target = $region64
      $region63: #{tpu_custom_call.1} parent=5 // pred_region
        // Predicated region
        $region65: #{tpu_custom_call.1} parent=63 // pred_check
          %p423 = pneg %p47
        $region66: #{tpu_custom_call.1} parent=63 // pred_check_branch
          %425 = sbr.rel (%p423) target = $region68
        $region67: #{tpu_custom_call.1} parent=63 // pred_region
          %s426 = sand.u32 %s37, 1
          %s427 = scalar_lea.sflag [#allocation11], %s426
          %s428 = sand.u32 %s37, 1
          %s429 = scalar_lea.vmem [#allocation10], %s428
          %431 = vsyncadd %s427, 0
          %s432 = scalar_lea.hbm %s0, %s27
          %s434 = sshll.u32 %s432, 4
          %s435 = int_to_ptr.hbm [resolvable:$true] %s434
          %s436 = sshll.u32 %s429, 4
          %s437 = int_to_ptr.vmem [resolvable:$true] %s436
          %439 = dma.hbm_to_vmem [thread:$0]  %s435, 16, %s437, %s427
        $region68: #{tpu_custom_call.1} parent=63 // pred_fallthru
          _
        // Predicated region
        $region69: #{tpu_custom_call.1} parent=63 // pred_check
          %p440 = pneg %p73
        $region70: #{tpu_custom_call.1} parent=63 // pred_check_branch
          %442 = sbr.rel (%p440) target = $region72
        $region71: #{tpu_custom_call.1} parent=63 // pred_region
          %p443 = scmp.lt.s32.totalorder %s27, 1
          %s444 = scalar_select %p443, %s27, 1
          %s445 = smul.addr %s444, 8
          %s446 = scalar_lea.vmem %s1, %s445
        $region72: #{tpu_custom_call.1} parent=63 // pred_fallthru
          _
      $region64: #{tpu_custom_call.1} parent=5 // pred_fallthru
        _
      %p447 = scmp.le.s32.totalorder 1, %s27
      %p448 = scmp.lt.s32.totalorder %s27, 3
      %p449 = pnand %p447, %p448
      %p450 = pneg %p449
      // Predicated region
      $region73: #{tpu_custom_call.1} parent=5 // pred_check
        _
      $region74: #{tpu_custom_call.1} parent=5 // pred_check_branch
        %452 = sbr.rel (%p449) target = $region76
      $region75: #{tpu_custom_call.1} parent=5 // pred_region
        %s453 = ssub.s32 %s27, 1
        %s454 = sand.u32 %s40, 1
        %s455 = scalar_lea.sflag [#allocation11], %s454
        %s456 = sand.u32 %s40, 1
        %s457 = scalar_lea.vmem [#allocation10], %s456
        // Predicated region
        $region77: #{tpu_custom_call.1} parent=75 // pred_check
          %p458 = pneg %p53
        $region78: #{tpu_custom_call.1} parent=75 // pred_check_branch
          %460 = sbr.rel (%p458) target = $region80
        $region79: #{tpu_custom_call.1} parent=75 // pred_region
          %462 = dma.done %s455, 16
        $region80: #{tpu_custom_call.1} parent=75 // pred_fallthru
          _
        // Predicated region
        $region81: #{tpu_custom_call.1} parent=75 // pred_check
          %p463 = pneg %p226
        $region82: #{tpu_custom_call.1} parent=75 // pred_check_branch
          %465 = sbr.rel (%p463) target = $region84
        $region83: #{tpu_custom_call.1} parent=75 // pred_region
          %467 = dma.done [#allocation14], 256
        $region84: #{tpu_custom_call.1} parent=75 // pred_fallthru
          _
        %s468 = sand.u32 %s40, 1
        %s469 = scalar_lea.sflag [#allocation11], %s468
        %s470 = sand.u32 %s40, 1
        %s471 = scalar_lea.vmem [#allocation10], %s470
        %p472 = pneg %p53
        %p473 = pneg %p50
        %p474 = scmp.lt.s32.totalorder %s32, 1
        %s475 = scalar_select %p474, %s32, 1
        %s476 = smul.addr %s475, 8
        %s477 = scalar_lea.vmem %s1, %s476
        %p478 = pneg %p79
        %p479 = pneg %p76
        %p480 = pneg %p100
        %p481 = pneg %p97
        %p482 = pneg %p121
        %p483 = pneg %p118
        %p484 = pneg %p142
        %p485 = pneg %p139
        %p486 = pneg %p163
        %p487 = pneg %p160
        %p488 = pneg %p184
        %p489 = pneg %p181
        %p490 = pneg %p205
        %p491 = pneg %p202
        %p492 = pneg %p226
        %p493 = pneg %p223
        %p494 = pneg %p247
        %p495 = pneg %p244
        %p496 = pneg %p268
        %p497 = pneg %p265
        %p498 = pneg %p289
        %p499 = pneg %p286
        %p500 = pneg %p310
        %p501 = pneg %p307
        %p502 = pneg %p331
        %p503 = pneg %p328
        %p504 = pneg %p357
        %p505 = pneg %p354
        %s506 = sand.u32 %s344, 1
        %s507 = scalar_lea.sflag [#allocation12], %s506
        %s508 = sand.u32 %s344, 1
        %s509 = smul.addr %s508, 8
        %s510 = scalar_lea.vmem [#allocation15], %s509
        %p511 = scmp.lt.s32.totalorder %s32, 1
        %s512 = scalar_select %p511, %s32, 1
        %s513 = smul.addr %s512, 8
        %s514 = scalar_lea.vmem %s1, %s513
        %v516 = vld [vmem:[%s514] sm:$0xff]
        %v517 = vld [vmem:[%s457] sm:$0x1]
        %v518 = vsub.f32 1.0, %v517
        %v519 = vmul.f32 %v518, -3.4028235e+38
        %v520 = vpack.c.bf16 %v516, %v516
        %v521 = vld [vmem:[%s2] sm:$0xf]
        %v522 = vld [vmem:[%s2 + $0x4] sm:$0xf]
        %v523 = vld [vmem:[%s2 + $0x8] sm:$0xf]
        %v524 = vld [vmem:[%s2 + $0xc] sm:$0xf]
        %v525 = vld [vmem:[%s3] sm:$0x1]
        %v527 = vperm.slane %v525, 0
        %v533 = vunpack.c.l.b16 %v521
        %v534 = vunpack.c.l.b16 %v522
        %v535 = vunpack.c.l.b16 %v523
        %v536 = vunpack.c.l.b16 %v524
        %v537 = vpack.c.b16 %v534, %v533
        %v538 = vpack.c.b16 %v536, %v535
        %vm541 = vcmask 261120
        %v543 = vsel %vm541, %v520, 0
        %545 = vmatpush.bf16.msra.mxu0 0
        %546 = vmatpush.bf16.msra.mxu0 0
        %547 = vmatpush.bf16.msra.mxu0 0
        %548 = vmatpush.bf16.msra.mxu0 0
        %549 = vmatpush.bf16.msra.mxu0 0
        %550 = vmatpush.bf16.msra.mxu0 0
        %551 = vmatpush.bf16.msra.mxu0 %v538
        %552 = vmatpush.bf16.msra.mxu0 %v537
        %553 = vmatmul.bf16.gmra.mxu0 %v543
        %v554 = vpop.f32.mrf.mxu0
        %v555 = vadd.f32 %v527, %v554
        %v556 = vpop.f32.mrf.mxu0
        %557 = vdwg.mxu0
        %v558 = vpack.c.bf16 %v555, %v555
        %vm559 = vcmask 781312
        %560 = vst.msk [vmem:[#allocation2] sm:$0xf] %vm559, %v558
        %v561 = vld [vmem:[#allocation2] sm:$0xf]
        %vm562 = vcmask 60416
        %563 = vst.msk [vmem:[#allocation3] sm:$0xf] %vm562, %v561
        %v564 = vld [vmem:[#allocation2] sm:$0xf]
        %566 = vrot.lane.b32.xlu0 %v564, 96
        %v567 = vpop.permute.xlu0 %566
        %569 = vst.msk [vmem:[#allocation4] sm:$0xf] %vm562, %v567
        %v570 = vld [vmem:[#allocation2] sm:$0xf]
        %572 = vrot.lane.b32.xlu0 %v570, 64
        %v573 = vpop.permute.xlu0 %572
        %575 = vst.msk [vmem:[#allocation5] sm:$0xf] %vm562, %v573
        %v576 = vld [vmem:[#allocation2] sm:$0xf]
        %578 = vrot.lane.b32.xlu0 %v576, 120
        %v579 = vpop.permute.xlu0 %578
        %s581 = scalar_lea.vmem [#allocation3], 4
        %582 = vst.msk [vmem:[%s581] sm:$0xf] %vm562, %v579
        %v583 = vld [vmem:[#allocation2] sm:$0xf]
        %585 = vrot.lane.b32.xlu0 %v583, 88
        %v586 = vpop.permute.xlu0 %585
        %s588 = scalar_lea.vmem [#allocation4], 4
        %589 = vst.msk [vmem:[%s588] sm:$0xf] %vm562, %v586
        %v590 = vld [vmem:[#allocation2] sm:$0xf]
        %592 = vrot.lane.b32.xlu0 %v590, 56
        %v593 = vpop.permute.xlu0 %592
        %s595 = scalar_lea.vmem [#allocation5], 4
        %596 = vst.msk [vmem:[%s595] sm:$0xf] %vm562, %v593
        %v597 = vld [vmem:[#allocation2] sm:$0xf]
        %599 = vrot.lane.b32.xlu0 %v597, 112
        %v600 = vpop.permute.xlu0 %599
        %s602 = scalar_lea.vmem [#allocation3], 8
        %603 = vst.msk [vmem:[%s602] sm:$0xf] %vm562, %v600
        %v604 = vld [vmem:[#allocation2] sm:$0xf]
        %606 = vrot.lane.b32.xlu0 %v604, 80
        %v607 = vpop.permute.xlu0 %606
        %s609 = scalar_lea.vmem [#allocation4], 8
        %610 = vst.msk [vmem:[%s609] sm:$0xf] %vm562, %v607
        %v611 = vld [vmem:[#allocation2] sm:$0xf]
        %613 = vrot.lane.b32.xlu0 %v611, 48
        %v614 = vpop.permute.xlu0 %613
        %s616 = scalar_lea.vmem [#allocation5], 8
        %617 = vst.msk [vmem:[%s616] sm:$0xf] %vm562, %v614
        %v618 = vld [vmem:[#allocation2] sm:$0xf]
        %620 = vrot.lane.b32.xlu0 %v618, 104
        %v621 = vpop.permute.xlu0 %620
        %s623 = scalar_lea.vmem [#allocation3], 12
        %624 = vst.msk [vmem:[%s623] sm:$0xf] %vm562, %v621
        %v625 = vld [vmem:[#allocation2] sm:$0xf]
        %627 = vrot.lane.b32.xlu0 %v625, 72
        %v628 = vpop.permute.xlu0 %627
        %s630 = scalar_lea.vmem [#allocation4], 12
        %631 = vst.msk [vmem:[%s630] sm:$0xf] %vm562, %v628
        %v632 = vld [vmem:[#allocation2] sm:$0xf]
        %634 = vrot.lane.b32.xlu0 %v632, 40
        %v635 = vpop.permute.xlu0 %634
        %s637 = scalar_lea.vmem [#allocation5], 12
        %638 = vst.msk [vmem:[%s637] sm:$0xf] %vm562, %v635
        loop: start=0, step=1, limit=4
        $region85: #{tpu_custom_call.1} parent=75 // loop_pre_header
          _
        $region86: #{tpu_custom_call.1} parent=75 // loop_header
          %s640 = sphi 0, %s644
          %p641 = scmp.ge.s32.totalorder %s640, 4
        $region87: #{tpu_custom_call.1} parent=75 // loop_header_branch
          %643 = sbr.rel (%p641) target = $region91
        $region88: #{tpu_custom_call.1} parent=75 // loop_body
          %s645 = smul.addr %s640, 4
          %s646 = scalar_lea.vmem [#allocation4], %s645
          %v647 = vld [vmem:[%s646] sm:$0xf]
          %s648 = smul.addr %s640, 4
          %s649 = scalar_lea.vmem [#allocation5], %s648
          %v650 = vld [vmem:[%s649] sm:$0xf]
          %s651 = sadd.s32 0, %s640
          %s652 = smul.addr %s651, 4
          %s653 = scalar_lea.vmem [#allocation3], %s652
          %v654 = vld [vmem:[%s653] sm:$0xf]
          %vm655 = vcmask 64512
          %v657 = vsel %vm655, %v654, 0
          %v660 = vsel %vm655, %v647, 0
          %662 = vmatpush.bf16.xpose.msra.mxu0 0
          %663 = vmatpush.bf16.xpose.msra.mxu0 0
          %664 = vmatpush.bf16.xpose.msra.mxu0 0
          %665 = vmatpush.bf16.xpose.msra.mxu0 0
          %666 = vmatpush.bf16.xpose.msra.mxu0 0
          %667 = vmatpush.bf16.xpose.msra.mxu0 0
          %668 = vmatpush.bf16.xpose.msra.mxu0 0
          %669 = vmatpush.bf16.xpose.msra.mxu0 %v660
          %670 = vmatmul.bf16.gmra.mxu0 %v657
          %v671 = vpop.f32.mrf.mxu0
          %v672 = vadd.f32 0.0, %v671
          %v673 = vpop.f32.mrf.mxu0
          %674 = vdwg.mxu0
          %v675 = vmul.f32 %v672, 0.35355338
          %v677 = vperm.slane %v519, 0
          %v679 = vadd.f32 %v675, %v677
          %v680 = vsel %vm655, %v679, -inf
          %681 = vmax.xlane.f32.xlu0 %v680
          %v682 = vpop.xlane.xlu0 %681
          %v683 = vsub.f32 %v679, %v682
          %v684 = vmul.f32 %v683, 1.442695
          %v685 = vpow.pop %v684
          %v686 = vsel %vm655, %v685, 0.0
          %687 = vadd.xlane.f32.xlu0 %v686
          %v688 = vpop.xlane.xlu0 %687
          %v689 = vrcp.pop %v688
          %v690 = vmul.f32 %v685, %v689
          %v691 = vpack.c.bf16 %v690, %v690
          %v693 = vsel %vm655, %v691, 0
          %vm695 = vcmask 1043456
          %v697 = vsel %vm695, %v650, 0
          %699 = vmatpush.bf16.msra.mxu0 0
          %700 = vmatpush.bf16.msra.mxu0 0
          %701 = vmatpush.bf16.msra.mxu0 0
          %702 = vmatpush.bf16.msra.mxu0 0
          %703 = vmatpush.bf16.msra.mxu0 0
          %704 = vmatpush.bf16.msra.mxu0 0
          %705 = vmatpush.bf16.msra.mxu0 0
          %706 = vmatpush.bf16.msra.mxu0 %v697
          %707 = vmatmul.bf16.gmra.mxu0 %v693
          %v708 = vpop.f32.mrf.mxu0
          %v709 = vadd.f32 0.0, %v708
          %v710 = vpop.f32.mrf.mxu0
          %711 = vdwg.mxu0
          %v712 = vpack.c.bf16 %v709, %v709
          %s713 = smul.addr %s651, 4
          %s714 = scalar_lea.vmem [#allocation6], %s713
          %715 = vst.msk [vmem:[%s714] sm:$0xf] %vm562, %v712
        $region89: #{tpu_custom_call.1} parent=75 // loop_footer
          %s644 = sadd.s32 1, %s640
        $region90: #{tpu_custom_call.1} parent=75 // loop_footer_branch
          %639 = sbr.rel target = $region86
        $region91: #{tpu_custom_call.1} parent=75 // loop_exit
          _
        %v716 = vld [vmem:[#allocation6] sm:$0xf]
        %717 = vst.msk [vmem:[#allocation7] sm:$0xf] %vm562, %v716
        %s718 = scalar_lea.vmem [#allocation6], 4
        %v719 = vld [vmem:[%s718] sm:$0xf]
        %721 = vrot.lane.b32.xlu0 %v719, 8
        %v722 = vpop.permute.xlu0 %721
        %vm724 = vcmask 126016
        %725 = vst.msk [vmem:[#allocation7] sm:$0xf] %vm724, %v722
        %s726 = scalar_lea.vmem [#allocation6], 8
        %v727 = vld [vmem:[%s726] sm:$0xf]
        %729 = vrot.lane.b32.xlu0 %v727, 16
        %v730 = vpop.permute.xlu0 %729
        %vm732 = vcmask 191616
        %733 = vst.msk [vmem:[#allocation7] sm:$0xf] %vm732, %v730
        %s734 = scalar_lea.vmem [#allocation6], 12
        %v735 = vld [vmem:[%s734] sm:$0xf]
        %737 = vrot.lane.b32.xlu0 %v735, 24
        %v738 = vpop.permute.xlu0 %737
        %vm740 = vcmask 257216
        %741 = vst.msk [vmem:[#allocation7] sm:$0xf] %vm740, %v738
        %v742 = vld [vmem:[#allocation7] sm:$0xf]
        %v743 = vld [vmem:[%s4] sm:$0xf]
        %v744 = vld [vmem:[%s4 + $0x4] sm:$0xf]
        %v745 = vld [vmem:[%s4 + $0x8] sm:$0xf]
        %v746 = vld [vmem:[%s4 + $0xc] sm:$0xf]
        %v747 = vld [vmem:[%s5] sm:$0x1]
        %v749 = vperm.slane %v747, 0
        %v755 = vunpack.c.l.b16 %v743
        %v756 = vunpack.c.l.b16 %v744
        %v757 = vunpack.c.l.b16 %v745
        %v758 = vunpack.c.l.b16 %v746
        %v759 = vpack.c.b16 %v756, %v755
        %v760 = vpack.c.b16 %v758, %v757
        %v764 = vsel %vm541, %v742, 0
        %766 = vmatpush.bf16.msra.mxu0 0
        %767 = vmatpush.bf16.msra.mxu0 0
        %768 = vmatpush.bf16.msra.mxu0 0
        %769 = vmatpush.bf16.msra.mxu0 0
        %770 = vmatpush.bf16.msra.mxu0 0
        %771 = vmatpush.bf16.msra.mxu0 0
        %772 = vmatpush.bf16.msra.mxu0 %v760
        %773 = vmatpush.bf16.msra.mxu0 %v759
        %774 = vmatmul.bf16.gmra.mxu0 %v764
        %v775 = vpop.f32.mrf.mxu0
        %v776 = vadd.f32 %v749, %v775
        %v777 = vpop.f32.mrf.mxu0
        %778 = vdwg.mxu0
        %v779 = vadd.f32 %v776, %v516
        %v780 = vld [vmem:[%s6] sm:$0x1]
        %v781 = vld [vmem:[%s7] sm:$0x1]
        %v782 = vsel %vm541, %v779, 0.0
        %783 = vadd.xlane.f32.xlu0 %v782
        %v784 = vpop.xlane.xlu0 %783
        %v785 = vrcp.pop 32.0
        %v786 = vmul.f32 32.0, %v785
        %v787 = vsub.f32 1.0, %v786
        %v788 = vmul.f32 %v785, %v787
        %v789 = vadd.f32 %v785, %v788
        %vm790 = vweird.f32 %v785
        %v791 = vsel %vm790, %v785, %v789
        %v792 = vmul.f32 %v784, %v791
        %v793 = vsub.f32 %v779, %v792
        %v794 = vmul.f32 %v793, %v793
        %v795 = vsel %vm541, %v794, 0.0
        %796 = vadd.xlane.f32.xlu0 %v795
        %v797 = vpop.xlane.xlu0 %796
        %v798 = vmul.f32 %v797, %v791
        %v799 = vadd.f32 %v798, 1e-12
        %v800 = vrsqrt.pop %v799
        %v801 = vmul.f32 %v800, %v799
        %v802 = vmul.f32 %v801, %v800
        %v803 = vmul.f32 0.5, %v802
        %v804 = vsub.f32 1.5, %v803
        %v805 = vmul.f32 %v800, %v804
        %vm806 = vweird.f32 %v799
        %vm807 = vweird.f32 %v800
        %vm808 = vmor %vm806, %vm807
        %v809 = vsel %vm808, %v800, %v805
        %v810 = vmul.f32 %v793, %v809
        %v812 = vperm.slane %v780, 0
        %v814 = vmul.f32 %v810, %v812
        %v816 = vperm.slane %v781, 0
        %v818 = vadd.f32 %v814, %v816
        %819 = vst.msk [vmem:[#allocation8] sm:$0xff] %vm541, %v818
        %v820 = vld [vmem:[#allocation8] sm:$0xff]
        %v821 = vpack.c.bf16 %v820, %v820
        %v822 = vld [vmem:[#allocation13] sm:$0xf]
        %v823 = vld [vmem:[#allocation13 + $0x4] sm:$0xf]
        %v824 = vld [vmem:[#allocation13 + $0x8] sm:$0xf]
        %v825 = vld [vmem:[#allocation13 + $0xc] sm:$0xf]
        %v826 = vld [vmem:[%s9] sm:$0x1]
        %v828 = vperm.slane %v826, 0
        %v834 = vunpack.c.l.b16 %v822
        %v835 = vunpack.c.l.b16 %v823
        %v836 = vunpack.c.l.b16 %v824
        %v837 = vunpack.c.l.b16 %v825
        %v838 = vpack.c.b16 %v835, %v834
        %v839 = vpack.c.b16 %v837, %v836
        %v843 = vsel %vm541, %v821, 0
        %845 = vmatpush.bf16.msra.mxu0 0
        %846 = vmatpush.bf16.msra.mxu0 0
        %847 = vmatpush.bf16.msra.mxu0 0
        %848 = vmatpush.bf16.msra.mxu0 0
        %849 = vmatpush.bf16.msra.mxu0 0
        %850 = vmatpush.bf16.msra.mxu0 0
        %851 = vmatpush.bf16.msra.mxu0 %v839
        %852 = vmatpush.bf16.msra.mxu0 %v838
        %853 = vmatmul.bf16.gmra.mxu0 %v843
        %v854 = vpop.f32.mrf.mxu0
        %v855 = vadd.f32 %v828, %v854
        %v856 = vpop.f32.mrf.mxu0
        %857 = vdwg.mxu0
        %v858 = vmul.f32 %v855, 0.5
        %v859 = vmul.f32 %v855, 0.044715
        %v860 = vmul.f32 %v859, %v855
        %v861 = vmul.f32 %v860, %v855
        %v862 = vadd.f32 %v855, %v861
        %v863 = vmul.f32 %v862, 0.7978846
        %v864 = vtanh.pop %v863
        %v865 = vadd.f32 %v864, 1.0
        %v866 = vmul.f32 %v858, %v865
        %v867 = vpack.c.bf16 %v866, %v866
        %v868 = vld [vmem:[%s10] sm:$0xf]
        %v869 = vld [vmem:[%s10 + $0x4] sm:$0xf]
        %v870 = vld [vmem:[%s10 + $0x8] sm:$0xf]
        %v871 = vld [vmem:[%s10 + $0xc] sm:$0xf]
        %v872 = vld [vmem:[%s10 + $0x10] sm:$0xf]
        %v873 = vld [vmem:[%s10 + $0x14] sm:$0xf]
        %v874 = vld [vmem:[%s10 + $0x18] sm:$0xf]
        %v875 = vld [vmem:[%s10 + $0x1c] sm:$0xf]
        %v884 = vunpack.c.l.b16 %v868
        %v885 = vunpack.c.l.b16 %v869
        %v886 = vunpack.c.l.b16 %v870
        %v887 = vunpack.c.l.b16 %v871
        %v888 = vunpack.c.l.b16 %v872
        %v889 = vunpack.c.l.b16 %v873
        %v890 = vunpack.c.l.b16 %v874
        %v891 = vunpack.c.l.b16 %v875
        %v892 = vpack.c.b16 %v885, %v884
        %v893 = vpack.c.b16 %v887, %v886
        %v894 = vpack.c.b16 %v889, %v888
        %v895 = vpack.c.b16 %v891, %v890
        %vm900 = vcmask 523264
        %v902 = vsel %vm900, %v867, 0
        %904 = vmatpush.bf16.msra.mxu0 0
        %905 = vmatpush.bf16.msra.mxu0 0
        %906 = vmatpush.bf16.msra.mxu0 0
        %907 = vmatpush.bf16.msra.mxu0 0
        %908 = vmatpush.bf16.msra.mxu0 %v895
        %909 = vmatpush.bf16.msra.mxu0 %v894
        %910 = vmatpush.bf16.msra.mxu0 %v893
        %911 = vmatpush.bf16.msra.mxu0 %v892
        %912 = vmatmul.bf16.gmra.mxu0 %v902
        %v913 = vpop.f32.mrf.mxu0
        %v914 = vadd.f32 0.0, %v913
        %v915 = vpop.f32.mrf.mxu0
        %916 = vdwg.mxu0
        %917 = vst.msk [vmem:[#allocation9] sm:$0xff] %vm541, %v914
        %v918 = vld [vmem:[#allocation9] sm:$0xff]
        %v919 = vld [vmem:[%s11] sm:$0x1]
        %v921 = vperm.slane %v919, 0
        %v923 = vadd.f32 %v918, %v921
        %v924 = vld [vmem:[#allocation8] sm:$0xff]
        %v925 = vadd.f32 %v923, %v924
        %v926 = vld [vmem:[%s12] sm:$0x1]
        %v927 = vld [vmem:[%s13] sm:$0x1]
        %v928 = vsel %vm541, %v925, 0.0
        %929 = vadd.xlane.f32.xlu0 %v928
        %v930 = vpop.xlane.xlu0 %929
        %v931 = vmul.f32 %v930, %v791
        %v932 = vsub.f32 %v925, %v931
        %v933 = vmul.f32 %v932, %v932
        %v934 = vsel %vm541, %v933, 0.0
        %935 = vadd.xlane.f32.xlu0 %v934
        %v936 = vpop.xlane.xlu0 %935
        %v937 = vmul.f32 %v936, %v791
        %v938 = vadd.f32 %v937, 1e-12
        %v939 = vrsqrt.pop %v938
        %v940 = vmul.f32 %v939, %v938
        %v941 = vmul.f32 %v940, %v939
        %v942 = vmul.f32 0.5, %v941
        %v943 = vsub.f32 1.5, %v942
        %v944 = vmul.f32 %v939, %v943
        %vm945 = vweird.f32 %v938
        %vm946 = vweird.f32 %v939
        %vm947 = vmor %vm945, %vm946
        %v948 = vsel %vm947, %v939, %v944
        %v949 = vmul.f32 %v932, %v948
        %v951 = vperm.slane %v926, 0
        %v953 = vmul.f32 %v949, %v951
        %v955 = vperm.slane %v927, 0
        %v957 = vadd.f32 %v953, %v955
        %958 = vst.msk [vmem:[%s510] sm:$0xff] %vm541, %v957
        %s959 = sand.u32 %s344, 1
        %s960 = scalar_lea.sflag [#allocation12], %s959
        %s961 = sand.u32 %s344, 1
        %s962 = smul.addr %s961, 8
        %s963 = scalar_lea.vmem [#allocation15], %s962
        // Predicated region
        $region92: #{tpu_custom_call.1} parent=75 // pred_check
          %p964 = pneg %p354
        $region93: #{tpu_custom_call.1} parent=75 // pred_check_branch
          %966 = sbr.rel (%p964) target = $region95
        $region94: #{tpu_custom_call.1} parent=75 // pred_region
          %968 = vsyncadd %s960, 0
          %s969 = smul.addr %s32, 8
          %s970 = scalar_lea.hbm %s14, %s969
          %s972 = sshll.u32 %s963, 4
          %s973 = int_to_ptr.vmem [resolvable:$true] %s972
          %s974 = sshll.u32 %s970, 4
          %s975 = int_to_ptr.hbm [resolvable:$true] %s974
          %977 = dma.vmem_to_hbm [thread:$0]  %s973, 128, %s975, %s960
        $region95: #{tpu_custom_call.1} parent=75 // pred_fallthru
          _
      $region76: #{tpu_custom_call.1} parent=5 // pred_fallthru
        _
      %p978 = scmp.le.s32.totalorder 2, %s27
      // Predicated region
      $region96: #{tpu_custom_call.1} parent=5 // pred_check
        %p979 = pneg %p978
      $region97: #{tpu_custom_call.1} parent=5 // pred_check_branch
        %981 = sbr.rel (%p979) target = $region99
      $region98: #{tpu_custom_call.1} parent=5 // pred_region
        %s982 = ssub.s32 %s27, 2
        // Predicated region
        $region100: #{tpu_custom_call.1} parent=98 // pred_check
          %p983 = pneg %p360
        $region101: #{tpu_custom_call.1} parent=98 // pred_check_branch
          %985 = sbr.rel (%p983) target = $region103
        $region102: #{tpu_custom_call.1} parent=98 // pred_region
          %s986 = sand.u32 %s345, 1
          %s987 = scalar_lea.sflag [#allocation12], %s986
          %s988 = sand.u32 %s345, 1
          %s989 = smul.addr %s988, 8
          %s990 = scalar_lea.vmem [#allocation15], %s989
          %992 = dma.done %s987, 128
        $region103: #{tpu_custom_call.1} parent=98 // pred_fallthru
          _
      $region99: #{tpu_custom_call.1} parent=5 // pred_fallthru
        _
    $region6: #{tpu_custom_call.1} parent=1 // loop_footer
      %s31 = sadd.s32 1, %s27
    $region7: #{tpu_custom_call.1} parent=1 // loop_footer_branch
      %26 = sbr.rel target = $region3
    $region8: #{tpu_custom_call.1} parent=1 // loop_exit
      _
    %993 = vsyncpa [#allocation11], 1
    %s994 = scalar_lea.sflag [#allocation11], 1
    %995 = vsyncpa %s994, 1
    %996 = vsyncpa [#allocation14], 1
    %997 = vsyncpa [#allocation12], 1
    %s998 = scalar_lea.sflag [#allocation12], 1
    %999 = vsyncpa %s998, 1

// kernel: tpu_custom_call.1
$region0: #{tpu_custom_call.1}
  #allocation0 [shape = 'u32[]', space=smem, size = 0x4, offset = 0x4, fixed_abs, tag = 'smem constant byte address 0x4 - core index']
  #allocation1 [shape = 'u32[72,128]{1,0:T(1,128)}', space=vmem, size = 0x9000, scoped, tag = 'internal scratch']
  #allocation2 [shape = 'bf16[8,96]{1,0:T(8,128)(2,1)}', space=vmem, size = 0x800, scoped, tag = 'scratch operand']
  #allocation3 [shape = 'bf16[4,8,8]{2,1,0:T(8,128)(2,1)}', space=vmem, size = 0x2000, scoped, tag = 'scratch operand']
  #allocation4 [shape = 'bf16[4,8,8]{2,1,0:T(8,128)(2,1)}', space=vmem, size = 0x2000, scoped, tag = 'scratch operand']
  #allocation5 [shape = 'bf16[4,8,8]{2,1,0:T(8,128)(2,1)}', space=vmem, size = 0x2000, scoped, tag = 'scratch operand']
  #allocation6 [shape = 'bf16[4,8,8]{2,1,0:T(8,128)(2,1)}', space=vmem, size = 0x2000, scoped, tag = 'scratch operand']
  #allocation7 [shape = 'bf16[8,32]{1,0:T(8,128)(2,1)}', space=vmem, size = 0x800, scoped, tag = 'scratch operand']
  #allocation8 [shape = 'f32[8,32]{1,0:T(8,128)}', space=vmem, size = 0x1000, scoped, tag = 'scratch operand']
  #allocation9 [shape = 'f32[8,32]{1,0:T(8,128)}', space=vmem, size = 0x1000, scoped, tag = 'scratch operand']
  %s0 = inlined_call_operand.hbm [shape: f32[2,1,8], index: 0, kind: input, shape index: {}]
  %s1 = inlined_call_operand.vmem [shape: f32[2,8,32], index: 1, kind: input, shape index: {}]
  %s2 = inlined_call_operand.vmem [shape: bf16[32,96], index: 2, kind: input, shape index: {}]
  %s3 = inlined_call_operand.vmem [shape: f32[1,96], index: 3, kind: input, shape index: {}]
  %s4 = inlined_call_operand.vmem [shape: bf16[32,32], index: 4, kind: input, shape index: {}]
  %s5 = inlined_call_operand.vmem [shape: f32[1,32], index: 5, kind: input, shape index: {}]
  %s6 = inlined_call_operand.vmem [shape: f32[1,32], index: 6, kind: input, shape index: {}]
  %s7 = inlined_call_operand.vmem [shape: f32[1,32], index: 7, kind: input, shape index: {}]
  %s8 = inlined_call_operand.hbm [shape: bf16[32,64], index: 8, kind: input, shape index: {}]
  %s9 = inlined_call_operand.vmem [shape: f32[1,64], index: 9, kind: input, shape index: {}]
  %s10 = inlined_call_operand.vmem [shape: bf16[64,32], index: 10, kind: input, shape index: {}]
  %s11 = inlined_call_operand.vmem [shape: f32[1,32], index: 11, kind: input, shape index: {}]
  %s12 = inlined_call_operand.vmem [shape: f32[1,32], index: 12, kind: input, shape index: {}]
  %s13 = inlined_call_operand.vmem [shape: f32[1,32], index: 13, kind: input, shape index: {}]
  %s14 = inlined_call_operand.hbm [shape: f32[2,8,32], index: 14, kind: output, shape index: {}]
  %s15 = sld [smem:[#allocation0]]
  $region104: #{tpu_custom_call.1} parent=0
    _
  %s17 = ssub.s32 1, %s15
  %s18 = scalar_select 0, %s17, %s15
  $region1: #{tpu_custom_call.1} parent=0
    #allocation10 [shape = 'u8[1024]{0}', space=vmem, size = 0x400, scoped, tag = 'input window, operand 0']
    #allocation11 [shape = 's32[2]{0}', space=sflag, size = 0x8, scoped, tag = 'scoped memory for tpu_custom_call.1']
    #allocation12 [shape = 's32[2]{0}', space=sflag, size = 0x8, scoped, tag = 'scoped memory for tpu_custom_call.1']
    #allocation13 [shape = 'u8[8192]{0}', space=vmem, size = 0x2000, scoped, tag = 'input window, operand 8, single buffered']
    #allocation14 [shape = 's32[1]{0}', space=sflag, size = 0x4, scoped, tag = 'scoped memory for tpu_custom_call.1']
    #allocation15 [shape = 'u8[8192]{0}', space=vmem, size = 0x2000, scoped, tag = 'output window, operand 0']
    %19 = vsyncpa [#allocation11], 0
    %s20 = scalar_lea.sflag [#allocation11], 1
    %21 = vsyncpa %s20, 0
    %22 = vsyncpa [#allocation14], 0
    %23 = vsyncpa [#allocation12], 0
    %s24 = scalar_lea.sflag [#allocation12], 1
    %25 = vsyncpa %s24, 0
    loop: start=0, step=1, limit=4
    $region2: #{tpu_custom_call.1} parent=1 // loop_pre_header
      _
    $region3: #{tpu_custom_call.1} parent=1 // loop_header
      %s27 = sphi 0, %s31
      %p28 = scmp.ge.s32.totalorder %s27, 4
      %s37 = sphi 0, %s39
      %s40 = sphi 0, %s37
      %s41 = sphi 0, %s40
      %s57 = sphi 0, %s41
      %s63 = sphi 0, %s65
      %s66 = sphi 0, %s63
      %s67 = sphi 0, %s66
      %s83 = sphi 0, %s67
      %s87 = sphi 0, %s87
      %s89 = sphi 0, %s87
      %s90 = sphi 0, %s89
      %s104 = sphi 0, %s90
      %s108 = sphi 0, %s108
      %s110 = sphi 0, %s108
      %s111 = sphi 0, %s110
      %s125 = sphi 0, %s111
      %s129 = sphi 0, %s129
      %s131 = sphi 0, %s129
      %s132 = sphi 0, %s131
      %s146 = sphi 0, %s132
      %s150 = sphi 0, %s150
      %s152 = sphi 0, %s150
      %s153 = sphi 0, %s152
      %s167 = sphi 0, %s153
      %s171 = sphi 0, %s171
      %s173 = sphi 0, %s171
      %s174 = sphi 0, %s173
      %s188 = sphi 0, %s174
      %s192 = sphi 0, %s192
      %s194 = sphi 0, %s192
      %s195 = sphi 0, %s194
      %s209 = sphi 0, %s195
      %s213 = sphi 0, %s213
      %s215 = sphi 0, %s213
      %s216 = sphi 0, %s215
      %s230 = sphi 0, %s216
      %s234 = sphi 0, %s234
      %s236 = sphi 0, %s234
      %s237 = sphi 0, %s236
      %s251 = sphi 0, %s237
      %s255 = sphi 0, %s255
      %s257 = sphi 0, %s255
      %s258 = sphi 0, %s257
      %s272 = sphi 0, %s258
      %s276 = sphi 0, %s276
      %s278 = sphi 0, %s276
      %s279 = sphi 0, %s278
      %s293 = sphi 0, %s279
      %s297 = sphi 0, %s297
      %s299 = sphi 0, %s297
      %s300 = sphi 0, %s299
      %s314 = sphi 0, %s300
      %s318 = sphi 0, %s318
      %s320 = sphi 0, %s318
      %s321 = sphi 0, %s320
      %s335 = sphi 0, %s321
      %s341 = sphi 0, %s343
      %s344 = sphi 0, %s341
      %s345 = sphi 0, %s344
      %s361 = sphi 0, %s345
    $region4: #{tpu_custom_call.1} parent=1 // loop_header_branch
      %30 = sbr.rel (%p28) target = $region8
    $region5: #{tpu_custom_call.1} parent=1 // loop_body
      %s32 = ssub.s32 %s27, 1
      %s33 = ssub.s32 %s27, 2
      %s34 = sadd.s32 %s27, 1
      %s35 = ssub.s32 %s27, %s34
      %p36 = scmp.eq.s32.totalorder %s35, 0
      %s38 = sadd.s32 %s37, 1
      %s39 = scalar_select %p36, %s37, %s38
      %p42 = pneg %p36
      %p43 = scmp.eq.s32.totalorder %s27, 1
      %p44 = por %p42, %p43
      %p45 = scmp.ne.s32.totalorder %s37, %s40
      %p46 = scmp.eq.s32.totalorder %s27, 0
      %p47 = por %p45, %p46
      %p48 = scmp.ne.s32.totalorder %s37, %s40
      %p49 = scmp.eq.s32.totalorder %s32, 1
      %p50 = por %p48, %p49
      %p51 = scmp.ne.s32.totalorder %s40, %s41
      %p52 = scmp.eq.s32.totalorder %s32, 0
      %p53 = por %p51, %p52
      %p54 = scmp.ne.s32.totalorder %s40, %s41
      %p55 = scmp.eq.s32.totalorder %s33, 1
      %p56 = por %p54, %p55
      %p58 = scmp.ne.s32.totalorder %s41, %s57
      %p59 = scmp.eq.s32.totalorder %s33, 0
      %p60 = por %p58, %p59
      %s61 = ssub.s32 %s27, %s34
      %p62 = scmp.eq.s32.totalorder %s61, 0
      %s64 = sadd.s32 %s63, 1
      %s65 = scalar_select %p62, %s63, %s64
      %p68 = pneg %p62
      %p69 = scmp.eq.s32.totalorder %s27, 1
      %p70 = por %p68, %p69
      %p71 = scmp.ne.s32.totalorder %s63, %s66
      %p72 = scmp.eq.s32.totalorder %s27, 0
      %p73 = por %p71, %p72
      %p74 = scmp.ne.s32.totalorder %s63, %s66
      %p75 = scmp.eq.s32.totalorder %s32, 1
      %p76 = por %p74, %p75
      %p77 = scmp.ne.s32.totalorder %s66, %s67
      %p78 = scmp.eq.s32.totalorder %s32, 0
      %p79 = por %p77, %p78
      %p80 = scmp.ne.s32.totalorder %s66, %s67
      %p81 = scmp.eq.s32.totalorder %s33, 1
      %p82 = por %p80, %p81
      %p84 = scmp.ne.s32.totalorder %s67, %s83
      %p85 = scmp.eq.s32.totalorder %s33, 0
      %p86 = por %p84, %p85
      %s88 = sadd.s32 %s87, 1
      %p91 = scmp.eq.s32.totalorder %s27, 1
      %p92 = scmp.ne.s32.totalorder %s87, %s89
      %p93 = scmp.eq.s32.totalorder %s27, 0
      %p94 = por %p92, %p93
      %p95 = scmp.ne.s32.totalorder %s87, %s89
      %p96 = scmp.eq.s32.totalorder %s32, 1
      %p97 = por %p95, %p96
      %p98 = scmp.ne.s32.totalorder %s89, %s90
      %p99 = scmp.eq.s32.totalorder %s32, 0
      %p100 = por %p98, %p99
      %p101 = scmp.ne.s32.totalorder %s89, %s90
      %p102 = scmp.eq.s32.totalorder %s33, 1
      %p103 = por %p101, %p102
      %p105 = scmp.ne.s32.totalorder %s90, %s104
      %p106 = scmp.eq.s32.totalorder %s33, 0
      %p107 = por %p105, %p106
      %s109 = sadd.s32 %s108, 1
      %p112 = scmp.eq.s32.totalorder %s27, 1
      %p113 = scmp.ne.s32.totalorder %s108, %s110
      %p114 = scmp.eq.s32.totalorder %s27, 0
      %p115 = por %p113, %p114
      %p116 = scmp.ne.s32.totalorder %s108, %s110
      %p117 = scmp.eq.s32.totalorder %s32, 1
      %p118 = por %p116, %p117
      %p119 = scmp.ne.s32.totalorder %s110, %s111
      %p120 = scmp.eq.s32.totalorder %s32, 0
      %p121 = por %p119, %p120
      %p122 = scmp.ne.s32.totalorder %s110, %s111
      %p123 = scmp.eq.s32.totalorder %s33, 1
      %p124 = por %p122, %p123
      %p126 = scmp.ne.s32.totalorder %s111, %s125
      %p127 = scmp.eq.s32.totalorder %s33, 0
      %p128 = por %p126, %p127
      %s130 = sadd.s32 %s129, 1
      %p133 = scmp.eq.s32.totalorder %s27, 1
      %p134 = scmp.ne.s32.totalorder %s129, %s131
      %p135 = scmp.eq.s32.totalorder %s27, 0
      %p136 = por %p134, %p135
      %p137 = scmp.ne.s32.totalorder %s129, %s131
      %p138 = scmp.eq.s32.totalorder %s32, 1
      %p139 = por %p137, %p138
      %p140 = scmp.ne.s32.totalorder %s131, %s132
      %p141 = scmp.eq.s32.totalorder %s32, 0
      %p142 = por %p140, %p141
      %p143 = scmp.ne.s32.totalorder %s131, %s132
      %p144 = scmp.eq.s32.totalorder %s33, 1
      %p145 = por %p143, %p144
      %p147 = scmp.ne.s32.totalorder %s132, %s146
      %p148 = scmp.eq.s32.totalorder %s33, 0
      %p149 = por %p147, %p148
      %s151 = sadd.s32 %s150, 1
      %p154 = scmp.eq.s32.totalorder %s27, 1
      %p155 = scmp.ne.s32.totalorder %s150, %s152
      %p156 = scmp.eq.s32.totalorder %s27, 0
      %p157 = por %p155, %p156
      %p158 = scmp.ne.s32.totalorder %s150, %s152
      %p159 = scmp.eq.s32.totalorder %s32, 1
      %p160 = por %p158, %p159
      %p161 = scmp.ne.s32.totalorder %s152, %s153
      %p162 = scmp.eq.s32.totalorder %s32, 0
      %p163 = por %p161, %p162
      %p164 = scmp.ne.s32.totalorder %s152, %s153
      %p165 = scmp.eq.s32.totalorder %s33, 1
      %p166 = por %p164, %p165
      %p168 = scmp.ne.s32.totalorder %s153, %s167
      %p169 = scmp.eq.s32.totalorder %s33, 0
      %p170 = por %p168, %p169
      %s172 = sadd.s32 %s171, 1
      %p175 = scmp.eq.s32.totalorder %s27, 1
      %p176 = scmp.ne.s32.totalorder %s171, %s173
      %p177 = scmp.eq.s32.totalorder %s27, 0
      %p178 = por %p176, %p177
      %p179 = scmp.ne.s32.totalorder %s171, %s173
      %p180 = scmp.eq.s32.totalorder %s32, 1
      %p181 = por %p179, %p180
      %p182 = scmp.ne.s32.totalorder %s173, %s174
      %p183 = scmp.eq.s32.totalorder %s32, 0
      %p184 = por %p182, %p183
      %p185 = scmp.ne.s32.totalorder %s173, %s174
      %p186 = scmp.eq.s32.totalorder %s33, 1
      %p187 = por %p185, %p186
      %p189 = scmp.ne.s32.totalorder %s174, %s188
      %p190 = scmp.eq.s32.totalorder %s33, 0
      %p191 = por %p189, %p190
      %s193 = sadd.s32 %s192, 1
      %p196 = scmp.eq.s32.totalorder %s27, 1
      %p197 = scmp.ne.s32.totalorder %s192, %s194
      %p198 = scmp.eq.s32.totalorder %s27, 0
      %p199 = por %p197, %p198
      %p200 = scmp.ne.s32.totalorder %s192, %s194
      %p201 = scmp.eq.s32.totalorder %s32, 1
      %p202 = por %p200, %p201
      %p203 = scmp.ne.s32.totalorder %s194, %s195
      %p204 = scmp.eq.s32.totalorder %s32, 0
      %p205 = por %p203, %p204
      %p206 = scmp.ne.s32.totalorder %s194, %s195
      %p207 = scmp.eq.s32.totalorder %s33, 1
      %p208 = por %p206, %p207
      %p210 = scmp.ne.s32.totalorder %s195, %s209
      %p211 = scmp.eq.s32.totalorder %s33, 0
      %p212 = por %p210, %p211
      %s214 = sadd.s32 %s213, 1
      %p217 = scmp.eq.s32.totalorder %s27, 1
      %p218 = scmp.ne.s32.totalorder %s213, %s215
      %p219 = scmp.eq.s32.totalorder %s27, 0
      %p220 = por %p218, %p219
      %p221 = scmp.ne.s32.totalorder %s213, %s215
      %p222 = scmp.eq.s32.totalorder %s32, 1
      %p223 = por %p221, %p222
      %p224 = scmp.ne.s32.totalorder %s215, %s216
      %p225 = scmp.eq.s32.totalorder %s32, 0
      %p226 = por %p224, %p225
      %p227 = scmp.ne.s32.totalorder %s215, %s216
      %p228 = scmp.eq.s32.totalorder %s33, 1
      %p229 = por %p227, %p228
      %p231 = scmp.ne.s32.totalorder %s216, %s230
      %p232 = scmp.eq.s32.totalorder %s33, 0
      %p233 = por %p231, %p232
      %s235 = sadd.s32 %s234, 1
      %p238 = scmp.eq.s32.totalorder %s27, 1
      %p239 = scmp.ne.s32.totalorder %s234, %s236
      %p240 = scmp.eq.s32.totalorder %s27, 0
      %p241 = por %p239, %p240
      %p242 = scmp.ne.s32.totalorder %s234, %s236
      %p243 = scmp.eq.s32.totalorder %s32, 1
      %p244 = por %p242, %p243
      %p245 = scmp.ne.s32.totalorder %s236, %s237
      %p246 = scmp.eq.s32.totalorder %s32, 0
      %p247 = por %p245, %p246
      %p248 = scmp.ne.s32.totalorder %s236, %s237
      %p249 = scmp.eq.s32.totalorder %s33, 1
      %p250 = por %p248, %p249
      %p252 = scmp.ne.s32.totalorder %s237, %s251
      %p253 = scmp.eq.s32.totalorder %s33, 0
      %p254 = por %p252, %p253
      %s256 = sadd.s32 %s255, 1
      %p259 = scmp.eq.s32.totalorder %s27, 1
      %p260 = scmp.ne.s32.totalorder %s255, %s257
      %p261 = scmp.eq.s32.totalorder %s27, 0
      %p262 = por %p260, %p261
      %p263 = scmp.ne.s32.totalorder %s255, %s257
      %p264 = scmp.eq.s32.totalorder %s32, 1
      %p265 = por %p263, %p264
      %p266 = scmp.ne.s32.totalorder %s257, %s258
      %p267 = scmp.eq.s32.totalorder %s32, 0
      %p268 = por %p266, %p267
      %p269 = scmp.ne.s32.totalorder %s257, %s258
      %p270 = scmp.eq.s32.totalorder %s33, 1
      %p271 = por %p269, %p270
      %p273 = scmp.ne.s32.totalorder %s258, %s272
      %p274 = scmp.eq.s32.totalorder %s33, 0
      %p275 = por %p273, %p274
      %s277 = sadd.s32 %s276, 1
      %p280 = scmp.eq.s32.totalorder %s27, 1
      %p281 = scmp.ne.s32.totalorder %s276, %s278
      %p282 = scmp.eq.s32.totalorder %s27, 0
      %p283 = por %p281, %p282
      %p284 = scmp.ne.s32.totalorder %s276, %s278
      %p285 = scmp.eq.s32.totalorder %s32, 1
      %p286 = por %p284, %p285
      %p287 = scmp.ne.s32.totalorder %s278, %s279
      %p288 = scmp.eq.s32.totalorder %s32, 0
      %p289 = por %p287, %p288
      %p290 = scmp.ne.s32.totalorder %s278, %s279
      %p291 = scmp.eq.s32.totalorder %s33, 1
      %p292 = por %p290, %p291
      %p294 = scmp.ne.s32.totalorder %s279, %s293
      %p295 = scmp.eq.s32.totalorder %s33, 0
      %p296 = por %p294, %p295
      %s298 = sadd.s32 %s297, 1
      %p301 = scmp.eq.s32.totalorder %s27, 1
      %p302 = scmp.ne.s32.totalorder %s297, %s299
      %p303 = scmp.eq.s32.totalorder %s27, 0
      %p304 = por %p302, %p303
      %p305 = scmp.ne.s32.totalorder %s297, %s299
      %p306 = scmp.eq.s32.totalorder %s32, 1
      %p307 = por %p305, %p306
      %p308 = scmp.ne.s32.totalorder %s299, %s300
      %p309 = scmp.eq.s32.totalorder %s32, 0
      %p310 = por %p308, %p309
      %p311 = scmp.ne.s32.totalorder %s299, %s300
      %p312 = scmp.eq.s32.totalorder %s33, 1
      %p313 = por %p311, %p312
      %p315 = scmp.ne.s32.totalorder %s300, %s314
      %p316 = scmp.eq.s32.totalorder %s33, 0
      %p317 = por %p315, %p316
      %s319 = sadd.s32 %s318, 1
      %p322 = scmp.eq.s32.totalorder %s27, 1
      %p323 = scmp.ne.s32.totalorder %s318, %s320
      %p324 = scmp.eq.s32.totalorder %s27, 0
      %p325 = por %p323, %p324
      %p326 = scmp.ne.s32.totalorder %s318, %s320
      %p327 = scmp.eq.s32.totalorder %s32, 1
      %p328 = por %p326, %p327
      %p329 = scmp.ne.s32.totalorder %s320, %s321
      %p330 = scmp.eq.s32.totalorder %s32, 0
      %p331 = por %p329, %p330
      %p332 = scmp.ne.s32.totalorder %s320, %s321
      %p333 = scmp.eq.s32.totalorder %s33, 1
      %p334 = por %p332, %p333
      %p336 = scmp.ne.s32.totalorder %s321, %s335
      %p337 = scmp.eq.s32.totalorder %s33, 0
      %p338 = por %p336, %p337
      %s339 = ssub.s32 %s27, %s34
      %p340 = scmp.eq.s32.totalorder %s339, 0
      %s342 = sadd.s32 %s341, 1
      %s343 = scalar_select %p340, %s341, %s342
      %p346 = pneg %p340
      %p347 = scmp.eq.s32.totalorder %s27, 1
      %p348 = por %p346, %p347
      %p349 = scmp.ne.s32.totalorder %s341, %s344
      %p350 = scmp.eq.s32.totalorder %s27, 0
      %p351 = por %p349, %p350
      %p352 = scmp.ne.s32.totalorder %s341, %s344
      %p353 = scmp.eq.s32.totalorder %s32, 1
      %p354 = por %p352, %p353
      %p355 = scmp.ne.s32.totalorder %s344, %s345
      %p356 = scmp.eq.s32.totalorder %s32, 0
      %p357 = por %p355, %p356
      %p358 = scmp.ne.s32.totalorder %s344, %s345
      %p359 = scmp.eq.s32.totalorder %s33, 1
      %p360 = por %p358, %p359
      %p362 = scmp.ne.s32.totalorder %s345, %s361
      %p363 = scmp.eq.s32.totalorder %s33, 0
      %p364 = por %p362, %p363
      %p365 = scmp.le.s32.totalorder 1, %s27
      %p366 = scmp.lt.s32.totalorder %s27, 3
      %p367 = pnand %p365, %p366
      %p368 = pneg %p367
      // Predicated region
      $region9: #{tpu_custom_call.1} parent=5 // pred_check
        _
      $region10: #{tpu_custom_call.1} parent=5 // pred_check_branch
        %370 = sbr.rel (%p367) target = $region12
      $region11: #{tpu_custom_call.1} parent=5 // pred_region
        %s371 = ssub.s32 %s27, 1
        // Predicated region
        $region13: #{tpu_custom_call.1} parent=11 // pred_check
          %p372 = pneg %p100
        $region14: #{tpu_custom_call.1} parent=11 // pred_check_branch
          %374 = sbr.rel (%p372) target = $region16
        $region15: #{tpu_custom_call.1} parent=11 // pred_region
          _
        $region16: #{tpu_custom_call.1} parent=11 // pred_fallthru
          _
        // Predicated region
        $region17: #{tpu_custom_call.1} parent=11 // pred_check
          %p375 = pneg %p121
        $region18: #{tpu_custom_call.1} parent=11 // pred_check_branch
          %377 = sbr.rel (%p375) target = $region20
        $region19: #{tpu_custom_call.1} parent=11 // pred_region
          _
        $region20: #{tpu_custom_call.1} parent=11 // pred_fallthru
          _
        // Predicated region
        $region21: #{tpu_custom_call.1} parent=11 // pred_check
          %p378 = pneg %p142
        $region22: #{tpu_custom_call.1} parent=11 // pred_check_branch
          %380 = sbr.rel (%p378) target = $region24
        $region23: #{tpu_custom_call.1} parent=11 // pred_region
          _
        $region24: #{tpu_custom_call.1} parent=11 // pred_fallthru
          _
        // Predicated region
        $region25: #{tpu_custom_call.1} parent=11 // pred_check
          %p381 = pneg %p163
        $region26: #{tpu_custom_call.1} parent=11 // pred_check_branch
          %383 = sbr.rel (%p381) target = $region28
        $region27: #{tpu_custom_call.1} parent=11 // pred_region
          _
        $region28: #{tpu_custom_call.1} parent=11 // pred_fallthru
          _
        // Predicated region
        $region29: #{tpu_custom_call.1} parent=11 // pred_check
          %p384 = pneg %p184
        $region30: #{tpu_custom_call.1} parent=11 // pred_check_branch
          %386 = sbr.rel (%p384) target = $region32
        $region31: #{tpu_custom_call.1} parent=11 // pred_region
          _
        $region32: #{tpu_custom_call.1} parent=11 // pred_fallthru
          _
        // Predicated region
        $region33: #{tpu_custom_call.1} parent=11 // pred_check
          %p387 = pneg %p205
        $region34: #{tpu_custom_call.1} parent=11 // pred_check_branch
          %389 = sbr.rel (%p387) target = $region36
        $region35: #{tpu_custom_call.1} parent=11 // pred_region
          _
        $region36: #{tpu_custom_call.1} parent=11 // pred_fallthru
          _
        // Predicated region
        $region37: #{tpu_custom_call.1} parent=11 // pred_check
          %p390 = pneg %p226
        $region38: #{tpu_custom_call.1} parent=11 // pred_check_branch
          %392 = sbr.rel (%p390) target = $region40
        $region39: #{tpu_custom_call.1} parent=11 // pred_region
          %394 = vsyncadd [#allocation14], 0
          %s395 = sshll.u32 %s8, 4
          %s396 = int_to_ptr.hbm [resolvable:$true] %s395
          %s397 = sshll.u32 [#allocation13], 4
          %s398 = int_to_ptr.vmem [resolvable:$true] %s397
          %403 = dma.hbm_to_vmem [thread:$0]  %s396, 256, %s398, [#allocation14], 64, 64, 4
        $region40: #{tpu_custom_call.1} parent=11 // pred_fallthru
          _
        // Predicated region
        $region41: #{tpu_custom_call.1} parent=11 // pred_check
          %p404 = pneg %p247
        $region42: #{tpu_custom_call.1} parent=11 // pred_check_branch
          %406 = sbr.rel (%p404) target = $region44
        $region43: #{tpu_custom_call.1} parent=11 // pred_region
          _
        $region44: #{tpu_custom_call.1} parent=11 // pred_fallthru
          _
        // Predicated region
        $region45: #{tpu_custom_call.1} parent=11 // pred_check
          %p407 = pneg %p268
        $region46: #{tpu_custom_call.1} parent=11 // pred_check_branch
          %409 = sbr.rel (%p407) target = $region48
        $region47: #{tpu_custom_call.1} parent=11 // pred_region
          _
        $region48: #{tpu_custom_call.1} parent=11 // pred_fallthru
          _
        // Predicated region
        $region49: #{tpu_custom_call.1} parent=11 // pred_check
          %p410 = pneg %p289
        $region50: #{tpu_custom_call.1} parent=11 // pred_check_branch
          %412 = sbr.rel (%p410) target = $region52
        $region51: #{tpu_custom_call.1} parent=11 // pred_region
          _
        $region52: #{tpu_custom_call.1} parent=11 // pred_fallthru
          _
        // Predicated region
        $region53: #{tpu_custom_call.1} parent=11 // pred_check
          %p413 = pneg %p310
        $region54: #{tpu_custom_call.1} parent=11 // pred_check_branch
          %415 = sbr.rel (%p413) target = $region56
        $region55: #{tpu_custom_call.1} parent=11 // pred_region
          _
        $region56: #{tpu_custom_call.1} parent=11 // pred_fallthru
          _
        // Predicated region
        $region57: #{tpu_custom_call.1} parent=11 // pred_check
          %p416 = pneg %p331
        $region58: #{tpu_custom_call.1} parent=11 // pred_check_branch
          %418 = sbr.rel (%p416) target = $region60
        $region59: #{tpu_custom_call.1} parent=11 // pred_region
          _
        $region60: #{tpu_custom_call.1} parent=11 // pred_fallthru
          _
      $region12: #{tpu_custom_call.1} parent=5 // pred_fallthru
        _
      %p419 = scmp.lt.s32.totalorder %s27, 2
      // Predicated region
      $region61: #{tpu_custom_call.1} parent=5 // pred_check
        %p420 = pneg %p419
      $region62: #{tpu_custom_call.1} parent=5 // pred_check_branch
        %422 = sbr.rel (%p420) target = $region64
      $region63: #{tpu_custom_call.1} parent=5 // pred_region
        // Predicated region
        $region65: #{tpu_custom_call.1} parent=63 // pred_check
          %p423 = pneg %p47
        $region66: #{tpu_custom_call.1} parent=63 // pred_check_branch
          %425 = sbr.rel (%p423) target = $region68
        $region67: #{tpu_custom_call.1} parent=63 // pred_region
          %s426 = sand.u32 %s37, 1
          %s427 = scalar_lea.sflag [#allocation11], %s426
          %s428 = sand.u32 %s37, 1
          %s429 = scalar_lea.vmem [#allocation10], %s428
          %431 = vsyncadd %s427, 0
          %s432 = scalar_lea.hbm %s0, %s27
          %s434 = sshll.u32 %s432, 4
          %s435 = int_to_ptr.hbm [resolvable:$true] %s434
          %s436 = sshll.u32 %s429, 4
          %s437 = int_to_ptr.vmem [resolvable:$true] %s436
          %439 = dma.hbm_to_vmem [thread:$0]  %s435, 16, %s437, %s427
        $region68: #{tpu_custom_call.1} parent=63 // pred_fallthru
          _
        // Predicated region
        $region69: #{tpu_custom_call.1} parent=63 // pred_check
          %p440 = pneg %p73
        $region70: #{tpu_custom_call.1} parent=63 // pred_check_branch
          %442 = sbr.rel (%p440) target = $region72
        $region71: #{tpu_custom_call.1} parent=63 // pred_region
          %p443 = scmp.lt.s32.totalorder %s27, 1
          %s444 = scalar_select %p443, %s27, 1
          %s445 = smul.addr %s444, 8
          %s446 = scalar_lea.vmem %s1, %s445
        $region72: #{tpu_custom_call.1} parent=63 // pred_fallthru
          _
      $region64: #{tpu_custom_call.1} parent=5 // pred_fallthru
        _
      %p447 = scmp.le.s32.totalorder 1, %s27
      %p448 = scmp.lt.s32.totalorder %s27, 3
      %p449 = pnand %p447, %p448
      %p450 = pneg %p449
      // Predicated region
      $region73: #{tpu_custom_call.1} parent=5 // pred_check
        _
      $region74: #{tpu_custom_call.1} parent=5 // pred_check_branch
        %452 = sbr.rel (%p449) target = $region76
      $region75: #{tpu_custom_call.1} parent=5 // pred_region
        %s453 = ssub.s32 %s27, 1
        %s454 = sand.u32 %s40, 1
        %s455 = scalar_lea.sflag [#allocation11], %s454
        %s456 = sand.u32 %s40, 1
        %s457 = scalar_lea.vmem [#allocation10], %s456
        // Predicated region
        $region77: #{tpu_custom_call.1} parent=75 // pred_check
          %p458 = pneg %p53
        $region78: #{tpu_custom_call.1} parent=75 // pred_check_branch
          %460 = sbr.rel (%p458) target = $region80
        $region79: #{tpu_custom_call.1} parent=75 // pred_region
          %462 = dma.done %s455, 16
        $region80: #{tpu_custom_call.1} parent=75 // pred_fallthru
          _
        // Predicated region
        $region81: #{tpu_custom_call.1} parent=75 // pred_check
          %p463 = pneg %p226
        $region82: #{tpu_custom_call.1} parent=75 // pred_check_branch
          %465 = sbr.rel (%p463) target = $region84
        $region83: #{tpu_custom_call.1} parent=75 // pred_region
          %467 = dma.done [#allocation14], 256
        $region84: #{tpu_custom_call.1} parent=75 // pred_fallthru
          _
        %s468 = sand.u32 %s40, 1
        %s469 = scalar_lea.sflag [#allocation11], %s468
        %s470 = sand.u32 %s40, 1
        %s471 = scalar_lea.vmem [#allocation10], %s470
        %p472 = pneg %p53
        %p473 = pneg %p50
        %p474 = scmp.lt.s32.totalorder %s32, 1
        %s475 = scalar_select %p474, %s32, 1
        %s476 = smul.addr %s475, 8
        %s477 = scalar_lea.vmem %s1, %s476
        %p478 = pneg %p79
        %p479 = pneg %p76
        %p480 = pneg %p100
        %p481 = pneg %p97
        %p482 = pneg %p121
        %p483 = pneg %p118
        %p484 = pneg %p142
        %p485 = pneg %p139
        %p486 = pneg %p163
        %p487 = pneg %p160
        %p488 = pneg %p184
        %p489 = pneg %p181
        %p490 = pneg %p205
        %p491 = pneg %p202
        %p492 = pneg %p226
        %p493 = pneg %p223
        %p494 = pneg %p247
        %p495 = pneg %p244
        %p496 = pneg %p268
        %p497 = pneg %p265
        %p498 = pneg %p289
        %p499 = pneg %p286
        %p500 = pneg %p310
        %p501 = pneg %p307
        %p502 = pneg %p331
        %p503 = pneg %p328
        %p504 = pneg %p357
        %p505 = pneg %p354
        %s506 = sand.u32 %s344, 1
        %s507 = scalar_lea.sflag [#allocation12], %s506
        %s508 = sand.u32 %s344, 1
        %s509 = smul.addr %s508, 8
        %s510 = scalar_lea.vmem [#allocation15], %s509
        %p511 = scmp.lt.s32.totalorder %s32, 1
        %s512 = scalar_select %p511, %s32, 1
        %s513 = smul.addr %s512, 8
        %s514 = scalar_lea.vmem %s1, %s513
        %v516 = vld [vmem:[%s514] sm:$0xff]
        %v517 = vld [vmem:[%s457] sm:$0x1]
        %v518 = vsub.f32 1.0, %v517
        %v519 = vmul.f32 %v518, -3.4028235e+38
        %v520 = vpack.c.bf16 %v516, %v516
        %v521 = vld [vmem:[%s2] sm:$0xf]
        %v522 = vld [vmem:[%s2 + $0x4] sm:$0xf]
        %v523 = vld [vmem:[%s2 + $0x8] sm:$0xf]
        %v524 = vld [vmem:[%s2 + $0xc] sm:$0xf]
        %v525 = vld [vmem:[%s3] sm:$0x1]
        %v527 = vperm.slane %v525, 0
        %v533 = vunpack.c.l.b16 %v521
        %v534 = vunpack.c.l.b16 %v522
        %v535 = vunpack.c.l.b16 %v523
        %v536 = vunpack.c.l.b16 %v524
        %v537 = vpack.c.b16 %v534, %v533
        %v538 = vpack.c.b16 %v536, %v535
        %vm541 = vcmask 261120
        %v543 = vsel %vm541, %v520, 0
        %545 = vmatpush.bf16.msra.mxu0 0
        %546 = vmatpush.bf16.msra.mxu0 0
        %547 = vmatpush.bf16.msra.mxu0 0
        %548 = vmatpush.bf16.msra.mxu0 0
        %549 = vmatpush.bf16.msra.mxu0 0
        %550 = vmatpush.bf16.msra.mxu0 0
        %551 = vmatpush.bf16.msra.mxu0 %v538
        %552 = vmatpush.bf16.msra.mxu0 %v537
        %553 = vmatmul.bf16.gmra.mxu0 %v543
        %v554 = vpop.f32.mrf.mxu0
        %v555 = vadd.f32 %v527, %v554
        %v556 = vpop.f32.mrf.mxu0
        %557 = vdwg.mxu0
        %v558 = vpack.c.bf16 %v555, %v555
        %vm559 = vcmask 781312
        %560 = vst.msk [vmem:[#allocation2] sm:$0xf] %vm559, %v558
        %v561 = vld [vmem:[#allocation2] sm:$0xf]
        %vm562 = vcmask 60416
        %563 = vst.msk [vmem:[#allocation3] sm:$0xf] %vm562, %v561
        %v564 = vld [vmem:[#allocation2] sm:$0xf]
        %566 = vrot.lane.b32.xlu0 %v564, 96
        %v567 = vpop.permute.xlu0 %566
        %569 = vst.msk [vmem:[#allocation4] sm:$0xf] %vm562, %v567
        %v570 = vld [vmem:[#allocation2] sm:$0xf]
        %572 = vrot.lane.b32.xlu0 %v570, 64
        %v573 = vpop.permute.xlu0 %572
        %575 = vst.msk [vmem:[#allocation5] sm:$0xf] %vm562, %v573
        %v576 = vld [vmem:[#allocation2] sm:$0xf]
        %578 = vrot.lane.b32.xlu0 %v576, 120
        %v579 = vpop.permute.xlu0 %578
        %s581 = scalar_lea.vmem [#allocation3], 4
        %582 = vst.msk [vmem:[%s581] sm:$0xf] %vm562, %v579
        %v583 = vld [vmem:[#allocation2] sm:$0xf]
        %585 = vrot.lane.b32.xlu0 %v583, 88
        %v586 = vpop.permute.xlu0 %585
        %s588 = scalar_lea.vmem [#allocation4], 4
        %589 = vst.msk [vmem:[%s588] sm:$0xf] %vm562, %v586
        %v590 = vld [vmem:[#allocation2] sm:$0xf]
        %592 = vrot.lane.b32.xlu0 %v590, 56
        %v593 = vpop.permute.xlu0 %592
        %s595 = scalar_lea.vmem [#allocation5], 4
        %596 = vst.msk [vmem:[%s595] sm:$0xf] %vm562, %v593
        %v597 = vld [vmem:[#allocation2] sm:$0xf]
        %599 = vrot.lane.b32.xlu0 %v597, 112
        %v600 = vpop.permute.xlu0 %599
        %s602 = scalar_lea.vmem [#allocation3], 8
        %603 = vst.msk [vmem:[%s602] sm:$0xf] %vm562, %v600
        %v604 = vld [vmem:[#allocation2] sm:$0xf]
        %606 = vrot.lane.b32.xlu0 %v604, 80
        %v607 = vpop.permute.xlu0 %606
        %s609 = scalar_lea.vmem [#allocation4], 8
        %610 = vst.msk [vmem:[%s609] sm:$0xf] %vm562, %v607
        %v611 = vld [vmem:[#allocation2] sm:$0xf]
        %613 = vrot.lane.b32.xlu0 %v611, 48
        %v614 = vpop.permute.xlu0 %613
        %s616 = scalar_lea.vmem [#allocation5], 8
        %617 = vst.msk [vmem:[%s616] sm:$0xf] %vm562, %v614
        %v618 = vld [vmem:[#allocation2] sm:$0xf]
        %620 = vrot.lane.b32.xlu0 %v618, 104
        %v621 = vpop.permute.xlu0 %620
        %s623 = scalar_lea.vmem [#allocation3], 12
        %624 = vst.msk [vmem:[%s623] sm:$0xf] %vm562, %v621
        %v625 = vld [vmem:[#allocation2] sm:$0xf]
        %627 = vrot.lane.b32.xlu0 %v625, 72
        %v628 = vpop.permute.xlu0 %627
        %s630 = scalar_lea.vmem [#allocation4], 12
        %631 = vst.msk [vmem:[%s630] sm:$0xf] %vm562, %v628
        %v632 = vld [vmem:[#allocation2] sm:$0xf]
        %634 = vrot.lane.b32.xlu0 %v632, 40
        %v635 = vpop.permute.xlu0 %634
        %s637 = scalar_lea.vmem [#allocation5], 12
        %638 = vst.msk [vmem:[%s637] sm:$0xf] %vm562, %v635
        loop: start=0, step=1, limit=4
        $region85: #{tpu_custom_call.1} parent=75 // loop_pre_header
          _
        $region86: #{tpu_custom_call.1} parent=75 // loop_header
          %s640 = sphi 0, %s644
          %p641 = scmp.ge.s32.totalorder %s640, 4
        $region87: #{tpu_custom_call.1} parent=75 // loop_header_branch
          %643 = sbr.rel (%p641) target = $region91
        $region88: #{tpu_custom_call.1} parent=75 // loop_body
          %s645 = smul.addr %s640, 4
          %s646 = scalar_lea.vmem [#allocation4], %s645
          %v647 = vld [vmem:[%s646] sm:$0xf]
          %s648 = smul.addr %s640, 4
          %s649 = scalar_lea.vmem [#allocation5], %s648
          %v650 = vld [vmem:[%s649] sm:$0xf]
          %s651 = sadd.s32 0, %s640
          %s652 = smul.addr %s651, 4
          %s653 = scalar_lea.vmem [#allocation3], %s652
          %v654 = vld [vmem:[%s653] sm:$0xf]
          %vm655 = vcmask 64512
          %v657 = vsel %vm655, %v654, 0
          %v660 = vsel %vm655, %v647, 0
          %662 = vmatpush.bf16.xpose.msra.mxu0 0
          %663 = vmatpush.bf16.xpose.msra.mxu0 0
          %664 = vmatpush.bf16.xpose.msra.mxu0 0
          %665 = vmatpush.bf16.xpose.msra.mxu0 0
          %666 = vmatpush.bf16.xpose.msra.mxu0 0
          %667 = vmatpush.bf16.xpose.msra.mxu0 0
          %668 = vmatpush.bf16.xpose.msra.mxu0 0
          %669 = vmatpush.bf16.xpose.msra.mxu0 %v660
          %670 = vmatmul.bf16.gmra.mxu0 %v657
          %v671 = vpop.f32.mrf.mxu0
          %v672 = vadd.f32 0.0, %v671
          %v673 = vpop.f32.mrf.mxu0
          %674 = vdwg.mxu0
          %v675 = vmul.f32 %v672, 0.35355338
          %v677 = vperm.slane %v519, 0
          %v679 = vadd.f32 %v675, %v677
          %v680 = vsel %vm655, %v679, -inf
          %681 = vmax.xlane.f32.xlu0 %v680
          %v682 = vpop.xlane.xlu0 %681
          %v683 = vsub.f32 %v679, %v682
          %v684 = vmul.f32 %v683, 1.442695
          %v685 = vpow.pop %v684
          %v686 = vsel %vm655, %v685, 0.0
          %687 = vadd.xlane.f32.xlu0 %v686
          %v688 = vpop.xlane.xlu0 %687
          %v689 = vrcp.pop %v688
          %v690 = vmul.f32 %v685, %v689
          %v691 = vpack.c.bf16 %v690, %v690
          %v693 = vsel %vm655, %v691, 0
          %vm695 = vcmask 1043456
          %v697 = vsel %vm695, %v650, 0
          %699 = vmatpush.bf16.msra.mxu0 0
          %700 = vmatpush.bf16.msra.mxu0 0
          %701 = vmatpush.bf16.msra.mxu0 0
          %702 = vmatpush.bf16.msra.mxu0 0
          %703 = vmatpush.bf16.msra.mxu0 0
          %704 = vmatpush.bf16.msra.mxu0 0
          %705 = vmatpush.bf16.msra.mxu0 0
          %706 = vmatpush.bf16.msra.mxu0 %v697
          %707 = vmatmul.bf16.gmra.mxu0 %v693
          %v708 = vpop.f32.mrf.mxu0
          %v709 = vadd.f32 0.0, %v708
          %v710 = vpop.f32.mrf.mxu0
          %711 = vdwg.mxu0
          %v712 = vpack.c.bf16 %v709, %v709
          %s713 = smul.addr %s651, 4
          %s714 = scalar_lea.vmem [#allocation6], %s713
          %715 = vst.msk [vmem:[%s714] sm:$0xf] %vm562, %v712
        $region89: #{tpu_custom_call.1} parent=75 // loop_footer
          %s644 = sadd.s32 1, %s640
        $region90: #{tpu_custom_call.1} parent=75 // loop_footer_branch
          %639 = sbr.rel target = $region86
        $region91: #{tpu_custom_call.1} parent=75 // loop_exit
          _
        %v716 = vld [vmem:[#allocation6] sm:$0xf]
        %717 = vst.msk [vmem:[#allocation7] sm:$0xf] %vm562, %v716
        %s718 = scalar_lea.vmem [#allocation6], 4
        %v719 = vld [vmem:[%s718] sm:$0xf]
        %721 = vrot.lane.b32.xlu0 %v719, 8
        %v722 = vpop.permute.xlu0 %721
        %vm724 = vcmask 126016
        %725 = vst.msk [vmem:[#allocation7] sm:$0xf] %vm724, %v722
        %s726 = scalar_lea.vmem [#allocation6], 8
        %v727 = vld [vmem:[%s726] sm:$0xf]
        %729 = vrot.lane.b32.xlu0 %v727, 16
        %v730 = vpop.permute.xlu0 %729
        %vm732 = vcmask 191616
        %733 = vst.msk [vmem:[#allocation7] sm:$0xf] %vm732, %v730
        %s734 = scalar_lea.vmem [#allocation6], 12
        %v735 = vld [vmem:[%s734] sm:$0xf]
        %737 = vrot.lane.b32.xlu0 %v735, 24
        %v738 = vpop.permute.xlu0 %737
        %vm740 = vcmask 257216
        %741 = vst.msk [vmem:[#allocation7] sm:$0xf] %vm740, %v738
        %v742 = vld [vmem:[#allocation7] sm:$0xf]
        %v743 = vld [vmem:[%s4] sm:$0xf]
        %v744 = vld [vmem:[%s4 + $0x4] sm:$0xf]
        %v745 = vld [vmem:[%s4 + $0x8] sm:$0xf]
        %v746 = vld [vmem:[%s4 + $0xc] sm:$0xf]
        %v747 = vld [vmem:[%s5] sm:$0x1]
        %v749 = vperm.slane %v747, 0
        %v755 = vunpack.c.l.b16 %v743
        %v756 = vunpack.c.l.b16 %v744
        %v757 = vunpack.c.l.b16 %v745
        %v758 = vunpack.c.l.b16 %v746
        %v759 = vpack.c.b16 %v756, %v755
        %v760 = vpack.c.b16 %v758, %v757
        %v764 = vsel %vm541, %v742, 0
        %766 = vmatpush.bf16.msra.mxu0 0
        %767 = vmatpush.bf16.msra.mxu0 0
        %768 = vmatpush.bf16.msra.mxu0 0
        %769 = vmatpush.bf16.msra.mxu0 0
        %770 = vmatpush.bf16.msra.mxu0 0
        %771 = vmatpush.bf16.msra.mxu0 0
        %772 = vmatpush.bf16.msra.mxu0 %v760
        %773 = vmatpush.bf16.msra.mxu0 %v759
        %774 = vmatmul.bf16.gmra.mxu0 %v764
        %v775 = vpop.f32.mrf.mxu0
        %v776 = vadd.f32 %v749, %v775
        %v777 = vpop.f32.mrf.mxu0
        %778 = vdwg.mxu0
        %v779 = vadd.f32 %v776, %v516
        %v780 = vld [vmem:[%s6] sm:$0x1]
        %v781 = vld [vmem:[%s7] sm:$0x1]
        %v782 = vsel %vm541, %v779, 0.0
        %783 = vadd.xlane.f32.xlu0 %v782
        %v784 = vpop.xlane.xlu0 %783
        %v785 = vrcp.pop 32.0
        %v786 = vmul.f32 32.0, %v785
        %v787 = vsub.f32 1.0, %v786
        %v788 = vmul.f32 %v785, %v787
        %v789 = vadd.f32 %v785, %v788
        %vm790 = vweird.f32 %v785
        %v791 = vsel %vm790, %v785, %v789
        %v792 = vmul.f32 %v784, %v791
        %v793 = vsub.f32 %v779, %v792
        %v794 = vmul.f32 %v793, %v793
        %v795 = vsel %vm541, %v794, 0.0
        %796 = vadd.xlane.f32.xlu0 %v795
        %v797 = vpop.xlane.xlu0 %796
        %v798 = vmul.f32 %v797, %v791
        %v799 = vadd.f32 %v798, 1e-12
        %v800 = vrsqrt.pop %v799
        %v801 = vmul.f32 %v800, %v799
        %v802 = vmul.f32 %v801, %v800
        %v803 = vmul.f32 0.5, %v802
        %v804 = vsub.f32 1.5, %v803
        %v805 = vmul.f32 %v800, %v804
        %vm806 = vweird.f32 %v799
        %vm807 = vweird.f32 %v800
        %vm808 = vmor %vm806, %vm807
        %v809 = vsel %vm808, %v800, %v805
        %v810 = vmul.f32 %v793, %v809
        %v812 = vperm.slane %v780, 0
        %v814 = vmul.f32 %v810, %v812
        %v816 = vperm.slane %v781, 0
        %v818 = vadd.f32 %v814, %v816
        %819 = vst.msk [vmem:[#allocation8] sm:$0xff] %vm541, %v818
        %v820 = vld [vmem:[#allocation8] sm:$0xff]
        %v821 = vpack.c.bf16 %v820, %v820
        %v822 = vld [vmem:[#allocation13] sm:$0xf]
        %v823 = vld [vmem:[#allocation13 + $0x4] sm:$0xf]
        %v824 = vld [vmem:[#allocation13 + $0x8] sm:$0xf]
        %v825 = vld [vmem:[#allocation13 + $0xc] sm:$0xf]
        %v826 = vld [vmem:[%s9] sm:$0x1]
        %v828 = vperm.slane %v826, 0
        %v834 = vunpack.c.l.b16 %v822
        %v835 = vunpack.c.l.b16 %v823
        %v836 = vunpack.c.l.b16 %v824
        %v837 = vunpack.c.l.b16 %v825
        %v838 = vpack.c.b16 %v835, %v834
        %v839 = vpack.c.b16 %v837, %v836
        %v843 = vsel %vm541, %v821, 0
        %845 = vmatpush.bf16.msra.mxu0 0
        %846 = vmatpush.bf16.msra.mxu0 0
        %847 = vmatpush.bf16.msra.mxu0 0
        %848 = vmatpush.bf16.msra.mxu0 0
        %849 = vmatpush.bf16.msra.mxu0 0
        %850 = vmatpush.bf16.msra.mxu0 0
        %851 = vmatpush.bf16.msra.mxu0 %v839
        %852 = vmatpush.bf16.msra.mxu0 %v838
        %853 = vmatmul.bf16.gmra.mxu0 %v843
        %v854 = vpop.f32.mrf.mxu0
        %v855 = vadd.f32 %v828, %v854
        %v856 = vpop.f32.mrf.mxu0
        %857 = vdwg.mxu0
        %v858 = vmul.f32 %v855, 0.5
        %v859 = vmul.f32 %v855, 0.044715
        %v860 = vmul.f32 %v859, %v855
        %v861 = vmul.f32 %v860, %v855
        %v862 = vadd.f32 %v855, %v861
        %v863 = vmul.f32 %v862, 0.7978846
        %v864 = vtanh.pop %v863
        %v865 = vadd.f32 %v864, 1.0
        %v866 = vmul.f32 %v858, %v865
        %v867 = vpack.c.bf16 %v866, %v866
        %v868 = vld [vmem:[%s10] sm:$0xf]
        %v869 = vld [vmem:[%s10 + $0x4] sm:$0xf]
        %v870 = vld [vmem:[%s10 + $0x8] sm:$0xf]
        %v871 = vld [vmem:[%s10 + $0xc] sm:$0xf]
        %v872 = vld [vmem:[%s10 + $0x10] sm:$0xf]
        %v873 = vld [vmem:[%s10 + $0x14] sm:$0xf]
        %v874 = vld [vmem:[%s10 + $0x18] sm:$0xf]
        %v875 = vld [vmem:[%s10 + $0x1c] sm:$0xf]
        %v884 = vunpack.c.l.b16 %v868
        %v885 = vunpack.c.l.b16 %v869
        %v886 = vunpack.c.l.b16 %v870
        %v887 = vunpack.c.l.b16 %v871
        %v888 = vunpack.c.l.b16 %v872
        %v889 = vunpack.c.l.b16 %v873
        %v890 = vunpack.c.l.b16 %v874
        %v891 = vunpack.c.l.b16 %v875
        %v892 = vpack.c.b16 %v885, %v884
        %v893 = vpack.c.b16 %v887, %v886
        %v894 = vpack.c.b16 %v889, %v888
        %v895 = vpack.c.b16 %v891, %v890
        %vm900 = vcmask 523264
        %v902 = vsel %vm900, %v867, 0
        %904 = vmatpush.bf16.msra.mxu0 0
        %905 = vmatpush.bf16.msra.mxu0 0
        %906 = vmatpush.bf16.msra.mxu0 0
        %907 = vmatpush.bf16.msra.mxu0 0
        %908 = vmatpush.bf16.msra.mxu0 %v895
        %909 = vmatpush.bf16.msra.mxu0 %v894
        %910 = vmatpush.bf16.msra.mxu0 %v893
        %911 = vmatpush.bf16.msra.mxu0 %v892
        %912 = vmatmul.bf16.gmra.mxu0 %v902
        %v913 = vpop.f32.mrf.mxu0
        %v914 = vadd.f32 0.0, %v913
        %v915 = vpop.f32.mrf.mxu0
        %916 = vdwg.mxu0
        %917 = vst.msk [vmem:[#allocation9] sm:$0xff] %vm541, %v914
        %v918 = vld [vmem:[#allocation9] sm:$0xff]
        %v919 = vld [vmem:[%s11] sm:$0x1]
        %v921 = vperm.slane %v919, 0
        %v923 = vadd.f32 %v918, %v921
        %v924 = vld [vmem:[#allocation8] sm:$0xff]
        %v925 = vadd.f32 %v923, %v924
        %v926 = vld [vmem:[%s12] sm:$0x1]
        %v927 = vld [vmem:[%s13] sm:$0x1]
        %v928 = vsel %vm541, %v925, 0.0
        %929 = vadd.xlane.f32.xlu0 %v928
        %v930 = vpop.xlane.xlu0 %929
        %v931 = vmul.f32 %v930, %v791
        %v932 = vsub.f32 %v925, %v931
        %v933 = vmul.f32 %v932, %v932
        %v934 = vsel %vm541, %v933, 0.0
        %935 = vadd.xlane.f32.xlu0 %v934
        %v936 = vpop.xlane.xlu0 %935
        %v937 = vmul.f32 %v936, %v791
        %v938 = vadd.f32 %v937, 1e-12
        %v939 = vrsqrt.pop %v938
        %v940 = vmul.f32 %v939, %v938
        %v941 = vmul.f32 %v940, %v939
        %v942 = vmul.f32 0.5, %v941
        %v943 = vsub.f32 1.5, %v942
        %v944 = vmul.f32 %v939, %v943
        %vm945 = vweird.f32 %v938
        %vm946 = vweird.f32 %v939
        %vm947 = vmor %vm945, %vm946
        %v948 = vsel %vm947, %v939, %v944
        %v949 = vmul.f32 %v932, %v948
        %v951 = vperm.slane %v926, 0
        %v953 = vmul.f32 %v949, %v951
        %v955 = vperm.slane %v927, 0
        %v957 = vadd.f32 %v953, %v955
        %958 = vst.msk [vmem:[%s510] sm:$0xff] %vm541, %v957
        %s959 = sand.u32 %s344, 1
        %s960 = scalar_lea.sflag [#allocation12], %s959
        %s961 = sand.u32 %s344, 1
        %s962 = smul.addr %s961, 8
        %s963 = scalar_lea.vmem [#allocation15], %s962
        // Predicated region
        $region92: #{tpu_custom_call.1} parent=75 // pred_check
          %p964 = pneg %p354
        $region93: #{tpu_custom_call.1} parent=75 // pred_check_branch
          %966 = sbr.rel (%p964) target = $region95
        $region94: #{tpu_custom_call.1} parent=75 // pred_region
          %968 = vsyncadd %s960, 0
          %s969 = smul.addr %s32, 8
          %s970 = scalar_lea.hbm %s14, %s969
          %s972 = sshll.u32 %s963, 4
          %s973 = int_to_ptr.vmem [resolvable:$true] %s972
          %s974 = sshll.u32 %s970, 4
          %s975 = int_to_ptr.hbm [resolvable:$true] %s974
          %977 = dma.vmem_to_hbm [thread:$0]  %s973, 128, %s975, %s960
        $region95: #{tpu_custom_call.1} parent=75 // pred_fallthru
          _
      $region76: #{tpu_custom_call.1} parent=5 // pred_fallthru
        _
      %p978 = scmp.le.s32.totalorder 2, %s27
      // Predicated region
      $region96: #{tpu_custom_call.1} parent=5 // pred_check
        %p979 = pneg %p978
      $region97: #{tpu_custom_call.1} parent=5 // pred_check_branch
        %981 = sbr.rel (%p979) target = $region99
      $region98: #{tpu_custom_call.1} parent=5 // pred_region
        %s982 = ssub.s32 %s27, 2
        // Predicated region
        $region100: #{tpu_custom_call.1} parent=98 // pred_check
          %p983 = pneg %p360
        $region101: #{tpu_custom_call.1} parent=98 // pred_check_branch
          %985 = sbr.rel (%p983) target = $region103
        $region102: #{tpu_custom_call.1} parent=98 // pred_region
          %s986 = sand.u32 %s345, 1
          %s987 = scalar_lea.sflag [#allocation12], %s986
          %s988 = sand.u32 %s345, 1
          %s989 = smul.addr %s988, 8
          %s990 = scalar_lea.vmem [#allocation15], %s989
          %992 = dma.done %s987, 128
        $region103: #{tpu_custom_call.1} parent=98 // pred_fallthru
          _
      $region99: #{tpu_custom_call.1} parent=5 // pred_fallthru
        _
    $region6: #{tpu_custom_call.1} parent=1 // loop_footer
      %s31 = sadd.s32 1, %s27
    $region7: #{tpu_custom_call.1} parent=1 // loop_footer_branch
      %26 = sbr.rel target = $region3
    $region8: #{tpu_custom_call.1} parent=1 // loop_exit
      _
    %993 = vsyncpa [#allocation11], 1
    %s994 = scalar_lea.sflag [#allocation11], 1
    %995 = vsyncpa %s994, 1
    %996 = vsyncpa [#allocation14], 1
    %997 = vsyncpa [#allocation12], 1
    %s998 = scalar_lea.sflag [#allocation12], 1
    %999 = vsyncpa %s998, 1

</llo_original>
